<compile_context>
chip_gen: v5e
topology: v5e:2x2
jax: 0.10.0
libtpu: 0.0.40
codegen_flags: <defaults>
</compile_context>

<pallas_src>
import jax
import jax.numpy as jnp
from jax.experimental import pallas as pl
from jax.experimental.pallas import tpu as pltpu

_CHUNK = 256  # batch rows processed per inner-loop step (keeps activations in vregs)


def _mlp_kernel(x_ref,
                w1_ref, b1_ref,
                w2_ref, b2_ref,
                w3_ref, b3_ref,
                w4t_ref, b4_ref,
                o_ref):
    """x_ref: (TB, ni) natural layout; o_ref: (TB, no) natural layout.

    Each 256-row chunk is computed with the batch on the lane axis
    ((hidden, CH) activations -> full 128-lane vregs, wide-N MXU pushes); only
    the tiny last layer is flipped back to natural (CH, no) for the store.
    """
    n_chunks = x_ref.shape[0] // _CHUNK

    def chunk_body(c, carry):
        r0 = pl.multiple_of(c * _CHUNK, _CHUNK)
        xc = x_ref[pl.ds(r0, _CHUNK), :]                      # (CH, ni)

        # Hidden block 1: Linear(15 -> 64) + ReLU   (Dropout = identity in eval)
        # w1 @ xc^T: contract both feature axes -> (64, CH), batch on lanes.
        h = jax.lax.dot_general(w1_ref[...], xc,
                                (((1,), (1,)), ((), ())),
                                preferred_element_type=jnp.float32)
        h = jnp.maximum(h + b1_ref[...], 0.0)

        # Hidden block 2: Linear(64 -> 64) + ReLU
        h = jnp.dot(w2_ref[...], h, preferred_element_type=jnp.float32)
        h = jnp.maximum(h + b2_ref[...], 0.0)

        # Hidden block 3: Linear(64 -> 32) + ReLU
        h = jnp.dot(w3_ref[...], h, preferred_element_type=jnp.float32)
        h = jnp.maximum(h + b3_ref[...], 0.0)

        # Output block: Linear(32 -> 15) + Sigmoid, emitted natural (CH, no).
        z = jnp.dot(h.T, w4t_ref[...], preferred_element_type=jnp.float32)
        z = z + b4_ref[...]
        o_ref[pl.ds(r0, _CHUNK), :] = jax.nn.sigmoid(z).astype(o_ref.dtype)
        return carry

    jax.lax.fori_loop(0, n_chunks, chunk_body, 0, unroll=True)


def _round_up(n, m):
    return ((n + m - 1) // m) * m


def palette_model_forward(x, params, block_b=2048):
    """x: (B, ni) float32.  params: [(W1,b1),(W2,b2),(W3,b3),(W4,b4)],
    torch layout (W: (out, in), b: (out,)).  Returns (B, no) float32."""
    B, ni = x.shape
    (w1, b1), (w2, b2), (w3, b3), (w4, b4) = params
    h1, h2, h3, no = w1.shape[0], w2.shape[0], w3.shape[0], w4.shape[0]

    # Batch tile: multiple of the in-kernel chunk, capped so tiny batches do
    # not over-pad, and split so the grid keeps >=2 steps when possible
    # (lets v7x megacore shard the "parallel" batch axis over both cores).
    block_b = min(_round_up(block_b, _CHUNK), _round_up(B, _CHUNK))
    if B > 2 * _CHUNK:
        block_b = min(block_b, _round_up(pl.cdiv(B, 2), _CHUNK))
    b_pad = _round_up(B, block_b)
    grid = (b_pad // block_b,)

    # Natural-layout input; only the batch axis is zero-padded if needed.
    x_in = x if b_pad == B else jnp.zeros((b_pad, ni), x.dtype).at[:B, :].set(x)

    args = [x_in,
            w1, b1.reshape(h1, 1),
            w2, b2.reshape(h2, 1),
            w3, b3.reshape(h3, 1),
            w4.T, b4.reshape(1, no)]

    def resident(a):  # full-array block, same index every step -> stays in VMEM
        return pl.BlockSpec(a.shape, lambda i: (0, 0))

    in_specs = [pl.BlockSpec((block_b, ni), lambda i: (i, 0))]
    in_specs += [resident(a) for a in args[1:]]

    macs = ni * h1 + h1 * h2 + h2 * h3 + h3 * no
    param_bytes = sum(int(w.size) + int(b.size) for w, b in params) * 4
    cost = pl.CostEstimate(
        flops=2 * b_pad * macs,
        transcendentals=b_pad * no,
        bytes_accessed=4 * b_pad * (ni + no) + param_bytes,
    )

    out = pl.pallas_call(
        _mlp_kernel,
        out_shape=jax.ShapeDtypeStruct((b_pad, no), jnp.float32),
        grid=grid,
        in_specs=in_specs,
        out_specs=pl.BlockSpec((block_b, no), lambda i: (i, 0)),
        compiler_params=pltpu.CompilerParams(
            dimension_semantics=("parallel",),
            vmem_limit_bytes=32 * 1024 * 1024,
        ),
        cost_estimate=cost,
    )(*args)

    return out if b_pad == B else out[:B]


def init_params(key, ni=15, no=15, hidden_seq=(64, 64, 32)):
    """Deterministic init matching the PyTorch module:
       kaiming_normal_ on weights (fan_in mode, ReLU gain), bias = 0.1.
       Weights stored torch-style (out, in); biases (out,)."""
    dims = [ni] + list(hidden_seq) + [no]
    params = []
    for i in range(len(dims) - 1):
        fan_in, fan_out = dims[i], dims[i + 1]
        key, sub = jax.random.split(key)
        std = jnp.sqrt(2.0 / fan_in)  # kaiming_normal_ default (fan_in, relu gain)
        w = jax.random.normal(sub, (fan_out, fan_in), jnp.float32) * std
        b = jnp.full((fan_out,), 0.1, jnp.float32)
        params.append((w, b))
    return params


def palette_model_ref(x, params):
    """Pure-JAX reference for correctness checking."""
    h = x
    n = len(params)
    for i, (w, b) in enumerate(params):
        h = h @ w.T + b
        if i < n - 1:
            h = jnp.maximum(h, 0.0)
        else:
            h = jax.nn.sigmoid(h)
    return h


if __name__ == "__main__":
    key = jax.random.PRNGKey(0)
    k_params, k_x = jax.random.split(key)

    ni, no, hidden_seq = 15, 15, (64, 64, 32)
    batch = 777  # not a multiple of the tile -> exercises padding + 2-step grid

    params = init_params(k_params, ni=ni, no=no, hidden_seq=hidden_seq)
    x = jax.random.normal(k_x, (batch, ni), jnp.float32)

    y = palette_model_forward(x, params)
    y = jax.block_until_ready(y)

    y_ref = palette_model_ref(x, params)
    assert y.shape == (batch, no)
    assert jnp.allclose(y, y_ref, atol=1e-5, rtol=1e-5), "mismatch vs reference"

    print("KERNEL_OK")
</pallas_src>

<mosaic_0001>
module attributes {stable_mosaic.version = 11 : i64} {
  func.func @_mlp_kernel(%arg0: i32, %arg1: memref<512x15xf32, #tpu.memory_space<vmem>>, %arg2: memref<64x15xf32, #tpu.memory_space<vmem>>, %arg3: memref<64x1xf32, #tpu.memory_space<vmem>>, %arg4: memref<64x64xf32, #tpu.memory_space<vmem>>, %arg5: memref<64x1xf32, #tpu.memory_space<vmem>>, %arg6: memref<32x64xf32, #tpu.memory_space<vmem>>, %arg7: memref<32x1xf32, #tpu.memory_space<vmem>>, %arg8: memref<32x15xf32, #tpu.memory_space<vmem>>, %arg9: memref<1x15xf32, #tpu.memory_space<vmem>>, %arg10: memref<512x15xf32, #tpu.memory_space<vmem>>) attributes {dimension_semantics = [#tpu.dimension_semantics<parallel>], iteration_bounds = array<i64: 2>, scalar_prefetch = 0 : i64, scratch_operands = 0 : i64, tpu.core_type = #tpu.core_type<tc>, window_params = [{transform_indices = @transform_0, window_bounds = array<i64: 512, 15>}, {pipeline_mode = #tpu.pipeline_mode<synchronous>, transform_indices = @transform_1, window_bounds = array<i64: 64, 15>}, {pipeline_mode = #tpu.pipeline_mode<synchronous>, transform_indices = @transform_2, window_bounds = array<i64: 64, 1>}, {pipeline_mode = #tpu.pipeline_mode<synchronous>, transform_indices = @transform_3, window_bounds = array<i64: 64, 64>}, {pipeline_mode = #tpu.pipeline_mode<synchronous>, transform_indices = @transform_4, window_bounds = array<i64: 64, 1>}, {pipeline_mode = #tpu.pipeline_mode<synchronous>, transform_indices = @transform_5, window_bounds = array<i64: 32, 64>}, {pipeline_mode = #tpu.pipeline_mode<synchronous>, transform_indices = @transform_6, window_bounds = array<i64: 32, 1>}, {pipeline_mode = #tpu.pipeline_mode<synchronous>, transform_indices = @transform_7, window_bounds = array<i64: 32, 15>}, {pipeline_mode = #tpu.pipeline_mode<synchronous>, transform_indices = @transform_8, window_bounds = array<i64: 1, 15>}, {transform_indices = @transform_9, window_bounds = array<i64: 512, 15>}]} {
    %c0_i32 = arith.constant 0 : i32
    %c256_i32 = arith.constant 256 : i32
    %0 = arith.muli %c0_i32, %c256_i32 : i32
    %1 = tpu.assume_multiple %0, 256 : i32
    %2 = arith.index_cast %1 : i32 to index
    %c0 = arith.constant 0 : index
    %3 = vector.load %arg1[%2, %c0] : memref<512x15xf32, #tpu.memory_space<vmem>>, vector<256x15xf32>
    %c0_0 = arith.constant 0 : index
    %c0_1 = arith.constant 0 : index
    %4 = vector.load %arg2[%c0_0, %c0_1] : memref<64x15xf32, #tpu.memory_space<vmem>>, vector<64x15xf32>
    %cst = arith.constant dense<0.000000e+00> : vector<64x256xf32>
    %5 = tpu.matmul %4, %3, %cst {dimension_numbers = #tpu.dot_dimension_numbers<[1], [1], [0], [0], [0, 0, 1, 0], [], []>} : vector<64x15xf32>, vector<256x15xf32>, vector<64x256xf32> -> vector<64x256xf32>
    %c0_2 = arith.constant 0 : index
    %c0_3 = arith.constant 0 : index
    %6 = vector.load %arg3[%c0_2, %c0_3] : memref<64x1xf32, #tpu.memory_space<vmem>>, vector<64x1xf32>
    %7 = vector.broadcast %6 : vector<64x1xf32> to vector<64x256xf32>
    %8 = arith.addf %5, %7 : vector<64x256xf32>
    %cst_4 = arith.constant 0.000000e+00 : f32
    %9 = vector.broadcast %cst_4 : f32 to vector<64x256xf32>
    %10 = arith.maximumf %8, %9 : vector<64x256xf32>
    %c0_5 = arith.constant 0 : index
    %c0_6 = arith.constant 0 : index
    %11 = vector.load %arg4[%c0_5, %c0_6] : memref<64x64xf32, #tpu.memory_space<vmem>>, vector<64x64xf32>
    %cst_7 = arith.constant dense<0.000000e+00> : vector<64x256xf32>
    %12 = tpu.matmul %11, %10, %cst_7 {dimension_numbers = #tpu.dot_dimension_numbers<[1], [0], [0], [1], [0, 0, 1, 1], [], []>} : vector<64x64xf32>, vector<64x256xf32>, vector<64x256xf32> -> vector<64x256xf32>
    %c0_8 = arith.constant 0 : index
    %c0_9 = arith.constant 0 : index
    %13 = vector.load %arg5[%c0_8, %c0_9] : memref<64x1xf32, #tpu.memory_space<vmem>>, vector<64x1xf32>
    %14 = vector.broadcast %13 : vector<64x1xf32> to vector<64x256xf32>
    %15 = arith.addf %12, %14 : vector<64x256xf32>
    %cst_10 = arith.constant 0.000000e+00 : f32
    %16 = vector.broadcast %cst_10 : f32 to vector<64x256xf32>
    %17 = arith.maximumf %15, %16 : vector<64x256xf32>
    %c0_11 = arith.constant 0 : index
    %c0_12 = arith.constant 0 : index
    %18 = vector.load %arg6[%c0_11, %c0_12] : memref<32x64xf32, #tpu.memory_space<vmem>>, vector<32x64xf32>
    %cst_13 = arith.constant dense<0.000000e+00> : vector<32x256xf32>
    %19 = tpu.matmul %18, %17, %cst_13 {dimension_numbers = #tpu.dot_dimension_numbers<[1], [0], [0], [1], [0, 0, 1, 1], [], []>} : vector<32x64xf32>, vector<64x256xf32>, vector<32x256xf32> -> vector<32x256xf32>
    %c0_14 = arith.constant 0 : index
    %c0_15 = arith.constant 0 : index
    %20 = vector.load %arg7[%c0_14, %c0_15] : memref<32x1xf32, #tpu.memory_space<vmem>>, vector<32x1xf32>
    %21 = vector.broadcast %20 : vector<32x1xf32> to vector<32x256xf32>
    %22 = arith.addf %19, %21 : vector<32x256xf32>
    %cst_16 = arith.constant 0.000000e+00 : f32
    %23 = vector.broadcast %cst_16 : f32 to vector<32x256xf32>
    %24 = arith.maximumf %22, %23 : vector<32x256xf32>
    %25 = tpu.transpose %24, [1, 0] : vector<32x256xf32> -> vector<256x32xf32>
    %c0_17 = arith.constant 0 : index
    %c0_18 = arith.constant 0 : index
    %26 = vector.load %arg8[%c0_17, %c0_18] : memref<32x15xf32, #tpu.memory_space<vmem>>, vector<32x15xf32>
    %cst_19 = arith.constant dense<0.000000e+00> : vector<256x15xf32>
    %27 = tpu.matmul %25, %26, %cst_19 {dimension_numbers = #tpu.dot_dimension_numbers<[1], [0], [0], [1], [0, 0, 1, 1], [], []>} : vector<256x32xf32>, vector<32x15xf32>, vector<256x15xf32> -> vector<256x15xf32>
    %c0_20 = arith.constant 0 : index
    %c0_21 = arith.constant 0 : index
    %28 = vector.load %arg9[%c0_20, %c0_21] : memref<1x15xf32, #tpu.memory_space<vmem>>, vector<1x15xf32>
    %29 = vector.broadcast %28 : vector<1x15xf32> to vector<256x15xf32>
    %30 = arith.addf %27, %29 : vector<256x15xf32>
    %31 = arith.negf %30 : vector<256x15xf32>
    %32 = math.exp %31 : vector<256x15xf32>
    %cst_22 = arith.constant 1.000000e+00 : f32
    %33 = vector.broadcast %cst_22 : f32 to vector<256x15xf32>
    %34 = arith.addf %33, %32 : vector<256x15xf32>
    %35 = arith.divf %33, %34 : vector<256x15xf32>
    %36 = arith.index_cast %1 : i32 to index
    %c0_23 = arith.constant 0 : index
    %37 = vector.load %arg10[%36, %c0_23] : memref<512x15xf32, #tpu.memory_space<vmem>>, vector<256x15xf32>
    tpu.vector_store %arg10[%36, %c0_23], %35 {strides = array<i32>} : memref<512x15xf32, #tpu.memory_space<vmem>>, vector<256x15xf32>,
    %c1_i32 = arith.constant 1 : i32
    %c256_i32_24 = arith.constant 256 : i32
    %38 = arith.muli %c1_i32, %c256_i32_24 : i32
    %39 = tpu.assume_multiple %38, 256 : i32
    %40 = arith.index_cast %39 : i32 to index
    %c0_25 = arith.constant 0 : index
    %41 = vector.load %arg1[%40, %c0_25] : memref<512x15xf32, #tpu.memory_space<vmem>>, vector<256x15xf32>
    %c0_26 = arith.constant 0 : index
    %c0_27 = arith.constant 0 : index
    %42 = vector.load %arg2[%c0_26, %c0_27] : memref<64x15xf32, #tpu.memory_space<vmem>>, vector<64x15xf32>
    %cst_28 = arith.constant dense<0.000000e+00> : vector<64x256xf32>
    %43 = tpu.matmul %42, %41, %cst_28 {dimension_numbers = #tpu.dot_dimension_numbers<[1], [1], [0], [0], [0, 0, 1, 0], [], []>} : vector<64x15xf32>, vector<256x15xf32>, vector<64x256xf32> -> vector<64x256xf32>
    %c0_29 = arith.constant 0 : index
    %c0_30 = arith.constant 0 : index
    %44 = vector.load %arg3[%c0_29, %c0_30] : memref<64x1xf32, #tpu.memory_space<vmem>>, vector<64x1xf32>
    %45 = vector.broadcast %44 : vector<64x1xf32> to vector<64x256xf32>
    %46 = arith.addf %43, %45 : vector<64x256xf32>
    %cst_31 = arith.constant 0.000000e+00 : f32
    %47 = vector.broadcast %cst_31 : f32 to vector<64x256xf32>
    %48 = arith.maximumf %46, %47 : vector<64x256xf32>
    %c0_32 = arith.constant 0 : index
    %c0_33 = arith.constant 0 : index
    %49 = vector.load %arg4[%c0_32, %c0_33] : memref<64x64xf32, #tpu.memory_space<vmem>>, vector<64x64xf32>
    %cst_34 = arith.constant dense<0.000000e+00> : vector<64x256xf32>
    %50 = tpu.matmul %49, %48, %cst_34 {dimension_numbers = #tpu.dot_dimension_numbers<[1], [0], [0], [1], [0, 0, 1, 1], [], []>} : vector<64x64xf32>, vector<64x256xf32>, vector<64x256xf32> -> vector<64x256xf32>
    %c0_35 = arith.constant 0 : index
    %c0_36 = arith.constant 0 : index
    %51 = vector.load %arg5[%c0_35, %c0_36] : memref<64x1xf32, #tpu.memory_space<vmem>>, vector<64x1xf32>
    %52 = vector.broadcast %51 : vector<64x1xf32> to vector<64x256xf32>
    %53 = arith.addf %50, %52 : vector<64x256xf32>
    %cst_37 = arith.constant 0.000000e+00 : f32
    %54 = vector.broadcast %cst_37 : f32 to vector<64x256xf32>
    %55 = arith.maximumf %53, %54 : vector<64x256xf32>
    %c0_38 = arith.constant 0 : index
    %c0_39 = arith.constant 0 : index
    %56 = vector.load %arg6[%c0_38, %c0_39] : memref<32x64xf32, #tpu.memory_space<vmem>>, vector<32x64xf32>
    %cst_40 = arith.constant dense<0.000000e+00> : vector<32x256xf32>
    %57 = tpu.matmul %56, %55, %cst_40 {dimension_numbers = #tpu.dot_dimension_numbers<[1], [0], [0], [1], [0, 0, 1, 1], [], []>} : vector<32x64xf32>, vector<64x256xf32>, vector<32x256xf32> -> vector<32x256xf32>
    %c0_41 = arith.constant 0 : index
    %c0_42 = arith.constant 0 : index
    %58 = vector.load %arg7[%c0_41, %c0_42] : memref<32x1xf32, #tpu.memory_space<vmem>>, vector<32x1xf32>
    %59 = vector.broadcast %58 : vector<32x1xf32> to vector<32x256xf32>
    %60 = arith.addf %57, %59 : vector<32x256xf32>
    %cst_43 = arith.constant 0.000000e+00 : f32
    %61 = vector.broadcast %cst_43 : f32 to vector<32x256xf32>
    %62 = arith.maximumf %60, %61 : vector<32x256xf32>
    %63 = tpu.transpose %62, [1, 0] : vector<32x256xf32> -> vector<256x32xf32>
    %c0_44 = arith.constant 0 : index
    %c0_45 = arith.constant 0 : index
    %64 = vector.load %arg8[%c0_44, %c0_45] : memref<32x15xf32, #tpu.memory_space<vmem>>, vector<32x15xf32>
    %cst_46 = arith.constant dense<0.000000e+00> : vector<256x15xf32>
    %65 = tpu.matmul %63, %64, %cst_46 {dimension_numbers = #tpu.dot_dimension_numbers<[1], [0], [0], [1], [0, 0, 1, 1], [], []>} : vector<256x32xf32>, vector<32x15xf32>, vector<256x15xf32> -> vector<256x15xf32>
    %c0_47 = arith.constant 0 : index
    %c0_48 = arith.constant 0 : index
    %66 = vector.load %arg9[%c0_47, %c0_48] : memref<1x15xf32, #tpu.memory_space<vmem>>, vector<1x15xf32>
    %67 = vector.broadcast %66 : vector<1x15xf32> to vector<256x15xf32>
    %68 = arith.addf %65, %67 : vector<256x15xf32>
    %69 = arith.negf %68 : vector<256x15xf32>
    %70 = math.exp %69 : vector<256x15xf32>
    %cst_49 = arith.constant 1.000000e+00 : f32
    %71 = vector.broadcast %cst_49 : f32 to vector<256x15xf32>
    %72 = arith.addf %71, %70 : vector<256x15xf32>
    %73 = arith.divf %71, %72 : vector<256x15xf32>
    %74 = arith.index_cast %39 : i32 to index
    %c0_50 = arith.constant 0 : index
    %75 = vector.load %arg10[%74, %c0_50] : memref<512x15xf32, #tpu.memory_space<vmem>>, vector<256x15xf32>
    tpu.vector_store %arg10[%74, %c0_50], %73 {strides = array<i32>} : memref<512x15xf32, #tpu.memory_space<vmem>>, vector<256x15xf32>,
    %c2_i32 = arith.constant 2 : i32
    return
  }
  func.func @transform_0(%arg0: i32) -> (i32, i32) {
    %c0_i32 = arith.constant 0 : i32
    %c0_i32_0 = arith.constant 0 : i32
    return %arg0, %c0_i32 : i32, i32
  }
  func.func @transform_1(%arg0: i32) -> (i32, i32) {
    %c0_i32 = arith.constant 0 : i32
    %c0_i32_0 = arith.constant 0 : i32
    %c0_i32_1 = arith.constant 0 : i32
    return %c0_i32, %c0_i32_0 : i32, i32
  }
  func.func @transform_2(%arg0: i32) -> (i32, i32) {
    %c0_i32 = arith.constant 0 : i32
    %c0_i32_0 = arith.constant 0 : i32
    %c0_i32_1 = arith.constant 0 : i32
    return %c0_i32, %c0_i32_0 : i32, i32
  }
  func.func @transform_3(%arg0: i32) -> (i32, i32) {
    %c0_i32 = arith.constant 0 : i32
    %c0_i32_0 = arith.constant 0 : i32
    %c0_i32_1 = arith.constant 0 : i32
    return %c0_i32, %c0_i32_0 : i32, i32
  }
  func.func @transform_4(%arg0: i32) -> (i32, i32) {
    %c0_i32 = arith.constant 0 : i32
    %c0_i32_0 = arith.constant 0 : i32
    %c0_i32_1 = arith.constant 0 : i32
    return %c0_i32, %c0_i32_0 : i32, i32
  }
  func.func @transform_5(%arg0: i32) -> (i32, i32) {
    %c0_i32 = arith.constant 0 : i32
    %c0_i32_0 = arith.constant 0 : i32
    %c0_i32_1 = arith.constant 0 : i32
    return %c0_i32, %c0_i32_0 : i32, i32
  }
  func.func @transform_6(%arg0: i32) -> (i32, i32) {
    %c0_i32 = arith.constant 0 : i32
    %c0_i32_0 = arith.constant 0 : i32
    %c0_i32_1 = arith.constant 0 : i32
    return %c0_i32, %c0_i32_0 : i32, i32
  }
  func.func @transform_7(%arg0: i32) -> (i32, i32) {
    %c0_i32 = arith.constant 0 : i32
    %c0_i32_0 = arith.constant 0 : i32
    %c0_i32_1 = arith.constant 0 : i32
    return %c0_i32, %c0_i32_0 : i32, i32
  }
  func.func @transform_8(%arg0: i32) -> (i32, i32) {
    %c0_i32 = arith.constant 0 : i32
    %c0_i32_0 = arith.constant 0 : i32
    %c0_i32_1 = arith.constant 0 : i32
    return %c0_i32, %c0_i32_0 : i32, i32
  }
  func.func @transform_9(%arg0: i32) -> (i32, i32) {
    %c0_i32 = arith.constant 0 : i32
    %c0_i32_0 = arith.constant 0 : i32
    return %arg0, %c0_i32 : i32, i32
  }
}

</mosaic_0001>

<llo_original>
// kernel: tpu_custom_call.1
$region0: #{tpu_custom_call.1}
  #allocation0 [shape = 'u32[]', space=smem, size = 0x4, offset = 0x4, fixed_abs, tag = 'smem constant byte address 0x4 - core index']
  #allocation1 [shape = 'u32[72,128]{1,0:T(1,128)}', space=vmem, size = 0x9000, scoped, tag = 'internal scratch']
  %s0 = inlined_call_operand.vmem [shape: f32[1024,15], index: 0, kind: input, shape index: {}]
  %s1 = inlined_call_operand.vmem [shape: f32[64,15], index: 1, kind: input, shape index: {}]
  %s2 = inlined_call_operand.vmem [shape: f32[64,1], index: 2, kind: input, shape index: {}]
  %s3 = inlined_call_operand.vmem [shape: f32[64,64], index: 3, kind: input, shape index: {}]
  %s4 = inlined_call_operand.vmem [shape: f32[64,1], index: 4, kind: input, shape index: {}]
  %s5 = inlined_call_operand.vmem [shape: f32[32,64], index: 5, kind: input, shape index: {}]
  %s6 = inlined_call_operand.vmem [shape: f32[32,1], index: 6, kind: input, shape index: {}]
  %s7 = inlined_call_operand.vmem [shape: f32[32,15], index: 7, kind: input, shape index: {}]
  %s8 = inlined_call_operand.vmem [shape: f32[1,15], index: 8, kind: input, shape index: {}]
  %s9 = inlined_call_operand.vmem [shape: f32[1024,15], index: 9, kind: output, shape index: {}]
  %s10 = sld [smem:[#allocation0]]
  $region69: #{tpu_custom_call.1} parent=0
    _
  %s12 = ssub.s32 1, %s10
  %s13 = scalar_select 0, %s12, %s10
  loop: start=0, step=1, limit=4
  $region2: #{tpu_custom_call.1} parent=0 // loop_pre_header
    _
  $region3: #{tpu_custom_call.1} parent=0 // loop_header
    %s15 = sphi 0, %s19
    %p16 = scmp.ge.s32.totalorder %s15, 4
    %s25 = sphi 0, %s27
    %s28 = sphi 0, %s25
    %s29 = sphi 0, %s28
    %s45 = sphi 0, %s29
    %s49 = sphi 0, %s49
    %s51 = sphi 0, %s49
    %s52 = sphi 0, %s51
    %s66 = sphi 0, %s52
    %s70 = sphi 0, %s70
    %s72 = sphi 0, %s70
    %s73 = sphi 0, %s72
    %s87 = sphi 0, %s73
    %s91 = sphi 0, %s91
    %s93 = sphi 0, %s91
    %s94 = sphi 0, %s93
    %s108 = sphi 0, %s94
    %s112 = sphi 0, %s112
    %s114 = sphi 0, %s112
    %s115 = sphi 0, %s114
    %s129 = sphi 0, %s115
    %s133 = sphi 0, %s133
    %s135 = sphi 0, %s133
    %s136 = sphi 0, %s135
    %s150 = sphi 0, %s136
    %s154 = sphi 0, %s154
    %s156 = sphi 0, %s154
    %s157 = sphi 0, %s156
    %s171 = sphi 0, %s157
    %s175 = sphi 0, %s175
    %s177 = sphi 0, %s175
    %s178 = sphi 0, %s177
    %s192 = sphi 0, %s178
    %s196 = sphi 0, %s196
    %s198 = sphi 0, %s196
    %s199 = sphi 0, %s198
    %s213 = sphi 0, %s199
    %s219 = sphi 0, %s221
    %s222 = sphi 0, %s219
    %s223 = sphi 0, %s222
    %s239 = sphi 0, %s223
  $region4: #{tpu_custom_call.1} parent=0 // loop_header_branch
    %18 = sbr.rel (%p16) target = $region8
  $region5: #{tpu_custom_call.1} parent=0 // loop_body
    %s20 = ssub.s32 %s15, 1
    %s21 = ssub.s32 %s15, 2
    %s22 = sadd.s32 %s15, 1
    %s23 = ssub.s32 %s15, %s22
    %p24 = scmp.eq.s32.totalorder %s23, 0
    %s26 = sadd.s32 %s25, 1
    %s27 = scalar_select %p24, %s25, %s26
    %p30 = pneg %p24
    %p31 = scmp.eq.s32.totalorder %s15, 1
    %p32 = por %p30, %p31
    %p33 = scmp.ne.s32.totalorder %s25, %s28
    %p34 = scmp.eq.s32.totalorder %s15, 0
    %p35 = por %p33, %p34
    %p36 = scmp.ne.s32.totalorder %s25, %s28
    %p37 = scmp.eq.s32.totalorder %s20, 1
    %p38 = por %p36, %p37
    %p39 = scmp.ne.s32.totalorder %s28, %s29
    %p40 = scmp.eq.s32.totalorder %s20, 0
    %p41 = por %p39, %p40
    %p42 = scmp.ne.s32.totalorder %s28, %s29
    %p43 = scmp.eq.s32.totalorder %s21, 1
    %p44 = por %p42, %p43
    %p46 = scmp.ne.s32.totalorder %s29, %s45
    %p47 = scmp.eq.s32.totalorder %s21, 0
    %p48 = por %p46, %p47
    %s50 = sadd.s32 %s49, 1
    %p53 = scmp.eq.s32.totalorder %s15, 1
    %p54 = scmp.ne.s32.totalorder %s49, %s51
    %p55 = scmp.eq.s32.totalorder %s15, 0
    %p56 = por %p54, %p55
    %p57 = scmp.ne.s32.totalorder %s49, %s51
    %p58 = scmp.eq.s32.totalorder %s20, 1
    %p59 = por %p57, %p58
    %p60 = scmp.ne.s32.totalorder %s51, %s52
    %p61 = scmp.eq.s32.totalorder %s20, 0
    %p62 = por %p60, %p61
    %p63 = scmp.ne.s32.totalorder %s51, %s52
    %p64 = scmp.eq.s32.totalorder %s21, 1
    %p65 = por %p63, %p64
    %p67 = scmp.ne.s32.totalorder %s52, %s66
    %p68 = scmp.eq.s32.totalorder %s21, 0
    %p69 = por %p67, %p68
    %s71 = sadd.s32 %s70, 1
    %p74 = scmp.eq.s32.totalorder %s15, 1
    %p75 = scmp.ne.s32.totalorder %s70, %s72
    %p76 = scmp.eq.s32.totalorder %s15, 0
    %p77 = por %p75, %p76
    %p78 = scmp.ne.s32.totalorder %s70, %s72
    %p79 = scmp.eq.s32.totalorder %s20, 1
    %p80 = por %p78, %p79
    %p81 = scmp.ne.s32.totalorder %s72, %s73
    %p82 = scmp.eq.s32.totalorder %s20, 0
    %p83 = por %p81, %p82
    %p84 = scmp.ne.s32.totalorder %s72, %s73
    %p85 = scmp.eq.s32.totalorder %s21, 1
    %p86 = por %p84, %p85
    %p88 = scmp.ne.s32.totalorder %s73, %s87
    %p89 = scmp.eq.s32.totalorder %s21, 0
    %p90 = por %p88, %p89
    %s92 = sadd.s32 %s91, 1
    %p95 = scmp.eq.s32.totalorder %s15, 1
    %p96 = scmp.ne.s32.totalorder %s91, %s93
    %p97 = scmp.eq.s32.totalorder %s15, 0
    %p98 = por %p96, %p97
    %p99 = scmp.ne.s32.totalorder %s91, %s93
    %p100 = scmp.eq.s32.totalorder %s20, 1
    %p101 = por %p99, %p100
    %p102 = scmp.ne.s32.totalorder %s93, %s94
    %p103 = scmp.eq.s32.totalorder %s20, 0
    %p104 = por %p102, %p103
    %p105 = scmp.ne.s32.totalorder %s93, %s94
    %p106 = scmp.eq.s32.totalorder %s21, 1
    %p107 = por %p105, %p106
    %p109 = scmp.ne.s32.totalorder %s94, %s108
    %p110 = scmp.eq.s32.totalorder %s21, 0
    %p111 = por %p109, %p110
    %s113 = sadd.s32 %s112, 1
    %p116 = scmp.eq.s32.totalorder %s15, 1
    %p117 = scmp.ne.s32.totalorder %s112, %s114
    %p118 = scmp.eq.s32.totalorder %s15, 0
    %p119 = por %p117, %p118
    %p120 = scmp.ne.s32.totalorder %s112, %s114
    %p121 = scmp.eq.s32.totalorder %s20, 1
    %p122 = por %p120, %p121
    %p123 = scmp.ne.s32.totalorder %s114, %s115
    %p124 = scmp.eq.s32.totalorder %s20, 0
    %p125 = por %p123, %p124
    %p126 = scmp.ne.s32.totalorder %s114, %s115
    %p127 = scmp.eq.s32.totalorder %s21, 1
    %p128 = por %p126, %p127
    %p130 = scmp.ne.s32.totalorder %s115, %s129
    %p131 = scmp.eq.s32.totalorder %s21, 0
    %p132 = por %p130, %p131
    %s134 = sadd.s32 %s133, 1
    %p137 = scmp.eq.s32.totalorder %s15, 1
    %p138 = scmp.ne.s32.totalorder %s133, %s135
    %p139 = scmp.eq.s32.totalorder %s15, 0
    %p140 = por %p138, %p139
    %p141 = scmp.ne.s32.totalorder %s133, %s135
    %p142 = scmp.eq.s32.totalorder %s20, 1
    %p143 = por %p141, %p142
    %p144 = scmp.ne.s32.totalorder %s135, %s136
    %p145 = scmp.eq.s32.totalorder %s20, 0
    %p146 = por %p144, %p145
    %p147 = scmp.ne.s32.totalorder %s135, %s136
    %p148 = scmp.eq.s32.totalorder %s21, 1
    %p149 = por %p147, %p148
    %p151 = scmp.ne.s32.totalorder %s136, %s150
    %p152 = scmp.eq.s32.totalorder %s21, 0
    %p153 = por %p151, %p152
    %s155 = sadd.s32 %s154, 1
    %p158 = scmp.eq.s32.totalorder %s15, 1
    %p159 = scmp.ne.s32.totalorder %s154, %s156
    %p160 = scmp.eq.s32.totalorder %s15, 0
    %p161 = por %p159, %p160
    %p162 = scmp.ne.s32.totalorder %s154, %s156
    %p163 = scmp.eq.s32.totalorder %s20, 1
    %p164 = por %p162, %p163
    %p165 = scmp.ne.s32.totalorder %s156, %s157
    %p166 = scmp.eq.s32.totalorder %s20, 0
    %p167 = por %p165, %p166
    %p168 = scmp.ne.s32.totalorder %s156, %s157
    %p169 = scmp.eq.s32.totalorder %s21, 1
    %p170 = por %p168, %p169
    %p172 = scmp.ne.s32.totalorder %s157, %s171
    %p173 = scmp.eq.s32.totalorder %s21, 0
    %p174 = por %p172, %p173
    %s176 = sadd.s32 %s175, 1
    %p179 = scmp.eq.s32.totalorder %s15, 1
    %p180 = scmp.ne.s32.totalorder %s175, %s177
    %p181 = scmp.eq.s32.totalorder %s15, 0
    %p182 = por %p180, %p181
    %p183 = scmp.ne.s32.totalorder %s175, %s177
    %p184 = scmp.eq.s32.totalorder %s20, 1
    %p185 = por %p183, %p184
    %p186 = scmp.ne.s32.totalorder %s177, %s178
    %p187 = scmp.eq.s32.totalorder %s20, 0
    %p188 = por %p186, %p187
    %p189 = scmp.ne.s32.totalorder %s177, %s178
    %p190 = scmp.eq.s32.totalorder %s21, 1
    %p191 = por %p189, %p190
    %p193 = scmp.ne.s32.totalorder %s178, %s192
    %p194 = scmp.eq.s32.totalorder %s21, 0
    %p195 = por %p193, %p194
    %s197 = sadd.s32 %s196, 1
    %p200 = scmp.eq.s32.totalorder %s15, 1
    %p201 = scmp.ne.s32.totalorder %s196, %s198
    %p202 = scmp.eq.s32.totalorder %s15, 0
    %p203 = por %p201, %p202
    %p204 = scmp.ne.s32.totalorder %s196, %s198
    %p205 = scmp.eq.s32.totalorder %s20, 1
    %p206 = por %p204, %p205
    %p207 = scmp.ne.s32.totalorder %s198, %s199
    %p208 = scmp.eq.s32.totalorder %s20, 0
    %p209 = por %p207, %p208
    %p210 = scmp.ne.s32.totalorder %s198, %s199
    %p211 = scmp.eq.s32.totalorder %s21, 1
    %p212 = por %p210, %p211
    %p214 = scmp.ne.s32.totalorder %s199, %s213
    %p215 = scmp.eq.s32.totalorder %s21, 0
    %p216 = por %p214, %p215
    %s217 = ssub.s32 %s15, %s22
    %p218 = scmp.eq.s32.totalorder %s217, 0
    %s220 = sadd.s32 %s219, 1
    %s221 = scalar_select %p218, %s219, %s220
    %p224 = pneg %p218
    %p225 = scmp.eq.s32.totalorder %s15, 1
    %p226 = por %p224, %p225
    %p227 = scmp.ne.s32.totalorder %s219, %s222
    %p228 = scmp.eq.s32.totalorder %s15, 0
    %p229 = por %p227, %p228
    %p230 = scmp.ne.s32.totalorder %s219, %s222
    %p231 = scmp.eq.s32.totalorder %s20, 1
    %p232 = por %p230, %p231
    %p233 = scmp.ne.s32.totalorder %s222, %s223
    %p234 = scmp.eq.s32.totalorder %s20, 0
    %p235 = por %p233, %p234
    %p236 = scmp.ne.s32.totalorder %s222, %s223
    %p237 = scmp.eq.s32.totalorder %s21, 1
    %p238 = por %p236, %p237
    %p240 = scmp.ne.s32.totalorder %s223, %s239
    %p241 = scmp.eq.s32.totalorder %s21, 0
    %p242 = por %p240, %p241
    %p243 = scmp.le.s32.totalorder 1, %s15
    %p244 = scmp.lt.s32.totalorder %s15, 3
    %p245 = pnand %p243, %p244
    %p246 = pneg %p245
    // Predicated region
    $region9: #{tpu_custom_call.1} parent=5 // pred_check
      _
    $region10: #{tpu_custom_call.1} parent=5 // pred_check_branch
      %248 = sbr.rel (%p245) target = $region12
    $region11: #{tpu_custom_call.1} parent=5 // pred_region
      %s249 = ssub.s32 %s15, 1
      // Predicated region
      $region13: #{tpu_custom_call.1} parent=11 // pred_check
        %p250 = pneg %p62
      $region14: #{tpu_custom_call.1} parent=11 // pred_check_branch
        %252 = sbr.rel (%p250) target = $region16
      $region15: #{tpu_custom_call.1} parent=11 // pred_region
        _
      $region16: #{tpu_custom_call.1} parent=11 // pred_fallthru
        _
      // Predicated region
      $region17: #{tpu_custom_call.1} parent=11 // pred_check
        %p253 = pneg %p83
      $region18: #{tpu_custom_call.1} parent=11 // pred_check_branch
        %255 = sbr.rel (%p253) target = $region20
      $region19: #{tpu_custom_call.1} parent=11 // pred_region
        _
      $region20: #{tpu_custom_call.1} parent=11 // pred_fallthru
        _
      // Predicated region
      $region21: #{tpu_custom_call.1} parent=11 // pred_check
        %p256 = pneg %p104
      $region22: #{tpu_custom_call.1} parent=11 // pred_check_branch
        %258 = sbr.rel (%p256) target = $region24
      $region23: #{tpu_custom_call.1} parent=11 // pred_region
        _
      $region24: #{tpu_custom_call.1} parent=11 // pred_fallthru
        _
      // Predicated region
      $region25: #{tpu_custom_call.1} parent=11 // pred_check
        %p259 = pneg %p125
      $region26: #{tpu_custom_call.1} parent=11 // pred_check_branch
        %261 = sbr.rel (%p259) target = $region28
      $region27: #{tpu_custom_call.1} parent=11 // pred_region
        _
      $region28: #{tpu_custom_call.1} parent=11 // pred_fallthru
        _
      // Predicated region
      $region29: #{tpu_custom_call.1} parent=11 // pred_check
        %p262 = pneg %p146
      $region30: #{tpu_custom_call.1} parent=11 // pred_check_branch
        %264 = sbr.rel (%p262) target = $region32
      $region31: #{tpu_custom_call.1} parent=11 // pred_region
        _
      $region32: #{tpu_custom_call.1} parent=11 // pred_fallthru
        _
      // Predicated region
      $region33: #{tpu_custom_call.1} parent=11 // pred_check
        %p265 = pneg %p167
      $region34: #{tpu_custom_call.1} parent=11 // pred_check_branch
        %267 = sbr.rel (%p265) target = $region36
      $region35: #{tpu_custom_call.1} parent=11 // pred_region
        _
      $region36: #{tpu_custom_call.1} parent=11 // pred_fallthru
        _
      // Predicated region
      $region37: #{tpu_custom_call.1} parent=11 // pred_check
        %p268 = pneg %p188
      $region38: #{tpu_custom_call.1} parent=11 // pred_check_branch
        %270 = sbr.rel (%p268) target = $region40
      $region39: #{tpu_custom_call.1} parent=11 // pred_region
        _
      $region40: #{tpu_custom_call.1} parent=11 // pred_fallthru
        _
      // Predicated region
      $region41: #{tpu_custom_call.1} parent=11 // pred_check
        %p271 = pneg %p209
      $region42: #{tpu_custom_call.1} parent=11 // pred_check_branch
        %273 = sbr.rel (%p271) target = $region44
      $region43: #{tpu_custom_call.1} parent=11 // pred_region
        _
      $region44: #{tpu_custom_call.1} parent=11 // pred_fallthru
        _
    $region12: #{tpu_custom_call.1} parent=5 // pred_fallthru
      _
    %p274 = scmp.lt.s32.totalorder %s15, 2
    // Predicated region
    $region45: #{tpu_custom_call.1} parent=5 // pred_check
      %p275 = pneg %p274
    $region46: #{tpu_custom_call.1} parent=5 // pred_check_branch
      %277 = sbr.rel (%p275) target = $region48
    $region47: #{tpu_custom_call.1} parent=5 // pred_region
      // Predicated region
      $region49: #{tpu_custom_call.1} parent=47 // pred_check
        %p278 = pneg %p35
      $region50: #{tpu_custom_call.1} parent=47 // pred_check_branch
        %280 = sbr.rel (%p278) target = $region52
      $region51: #{tpu_custom_call.1} parent=47 // pred_region
        %s281 = smul.u32 64, %s15
        %p282 = scmp.lt.s32.totalorder %s281, 127
        %s283 = scalar_select %p282, %s281, 127
        %s284 = smul.addr %s283, 8
        %s285 = scalar_lea.vmem %s0, %s284
        %s286 = smul.u32 64, %s15
      $region52: #{tpu_custom_call.1} parent=47 // pred_fallthru
        _
    $region48: #{tpu_custom_call.1} parent=5 // pred_fallthru
      _
    %p287 = scmp.le.s32.totalorder 1, %s15
    %p288 = scmp.lt.s32.totalorder %s15, 3
    %p289 = pnand %p287, %p288
    %p290 = pneg %p289
    // Predicated region
    $region53: #{tpu_custom_call.1} parent=5 // pred_check
      _
    $region54: #{tpu_custom_call.1} parent=5 // pred_check_branch
      %292 = sbr.rel (%p289) target = $region56
    $region55: #{tpu_custom_call.1} parent=5 // pred_region
      %s293 = ssub.s32 %s15, 1
      %s294 = smul.u32 64, %s20
      %p295 = scmp.lt.s32.totalorder %s294, 127
      %s296 = scalar_select %p295, %s294, 127
      %s297 = smul.addr %s296, 8
      %s298 = scalar_lea.vmem %s0, %s297
      %p299 = pneg %p41
      %p300 = pneg %p38
      %p301 = pneg %p62
      %p302 = pneg %p59
      %p303 = pneg %p83
      %p304 = pneg %p80
      %p305 = pneg %p104
      %p306 = pneg %p101
      %p307 = pneg %p125
      %p308 = pneg %p122
      %p309 = pneg %p146
      %p310 = pneg %p143
      %p311 = pneg %p167
      %p312 = pneg %p164
      %p313 = pneg %p188
      %p314 = pneg %p185
      %p315 = pneg %p209
      %p316 = pneg %p206
      %p317 = pneg %p235
      %p318 = pneg %p232
      %s319 = smul.u32 64, %s20
      %p320 = scmp.lt.s32.totalorder %s319, 127
      %s321 = scalar_select %p320, %s319, 127
      %s322 = smul.addr %s321, 8
      %s323 = scalar_lea.vmem %s9, %s322
      %s324 = smul.u32 64, %s20
      %p325 = scmp.lt.s32.totalorder %s324, 127
      %s326 = scalar_select %p325, %s324, 127
      %s327 = smul.addr %s326, 8
      %s328 = scalar_lea.vmem %s0, %s327
      %s329 = smul.u32 64, %s20
      %s330 = smul.u32 64, %s20
      %p331 = scmp.lt.s32.totalorder %s330, 127
      %s332 = scalar_select %p331, %s330, 127
      %s333 = smul.addr %s332, 8
      %s334 = scalar_lea.vmem %s9, %s333
      %s335 = smul.u32 64, %s20
      %v336 = vld [vmem:[%s328] sm:$0xff]
      %v337 = vld [vmem:[%s328 + $0x8] sm:$0xff]
      %v338 = vld [vmem:[%s328 + $0x10] sm:$0xff]
      %v339 = vld [vmem:[%s328 + $0x18] sm:$0xff]
      %v340 = vld [vmem:[%s328 + $0x20] sm:$0xff]
      %v341 = vld [vmem:[%s328 + $0x28] sm:$0xff]
      %v342 = vld [vmem:[%s328 + $0x30] sm:$0xff]
      %v343 = vld [vmem:[%s328 + $0x38] sm:$0xff]
      %v344 = vld [vmem:[%s328 + $0x40] sm:$0xff]
      %v345 = vld [vmem:[%s328 + $0x48] sm:$0xff]
      %v346 = vld [vmem:[%s328 + $0x50] sm:$0xff]
      %v347 = vld [vmem:[%s328 + $0x58] sm:$0xff]
      %v348 = vld [vmem:[%s328 + $0x60] sm:$0xff]
      %v349 = vld [vmem:[%s328 + $0x68] sm:$0xff]
      %v350 = vld [vmem:[%s328 + $0x70] sm:$0xff]
      %v351 = vld [vmem:[%s328 + $0x78] sm:$0xff]
      %v352 = vld [vmem:[%s328 + $0x80] sm:$0xff]
      %v353 = vld [vmem:[%s328 + $0x88] sm:$0xff]
      %v354 = vld [vmem:[%s328 + $0x90] sm:$0xff]
      %v355 = vld [vmem:[%s328 + $0x98] sm:$0xff]
      %v356 = vld [vmem:[%s328 + $0xa0] sm:$0xff]
      %v357 = vld [vmem:[%s328 + $0xa8] sm:$0xff]
      %v358 = vld [vmem:[%s328 + $0xb0] sm:$0xff]
      %v359 = vld [vmem:[%s328 + $0xb8] sm:$0xff]
      %v360 = vld [vmem:[%s328 + $0xc0] sm:$0xff]
      %v361 = vld [vmem:[%s328 + $0xc8] sm:$0xff]
      %v362 = vld [vmem:[%s328 + $0xd0] sm:$0xff]
      %v363 = vld [vmem:[%s328 + $0xd8] sm:$0xff]
      %v364 = vld [vmem:[%s328 + $0xe0] sm:$0xff]
      %v365 = vld [vmem:[%s328 + $0xe8] sm:$0xff]
      %v366 = vld [vmem:[%s328 + $0xf0] sm:$0xff]
      %v367 = vld [vmem:[%s328 + $0xf8] sm:$0xff]
      %v368 = vld [vmem:[%s1] sm:$0xff]
      %v369 = vld [vmem:[%s1 + $0x8] sm:$0xff]
      %v370 = vld [vmem:[%s1 + $0x10] sm:$0xff]
      %v371 = vld [vmem:[%s1 + $0x18] sm:$0xff]
      %v372 = vld [vmem:[%s1 + $0x20] sm:$0xff]
      %v373 = vld [vmem:[%s1 + $0x28] sm:$0xff]
      %v374 = vld [vmem:[%s1 + $0x30] sm:$0xff]
      %v375 = vld [vmem:[%s1 + $0x38] sm:$0xff]
      %v376 = vld [vmem:[%s2] sm:$0xff]
      %v377 = vld [vmem:[%s2 + $0x8] sm:$0xff]
      %v378 = vld [vmem:[%s2 + $0x10] sm:$0xff]
      %v379 = vld [vmem:[%s2 + $0x18] sm:$0xff]
      %v380 = vld [vmem:[%s2 + $0x20] sm:$0xff]
      %v381 = vld [vmem:[%s2 + $0x28] sm:$0xff]
      %v382 = vld [vmem:[%s2 + $0x30] sm:$0xff]
      %v383 = vld [vmem:[%s2 + $0x38] sm:$0xff]
      %385 = vset.pattern.permute.xlu0 0
      %386 = vperm.xlu0 %385, %v376
      %v387 = vpop.permute.xlu0 %386
      %390 = vset.pattern.permute.xlu0 0
      %391 = vperm.xlu0 %390, %v377
      %v392 = vpop.permute.xlu0 %391
      %395 = vset.pattern.permute.xlu0 0
      %396 = vperm.xlu0 %395, %v378
      %v397 = vpop.permute.xlu0 %396
      %400 = vset.pattern.permute.xlu0 0
      %401 = vperm.xlu0 %400, %v379
      %v402 = vpop.permute.xlu0 %401
      %405 = vset.pattern.permute.xlu0 0
      %406 = vperm.xlu0 %405, %v380
      %v407 = vpop.permute.xlu0 %406
      %410 = vset.pattern.permute.xlu0 0
      %411 = vperm.xlu0 %410, %v381
      %v412 = vpop.permute.xlu0 %411
      %415 = vset.pattern.permute.xlu0 0
      %416 = vperm.xlu0 %415, %v382
      %v417 = vpop.permute.xlu0 %416
      %420 = vset.pattern.permute.xlu0 0
      %421 = vperm.xlu0 %420, %v383
      %v422 = vpop.permute.xlu0 %421
      %vm424 = vcmask 121856
      %v426 = vsel %vm424, %v368, 0
      %v429 = vsel %vm424, %v369, 0
      %v432 = vsel %vm424, %v370, 0
      %v435 = vsel %vm424, %v371, 0
      %v438 = vsel %vm424, %v372, 0
      %v441 = vsel %vm424, %v373, 0
      %v444 = vsel %vm424, %v374, 0
      %v447 = vsel %vm424, %v375, 0
      %v450 = vsel %vm424, %v336, 0
      %v453 = vsel %vm424, %v337, 0
      %v456 = vsel %vm424, %v338, 0
      %v459 = vsel %vm424, %v339, 0
      %v462 = vsel %vm424, %v340, 0
      %v465 = vsel %vm424, %v341, 0
      %v468 = vsel %vm424, %v342, 0
      %v471 = vsel %vm424, %v343, 0
      %v474 = vsel %vm424, %v344, 0
      %v477 = vsel %vm424, %v345, 0
      %v480 = vsel %vm424, %v346, 0
      %v483 = vsel %vm424, %v347, 0
      %v486 = vsel %vm424, %v348, 0
      %v489 = vsel %vm424, %v349, 0
      %v492 = vsel %vm424, %v350, 0
      %v495 = vsel %vm424, %v351, 0
      %v498 = vsel %vm424, %v352, 0
      %v501 = vsel %vm424, %v353, 0
      %v504 = vsel %vm424, %v354, 0
      %v507 = vsel %vm424, %v355, 0
      %v510 = vsel %vm424, %v356, 0
      %v513 = vsel %vm424, %v357, 0
      %v516 = vsel %vm424, %v358, 0
      %v519 = vsel %vm424, %v359, 0
      %v522 = vsel %vm424, %v360, 0
      %v525 = vsel %vm424, %v361, 0
      %v528 = vsel %vm424, %v362, 0
      %v531 = vsel %vm424, %v363, 0
      %v534 = vsel %vm424, %v364, 0
      %v537 = vsel %vm424, %v365, 0
      %v540 = vsel %vm424, %v366, 0
      %v543 = vsel %vm424, %v367, 0
      %545 = vmatpush.xpose.msra.mxu0 %v495
      %546 = vmatpush.xpose.msra.mxu0 %v492
      %547 = vmatpush.xpose.msra.mxu0 %v489
      %548 = vmatpush.xpose.msra.mxu0 %v486
      %549 = vmatpush.xpose.msra.mxu0 %v483
      %550 = vmatpush.xpose.msra.mxu0 %v480
      %551 = vmatpush.xpose.msra.mxu0 %v477
      %552 = vmatpush.xpose.msra.mxu0 %v474
      %553 = vmatpush.xpose.msra.mxu0 %v471
      %554 = vmatpush.xpose.msra.mxu0 %v468
      %555 = vmatpush.xpose.msra.mxu0 %v465
      %556 = vmatpush.xpose.msra.mxu0 %v462
      %557 = vmatpush.xpose.msra.mxu0 %v459
      %558 = vmatpush.xpose.msra.mxu0 %v456
      %559 = vmatpush.xpose.msra.mxu0 %v453
      %560 = vmatpush.xpose.msra.mxu0 %v450
      %561 = vmatmul.f32.gmra.mxu0 %v426
      %v562 = vpop.f32.mrf.mxu0
      %v563 = vadd.f32 %v387, %v562
      %564 = vmatmul.f32.gmra.mxu0 %v429
      %v565 = vpop.f32.mrf.mxu0
      %v566 = vadd.f32 %v392, %v565
      %567 = vmatmul.f32.gmra.mxu0 %v432
      %v568 = vpop.f32.mrf.mxu0
      %v569 = vadd.f32 %v397, %v568
      %570 = vmatmul.f32.gmra.mxu0 %v435
      %v571 = vpop.f32.mrf.mxu0
      %v572 = vadd.f32 %v402, %v571
      %573 = vmatmul.f32.gmra.mxu0 %v438
      %v574 = vpop.f32.mrf.mxu0
      %v575 = vadd.f32 %v407, %v574
      %576 = vmatmul.f32.gmra.mxu0 %v441
      %v577 = vpop.f32.mrf.mxu0
      %v578 = vadd.f32 %v412, %v577
      %579 = vmatmul.f32.gmra.mxu0 %v444
      %v580 = vpop.f32.mrf.mxu0
      %v581 = vadd.f32 %v417, %v580
      %582 = vmatmul.f32.gmra.mxu0 %v447
      %v583 = vpop.f32.mrf.mxu0
      %v584 = vadd.f32 %v422, %v583
      %585 = vdwg.mxu0
      %586 = vmatpush.xpose.msra.mxu0 %v543
      %587 = vmatpush.xpose.msra.mxu0 %v540
      %588 = vmatpush.xpose.msra.mxu0 %v537
      %589 = vmatpush.xpose.msra.mxu0 %v534
      %590 = vmatpush.xpose.msra.mxu0 %v531
      %591 = vmatpush.xpose.msra.mxu0 %v528
      %592 = vmatpush.xpose.msra.mxu0 %v525
      %593 = vmatpush.xpose.msra.mxu0 %v522
      %594 = vmatpush.xpose.msra.mxu0 %v519
      %595 = vmatpush.xpose.msra.mxu0 %v516
      %596 = vmatpush.xpose.msra.mxu0 %v513
      %597 = vmatpush.xpose.msra.mxu0 %v510
      %598 = vmatpush.xpose.msra.mxu0 %v507
      %599 = vmatpush.xpose.msra.mxu0 %v504
      %600 = vmatpush.xpose.msra.mxu0 %v501
      %601 = vmatpush.xpose.msra.mxu0 %v498
      %602 = vmatmul.f32.gmra.mxu0 %v426
      %v603 = vpop.f32.mrf.mxu0
      %v604 = vadd.f32 %v387, %v603
      %605 = vmatmul.f32.gmra.mxu0 %v429
      %v606 = vpop.f32.mrf.mxu0
      %v607 = vadd.f32 %v392, %v606
      %608 = vmatmul.f32.gmra.mxu0 %v432
      %v609 = vpop.f32.mrf.mxu0
      %v610 = vadd.f32 %v397, %v609
      %611 = vmatmul.f32.gmra.mxu0 %v435
      %v612 = vpop.f32.mrf.mxu0
      %v613 = vadd.f32 %v402, %v612
      %614 = vmatmul.f32.gmra.mxu0 %v438
      %v615 = vpop.f32.mrf.mxu0
      %v616 = vadd.f32 %v407, %v615
      %617 = vmatmul.f32.gmra.mxu0 %v441
      %v618 = vpop.f32.mrf.mxu0
      %v619 = vadd.f32 %v412, %v618
      %620 = vmatmul.f32.gmra.mxu0 %v444
      %v621 = vpop.f32.mrf.mxu0
      %v622 = vadd.f32 %v417, %v621
      %623 = vmatmul.f32.gmra.mxu0 %v447
      %v624 = vpop.f32.mrf.mxu0
      %v625 = vadd.f32 %v422, %v624
      %626 = vdwg.mxu0
      %v627 = vmax.f32 %v563, 0.0
      %v628 = vmax.f32 %v604, 0.0
      %v629 = vmax.f32 %v566, 0.0
      %v630 = vmax.f32 %v607, 0.0
      %v631 = vmax.f32 %v569, 0.0
      %v632 = vmax.f32 %v610, 0.0
      %v633 = vmax.f32 %v572, 0.0
      %v634 = vmax.f32 %v613, 0.0
      %v635 = vmax.f32 %v575, 0.0
      %v636 = vmax.f32 %v616, 0.0
      %v637 = vmax.f32 %v578, 0.0
      %v638 = vmax.f32 %v619, 0.0
      %v639 = vmax.f32 %v581, 0.0
      %v640 = vmax.f32 %v622, 0.0
      %v641 = vmax.f32 %v584, 0.0
      %v642 = vmax.f32 %v625, 0.0
      %v643 = vld [vmem:[%s3] sm:$0xff]
      %v644 = vld [vmem:[%s3 + $0x8] sm:$0xff]
      %v645 = vld [vmem:[%s3 + $0x10] sm:$0xff]
      %v646 = vld [vmem:[%s3 + $0x18] sm:$0xff]
      %v647 = vld [vmem:[%s3 + $0x20] sm:$0xff]
      %v648 = vld [vmem:[%s3 + $0x28] sm:$0xff]
      %v649 = vld [vmem:[%s3 + $0x30] sm:$0xff]
      %v650 = vld [vmem:[%s3 + $0x38] sm:$0xff]
      %v651 = vld [vmem:[%s4] sm:$0xff]
      %v652 = vld [vmem:[%s4 + $0x8] sm:$0xff]
      %v653 = vld [vmem:[%s4 + $0x10] sm:$0xff]
      %v654 = vld [vmem:[%s4 + $0x18] sm:$0xff]
      %v655 = vld [vmem:[%s4 + $0x20] sm:$0xff]
      %v656 = vld [vmem:[%s4 + $0x28] sm:$0xff]
      %v657 = vld [vmem:[%s4 + $0x30] sm:$0xff]
      %v658 = vld [vmem:[%s4 + $0x38] sm:$0xff]
      %660 = vset.pattern.permute.xlu0 0
      %661 = vperm.xlu0 %660, %v651
      %v662 = vpop.permute.xlu0 %661
      %665 = vset.pattern.permute.xlu0 0
      %666 = vperm.xlu0 %665, %v652
      %v667 = vpop.permute.xlu0 %666
      %670 = vset.pattern.permute.xlu0 0
      %671 = vperm.xlu0 %670, %v653
      %v672 = vpop.permute.xlu0 %671
      %675 = vset.pattern.permute.xlu0 0
      %676 = vperm.xlu0 %675, %v654
      %v677 = vpop.permute.xlu0 %676
      %680 = vset.pattern.permute.xlu0 0
      %681 = vperm.xlu0 %680, %v655
      %v682 = vpop.permute.xlu0 %681
      %685 = vset.pattern.permute.xlu0 0
      %686 = vperm.xlu0 %685, %v656
      %v687 = vpop.permute.xlu0 %686
      %690 = vset.pattern.permute.xlu0 0
      %691 = vperm.xlu0 %690, %v657
      %v692 = vpop.permute.xlu0 %691
      %695 = vset.pattern.permute.xlu0 0
      %696 = vperm.xlu0 %695, %v658
      %v697 = vpop.permute.xlu0 %696
      %vm699 = vcmask 523264
      %v701 = vsel %vm699, %v643, 0
      %v704 = vsel %vm699, %v644, 0
      %v707 = vsel %vm699, %v645, 0
      %v710 = vsel %vm699, %v646, 0
      %v713 = vsel %vm699, %v647, 0
      %v716 = vsel %vm699, %v648, 0
      %v719 = vsel %vm699, %v649, 0
      %v722 = vsel %vm699, %v650, 0
      %724 = vmatpush.msra.mxu0 0.0
      %725 = vmatpush.msra.mxu0 0.0
      %726 = vmatpush.msra.mxu0 0.0
      %727 = vmatpush.msra.mxu0 0.0
      %728 = vmatpush.msra.mxu0 0.0
      %729 = vmatpush.msra.mxu0 0.0
      %730 = vmatpush.msra.mxu0 0.0
      %731 = vmatpush.msra.mxu0 0.0
      %732 = vmatpush.msra.mxu0 %v641
      %733 = vmatpush.msra.mxu0 %v639
      %734 = vmatpush.msra.mxu0 %v637
      %735 = vmatpush.msra.mxu0 %v635
      %736 = vmatpush.msra.mxu0 %v633
      %737 = vmatpush.msra.mxu0 %v631
      %738 = vmatpush.msra.mxu0 %v629
      %739 = vmatpush.msra.mxu0 %v627
      %740 = vmatmul.f32.gmra.mxu0 %v701
      %v741 = vpop.f32.mrf.mxu0
      %v742 = vadd.f32 %v662, %v741
      %743 = vmatmul.f32.gmra.mxu0 %v704
      %v744 = vpop.f32.mrf.mxu0
      %v745 = vadd.f32 %v667, %v744
      %746 = vmatmul.f32.gmra.mxu0 %v707
      %v747 = vpop.f32.mrf.mxu0
      %v748 = vadd.f32 %v672, %v747
      %749 = vmatmul.f32.gmra.mxu0 %v710
      %v750 = vpop.f32.mrf.mxu0
      %v751 = vadd.f32 %v677, %v750
      %752 = vmatmul.f32.gmra.mxu0 %v713
      %v753 = vpop.f32.mrf.mxu0
      %v754 = vadd.f32 %v682, %v753
      %755 = vmatmul.f32.gmra.mxu0 %v716
      %v756 = vpop.f32.mrf.mxu0
      %v757 = vadd.f32 %v687, %v756
      %758 = vmatmul.f32.gmra.mxu0 %v719
      %v759 = vpop.f32.mrf.mxu0
      %v760 = vadd.f32 %v692, %v759
      %761 = vmatmul.f32.gmra.mxu0 %v722
      %v762 = vpop.f32.mrf.mxu0
      %v763 = vadd.f32 %v697, %v762
      %764 = vdwg.mxu0
      %765 = vmatpush.msra.mxu0 0.0
      %766 = vmatpush.msra.mxu0 0.0
      %767 = vmatpush.msra.mxu0 0.0
      %768 = vmatpush.msra.mxu0 0.0
      %769 = vmatpush.msra.mxu0 0.0
      %770 = vmatpush.msra.mxu0 0.0
      %771 = vmatpush.msra.mxu0 0.0
      %772 = vmatpush.msra.mxu0 0.0
      %773 = vmatpush.msra.mxu0 %v642
      %774 = vmatpush.msra.mxu0 %v640
      %775 = vmatpush.msra.mxu0 %v638
      %776 = vmatpush.msra.mxu0 %v636
      %777 = vmatpush.msra.mxu0 %v634
      %778 = vmatpush.msra.mxu0 %v632
      %779 = vmatpush.msra.mxu0 %v630
      %780 = vmatpush.msra.mxu0 %v628
      %781 = vmatmul.f32.gmra.mxu0 %v701
      %v782 = vpop.f32.mrf.mxu0
      %v783 = vadd.f32 %v662, %v782
      %784 = vmatmul.f32.gmra.mxu0 %v704
      %v785 = vpop.f32.mrf.mxu0
      %v786 = vadd.f32 %v667, %v785
      %787 = vmatmul.f32.gmra.mxu0 %v707
      %v788 = vpop.f32.mrf.mxu0
      %v789 = vadd.f32 %v672, %v788
      %790 = vmatmul.f32.gmra.mxu0 %v710
      %v791 = vpop.f32.mrf.mxu0
      %v792 = vadd.f32 %v677, %v791
      %793 = vmatmul.f32.gmra.mxu0 %v713
      %v794 = vpop.f32.mrf.mxu0
      %v795 = vadd.f32 %v682, %v794
      %796 = vmatmul.f32.gmra.mxu0 %v716
      %v797 = vpop.f32.mrf.mxu0
      %v798 = vadd.f32 %v687, %v797
      %799 = vmatmul.f32.gmra.mxu0 %v719
      %v800 = vpop.f32.mrf.mxu0
      %v801 = vadd.f32 %v692, %v800
      %802 = vmatmul.f32.gmra.mxu0 %v722
      %v803 = vpop.f32.mrf.mxu0
      %v804 = vadd.f32 %v697, %v803
      %805 = vdwg.mxu0
      %v806 = vmax.f32 %v742, 0.0
      %v807 = vmax.f32 %v783, 0.0
      %v808 = vmax.f32 %v745, 0.0
      %v809 = vmax.f32 %v786, 0.0
      %v810 = vmax.f32 %v748, 0.0
      %v811 = vmax.f32 %v789, 0.0
      %v812 = vmax.f32 %v751, 0.0
      %v813 = vmax.f32 %v792, 0.0
      %v814 = vmax.f32 %v754, 0.0
      %v815 = vmax.f32 %v795, 0.0
      %v816 = vmax.f32 %v757, 0.0
      %v817 = vmax.f32 %v798, 0.0
      %v818 = vmax.f32 %v760, 0.0
      %v819 = vmax.f32 %v801, 0.0
      %v820 = vmax.f32 %v763, 0.0
      %v821 = vmax.f32 %v804, 0.0
      %v822 = vld [vmem:[%s5] sm:$0xff]
      %v823 = vld [vmem:[%s5 + $0x8] sm:$0xff]
      %v824 = vld [vmem:[%s5 + $0x10] sm:$0xff]
      %v825 = vld [vmem:[%s5 + $0x18] sm:$0xff]
      %v826 = vld [vmem:[%s6] sm:$0xff]
      %v827 = vld [vmem:[%s6 + $0x8] sm:$0xff]
      %v828 = vld [vmem:[%s6 + $0x10] sm:$0xff]
      %v829 = vld [vmem:[%s6 + $0x18] sm:$0xff]
      %831 = vset.pattern.permute.xlu0 0
      %832 = vperm.xlu0 %831, %v826
      %v833 = vpop.permute.xlu0 %832
      %836 = vset.pattern.permute.xlu0 0
      %837 = vperm.xlu0 %836, %v827
      %v838 = vpop.permute.xlu0 %837
      %841 = vset.pattern.permute.xlu0 0
      %842 = vperm.xlu0 %841, %v828
      %v843 = vpop.permute.xlu0 %842
      %846 = vset.pattern.permute.xlu0 0
      %847 = vperm.xlu0 %846, %v829
      %v848 = vpop.permute.xlu0 %847
      %v851 = vsel %vm699, %v822, 0
      %v854 = vsel %vm699, %v823, 0
      %v857 = vsel %vm699, %v824, 0
      %v860 = vsel %vm699, %v825, 0
      %862 = vmatpush.msra.mxu0 0.0
      %863 = vmatpush.msra.mxu0 0.0
      %864 = vmatpush.msra.mxu0 0.0
      %865 = vmatpush.msra.mxu0 0.0
      %866 = vmatpush.msra.mxu0 0.0
      %867 = vmatpush.msra.mxu0 0.0
      %868 = vmatpush.msra.mxu0 0.0
      %869 = vmatpush.msra.mxu0 0.0
      %870 = vmatpush.msra.mxu0 %v820
      %871 = vmatpush.msra.mxu0 %v818
      %872 = vmatpush.msra.mxu0 %v816
      %873 = vmatpush.msra.mxu0 %v814
      %874 = vmatpush.msra.mxu0 %v812
      %875 = vmatpush.msra.mxu0 %v810
      %876 = vmatpush.msra.mxu0 %v808
      %877 = vmatpush.msra.mxu0 %v806
      %878 = vmatmul.f32.gmra.mxu0 %v851
      %v879 = vpop.f32.mrf.mxu0
      %v880 = vadd.f32 %v833, %v879
      %881 = vmatmul.f32.gmra.mxu0 %v854
      %v882 = vpop.f32.mrf.mxu0
      %v883 = vadd.f32 %v838, %v882
      %884 = vmatmul.f32.gmra.mxu0 %v857
      %v885 = vpop.f32.mrf.mxu0
      %v886 = vadd.f32 %v843, %v885
      %887 = vmatmul.f32.gmra.mxu0 %v860
      %v888 = vpop.f32.mrf.mxu0
      %v889 = vadd.f32 %v848, %v888
      %890 = vdwg.mxu0
      %891 = vmatpush.msra.mxu0 0.0
      %892 = vmatpush.msra.mxu0 0.0
      %893 = vmatpush.msra.mxu0 0.0
      %894 = vmatpush.msra.mxu0 0.0
      %895 = vmatpush.msra.mxu0 0.0
      %896 = vmatpush.msra.mxu0 0.0
      %897 = vmatpush.msra.mxu0 0.0
      %898 = vmatpush.msra.mxu0 0.0
      %899 = vmatpush.msra.mxu0 %v821
      %900 = vmatpush.msra.mxu0 %v819
      %901 = vmatpush.msra.mxu0 %v817
      %902 = vmatpush.msra.mxu0 %v815
      %903 = vmatpush.msra.mxu0 %v813
      %904 = vmatpush.msra.mxu0 %v811
      %905 = vmatpush.msra.mxu0 %v809
      %906 = vmatpush.msra.mxu0 %v807
      %907 = vmatmul.f32.gmra.mxu0 %v851
      %v908 = vpop.f32.mrf.mxu0
      %v909 = vadd.f32 %v833, %v908
      %910 = vmatmul.f32.gmra.mxu0 %v854
      %v911 = vpop.f32.mrf.mxu0
      %v912 = vadd.f32 %v838, %v911
      %913 = vmatmul.f32.gmra.mxu0 %v857
      %v914 = vpop.f32.mrf.mxu0
      %v915 = vadd.f32 %v843, %v914
      %916 = vmatmul.f32.gmra.mxu0 %v860
      %v917 = vpop.f32.mrf.mxu0
      %v918 = vadd.f32 %v848, %v917
      %919 = vdwg.mxu0
      %v920 = vmax.f32 %v880, 0.0
      %v921 = vmax.f32 %v909, 0.0
      %v922 = vmax.f32 %v883, 0.0
      %v923 = vmax.f32 %v912, 0.0
      %v924 = vmax.f32 %v886, 0.0
      %v925 = vmax.f32 %v915, 0.0
      %v926 = vmax.f32 %v889, 0.0
      %v927 = vmax.f32 %v918, 0.0
      %928 = vxpose.xlu0.b32.start [1/16] %v920, 128
      %929 = vxpose.xlu0.b32.cont [2/16] %v922, 128
      %930 = vxpose.xlu0.b32.cont [3/16] %v924, 128
      %931 = vxpose.xlu0.b32.cont [4/16] %v926, 128
      %932 = vxpose.xlu0.b32.cont [5/16] 0.0, 128
      %933 = vxpose.xlu0.b32.cont [6/16] 0.0, 128
      %934 = vxpose.xlu0.b32.cont [7/16] 0.0, 128
      %935 = vxpose.xlu0.b32.cont [8/16] 0.0, 128
      %936 = vxpose.xlu0.b32.cont [9/16] 0.0, 128
      %937 = vxpose.xlu0.b32.cont [10/16] 0.0, 128
      %938 = vxpose.xlu0.b32.cont [11/16] 0.0, 128
      %939 = vxpose.xlu0.b32.cont [12/16] 0.0, 128
      %940 = vxpose.xlu0.b32.cont [13/16] 0.0, 128
      %941 = vxpose.xlu0.b32.cont [14/16] 0.0, 128
      %942 = vxpose.xlu0.b32.cont [15/16] 0.0, 128
      %943 = vxpose.xlu0.b32.end [16/16] 0.0, 128
      %v944 = vpop.trf.xlu0
      %v945 = vpop.trf.xlu0
      %v946 = vpop.trf.xlu0
      %v947 = vpop.trf.xlu0
      %v948 = vpop.trf.xlu0
      %v949 = vpop.trf.xlu0
      %v950 = vpop.trf.xlu0
      %v951 = vpop.trf.xlu0
      %v952 = vpop.trf.xlu0
      %v953 = vpop.trf.xlu0
      %v954 = vpop.trf.xlu0
      %v955 = vpop.trf.xlu0
      %v956 = vpop.trf.xlu0
      %v957 = vpop.trf.xlu0
      %v958 = vpop.trf.xlu0
      %v959 = vpop.trf.xlu0
      %960 = vxpose.xlu0.b32.start [1/16] %v921, 128
      %961 = vxpose.xlu0.b32.cont [2/16] %v923, 128
      %962 = vxpose.xlu0.b32.cont [3/16] %v925, 128
      %963 = vxpose.xlu0.b32.cont [4/16] %v927, 128
      %964 = vxpose.xlu0.b32.cont [5/16] 0.0, 128
      %965 = vxpose.xlu0.b32.cont [6/16] 0.0, 128
      %966 = vxpose.xlu0.b32.cont [7/16] 0.0, 128
      %967 = vxpose.xlu0.b32.cont [8/16] 0.0, 128
      %968 = vxpose.xlu0.b32.cont [9/16] 0.0, 128
      %969 = vxpose.xlu0.b32.cont [10/16] 0.0, 128
      %970 = vxpose.xlu0.b32.cont [11/16] 0.0, 128
      %971 = vxpose.xlu0.b32.cont [12/16] 0.0, 128
      %972 = vxpose.xlu0.b32.cont [13/16] 0.0, 128
      %973 = vxpose.xlu0.b32.cont [14/16] 0.0, 128
      %974 = vxpose.xlu0.b32.cont [15/16] 0.0, 128
      %975 = vxpose.xlu0.b32.end [16/16] 0.0, 128
      %v976 = vpop.trf.xlu0
      %v977 = vpop.trf.xlu0
      %v978 = vpop.trf.xlu0
      %v979 = vpop.trf.xlu0
      %v980 = vpop.trf.xlu0
      %v981 = vpop.trf.xlu0
      %v982 = vpop.trf.xlu0
      %v983 = vpop.trf.xlu0
      %v984 = vpop.trf.xlu0
      %v985 = vpop.trf.xlu0
      %v986 = vpop.trf.xlu0
      %v987 = vpop.trf.xlu0
      %v988 = vpop.trf.xlu0
      %v989 = vpop.trf.xlu0
      %v990 = vpop.trf.xlu0
      %v991 = vpop.trf.xlu0
      %v992 = vld [vmem:[%s7] sm:$0xff]
      %v993 = vld [vmem:[%s7 + $0x8] sm:$0xff]
      %v994 = vld [vmem:[%s7 + $0x10] sm:$0xff]
      %v995 = vld [vmem:[%s7 + $0x18] sm:$0xff]
      %v996 = vld [vmem:[%s8] sm:$0x1]
      %v998 = vperm.slane %v996, 0
      %vm1000 = vcmask 261120
      %v1002 = vsel %vm1000, %v944, 0
      %v1005 = vsel %vm1000, %v945, 0
      %v1008 = vsel %vm1000, %v946, 0
      %v1011 = vsel %vm1000, %v947, 0
      %v1014 = vsel %vm1000, %v948, 0
      %v1017 = vsel %vm1000, %v949, 0
      %v1020 = vsel %vm1000, %v950, 0
      %v1023 = vsel %vm1000, %v951, 0
      %v1026 = vsel %vm1000, %v952, 0
      %v1029 = vsel %vm1000, %v953, 0
      %v1032 = vsel %vm1000, %v954, 0
      %v1035 = vsel %vm1000, %v955, 0
      %v1038 = vsel %vm1000, %v956, 0
      %v1041 = vsel %vm1000, %v957, 0
      %v1044 = vsel %vm1000, %v958, 0
      %v1047 = vsel %vm1000, %v959, 0
      %v1050 = vsel %vm1000, %v976, 0
      %v1053 = vsel %vm1000, %v977, 0
      %v1056 = vsel %vm1000, %v978, 0
      %v1059 = vsel %vm1000, %v979, 0
      %v1062 = vsel %vm1000, %v980, 0
      %v1065 = vsel %vm1000, %v981, 0
      %v1068 = vsel %vm1000, %v982, 0
      %v1071 = vsel %vm1000, %v983, 0
      %v1074 = vsel %vm1000, %v984, 0
      %v1077 = vsel %vm1000, %v985, 0
      %v1080 = vsel %vm1000, %v986, 0
      %v1083 = vsel %vm1000, %v987, 0
      %v1086 = vsel %vm1000, %v988, 0
      %v1089 = vsel %vm1000, %v989, 0
      %v1092 = vsel %vm1000, %v990, 0
      %v1095 = vsel %vm1000, %v991, 0
      %1097 = vmatpush.msra.mxu0 0.0
      %1098 = vmatpush.msra.mxu0 0.0
      %1099 = vmatpush.msra.mxu0 0.0
      %1100 = vmatpush.msra.mxu0 0.0
      %1101 = vmatpush.msra.mxu0 0.0
      %1102 = vmatpush.msra.mxu0 0.0
      %1103 = vmatpush.msra.mxu0 0.0
      %1104 = vmatpush.msra.mxu0 0.0
      %1105 = vmatpush.msra.mxu0 0.0
      %1106 = vmatpush.msra.mxu0 0.0
      %1107 = vmatpush.msra.mxu0 0.0
      %1108 = vmatpush.msra.mxu0 0.0
      %1109 = vmatpush.msra.mxu0 %v995
      %1110 = vmatpush.msra.mxu0 %v994
      %1111 = vmatpush.msra.mxu0 %v993
      %1112 = vmatpush.msra.mxu0 %v992
      %1113 = vmatmul.f32.gmra.mxu0 %v1002
      %v1114 = vpop.f32.mrf.mxu0
      %v1115 = vadd.f32 %v998, %v1114
      %1116 = vmatmul.f32.gmra.mxu0 %v1005
      %v1117 = vpop.f32.mrf.mxu0
      %v1118 = vadd.f32 %v998, %v1117
      %1119 = vmatmul.f32.gmra.mxu0 %v1008
      %v1120 = vpop.f32.mrf.mxu0
      %v1121 = vadd.f32 %v998, %v1120
      %1122 = vmatmul.f32.gmra.mxu0 %v1011
      %v1123 = vpop.f32.mrf.mxu0
      %v1124 = vadd.f32 %v998, %v1123
      %1125 = vmatmul.f32.gmra.mxu0 %v1014
      %v1126 = vpop.f32.mrf.mxu0
      %v1127 = vadd.f32 %v998, %v1126
      %1128 = vmatmul.f32.gmra.mxu0 %v1017
      %v1129 = vpop.f32.mrf.mxu0
      %v1130 = vadd.f32 %v998, %v1129
      %1131 = vmatmul.f32.gmra.mxu0 %v1020
      %v1132 = vpop.f32.mrf.mxu0
      %v1133 = vadd.f32 %v998, %v1132
      %1134 = vmatmul.f32.gmra.mxu0 %v1023
      %v1135 = vpop.f32.mrf.mxu0
      %v1136 = vadd.f32 %v998, %v1135
      %1137 = vmatmul.f32.gmra.mxu0 %v1026
      %v1138 = vpop.f32.mrf.mxu0
      %v1139 = vadd.f32 %v998, %v1138
      %1140 = vmatmul.f32.gmra.mxu0 %v1029
      %v1141 = vpop.f32.mrf.mxu0
      %v1142 = vadd.f32 %v998, %v1141
      %1143 = vmatmul.f32.gmra.mxu0 %v1032
      %v1144 = vpop.f32.mrf.mxu0
      %v1145 = vadd.f32 %v998, %v1144
      %1146 = vmatmul.f32.gmra.mxu0 %v1035
      %v1147 = vpop.f32.mrf.mxu0
      %v1148 = vadd.f32 %v998, %v1147
      %1149 = vmatmul.f32.gmra.mxu0 %v1038
      %v1150 = vpop.f32.mrf.mxu0
      %v1151 = vadd.f32 %v998, %v1150
      %1152 = vmatmul.f32.gmra.mxu0 %v1041
      %v1153 = vpop.f32.mrf.mxu0
      %v1154 = vadd.f32 %v998, %v1153
      %1155 = vmatmul.f32.gmra.mxu0 %v1044
      %v1156 = vpop.f32.mrf.mxu0
      %v1157 = vadd.f32 %v998, %v1156
      %1158 = vmatmul.f32.gmra.mxu0 %v1047
      %v1159 = vpop.f32.mrf.mxu0
      %v1160 = vadd.f32 %v998, %v1159
      %1161 = vmatmul.f32.gmra.mxu0 %v1050
      %v1162 = vpop.f32.mrf.mxu0
      %v1163 = vadd.f32 %v998, %v1162
      %1164 = vmatmul.f32.gmra.mxu0 %v1053
      %v1165 = vpop.f32.mrf.mxu0
      %v1166 = vadd.f32 %v998, %v1165
      %1167 = vmatmul.f32.gmra.mxu0 %v1056
      %v1168 = vpop.f32.mrf.mxu0
      %v1169 = vadd.f32 %v998, %v1168
      %1170 = vmatmul.f32.gmra.mxu0 %v1059
      %v1171 = vpop.f32.mrf.mxu0
      %v1172 = vadd.f32 %v998, %v1171
      %1173 = vmatmul.f32.gmra.mxu0 %v1062
      %v1174 = vpop.f32.mrf.mxu0
      %v1175 = vadd.f32 %v998, %v1174
      %1176 = vmatmul.f32.gmra.mxu0 %v1065
      %v1177 = vpop.f32.mrf.mxu0
      %v1178 = vadd.f32 %v998, %v1177
      %1179 = vmatmul.f32.gmra.mxu0 %v1068
      %v1180 = vpop.f32.mrf.mxu0
      %v1181 = vadd.f32 %v998, %v1180
      %1182 = vmatmul.f32.gmra.mxu0 %v1071
      %v1183 = vpop.f32.mrf.mxu0
      %v1184 = vadd.f32 %v998, %v1183
      %1185 = vmatmul.f32.gmra.mxu0 %v1074
      %v1186 = vpop.f32.mrf.mxu0
      %v1187 = vadd.f32 %v998, %v1186
      %1188 = vmatmul.f32.gmra.mxu0 %v1077
      %v1189 = vpop.f32.mrf.mxu0
      %v1190 = vadd.f32 %v998, %v1189
      %1191 = vmatmul.f32.gmra.mxu0 %v1080
      %v1192 = vpop.f32.mrf.mxu0
      %v1193 = vadd.f32 %v998, %v1192
      %1194 = vmatmul.f32.gmra.mxu0 %v1083
      %v1195 = vpop.f32.mrf.mxu0
      %v1196 = vadd.f32 %v998, %v1195
      %1197 = vmatmul.f32.gmra.mxu0 %v1086
      %v1198 = vpop.f32.mrf.mxu0
      %v1199 = vadd.f32 %v998, %v1198
      %1200 = vmatmul.f32.gmra.mxu0 %v1089
      %v1201 = vpop.f32.mrf.mxu0
      %v1202 = vadd.f32 %v998, %v1201
      %1203 = vmatmul.f32.gmra.mxu0 %v1092
      %v1204 = vpop.f32.mrf.mxu0
      %v1205 = vadd.f32 %v998, %v1204
      %1206 = vmatmul.f32.gmra.mxu0 %v1095
      %v1207 = vpop.f32.mrf.mxu0
      %v1208 = vadd.f32 %v998, %v1207
      %1209 = vdwg.mxu0
      %v1210 = vxor.u32 %v1115, 2147483648
      %v1211 = vxor.u32 %v1118, 2147483648
      %v1212 = vxor.u32 %v1121, 2147483648
      %v1213 = vxor.u32 %v1124, 2147483648
      %v1214 = vxor.u32 %v1127, 2147483648
      %v1215 = vxor.u32 %v1130, 2147483648
      %v1216 = vxor.u32 %v1133, 2147483648
      %v1217 = vxor.u32 %v1136, 2147483648
      %v1218 = vxor.u32 %v1139, 2147483648
      %v1219 = vxor.u32 %v1142, 2147483648
      %v1220 = vxor.u32 %v1145, 2147483648
      %v1221 = vxor.u32 %v1148, 2147483648
      %v1222 = vxor.u32 %v1151, 2147483648
      %v1223 = vxor.u32 %v1154, 2147483648
      %v1224 = vxor.u32 %v1157, 2147483648
      %v1225 = vxor.u32 %v1160, 2147483648
      %v1226 = vxor.u32 %v1163, 2147483648
      %v1227 = vxor.u32 %v1166, 2147483648
      %v1228 = vxor.u32 %v1169, 2147483648
      %v1229 = vxor.u32 %v1172, 2147483648
      %v1230 = vxor.u32 %v1175, 2147483648
      %v1231 = vxor.u32 %v1178, 2147483648
      %v1232 = vxor.u32 %v1181, 2147483648
      %v1233 = vxor.u32 %v1184, 2147483648
      %v1234 = vxor.u32 %v1187, 2147483648
      %v1235 = vxor.u32 %v1190, 2147483648
      %v1236 = vxor.u32 %v1193, 2147483648
      %v1237 = vxor.u32 %v1196, 2147483648
      %v1238 = vxor.u32 %v1199, 2147483648
      %v1239 = vxor.u32 %v1202, 2147483648
      %v1240 = vxor.u32 %v1205, 2147483648
      %v1241 = vxor.u32 %v1208, 2147483648
      %v1242 = vmul.f32 %v1210, 1.442695
      %v1243 = vpow.pop %v1242
      %v1244 = vmul.f32 %v1211, 1.442695
      %v1245 = vpow.pop %v1244
      %v1246 = vmul.f32 %v1212, 1.442695
      %v1247 = vpow.pop %v1246
      %v1248 = vmul.f32 %v1213, 1.442695
      %v1249 = vpow.pop %v1248
      %v1250 = vmul.f32 %v1214, 1.442695
      %v1251 = vpow.pop %v1250
      %v1252 = vmul.f32 %v1215, 1.442695
      %v1253 = vpow.pop %v1252
      %v1254 = vmul.f32 %v1216, 1.442695
      %v1255 = vpow.pop %v1254
      %v1256 = vmul.f32 %v1217, 1.442695
      %v1257 = vpow.pop %v1256
      %v1258 = vmul.f32 %v1218, 1.442695
      %v1259 = vpow.pop %v1258
      %v1260 = vmul.f32 %v1219, 1.442695
      %v1261 = vpow.pop %v1260
      %v1262 = vmul.f32 %v1220, 1.442695
      %v1263 = vpow.pop %v1262
      %v1264 = vmul.f32 %v1221, 1.442695
      %v1265 = vpow.pop %v1264
      %v1266 = vmul.f32 %v1222, 1.442695
      %v1267 = vpow.pop %v1266
      %v1268 = vmul.f32 %v1223, 1.442695
      %v1269 = vpow.pop %v1268
      %v1270 = vmul.f32 %v1224, 1.442695
      %v1271 = vpow.pop %v1270
      %v1272 = vmul.f32 %v1225, 1.442695
      %v1273 = vpow.pop %v1272
      %v1274 = vmul.f32 %v1226, 1.442695
      %v1275 = vpow.pop %v1274
      %v1276 = vmul.f32 %v1227, 1.442695
      %v1277 = vpow.pop %v1276
      %v1278 = vmul.f32 %v1228, 1.442695
      %v1279 = vpow.pop %v1278
      %v1280 = vmul.f32 %v1229, 1.442695
      %v1281 = vpow.pop %v1280
      %v1282 = vmul.f32 %v1230, 1.442695
      %v1283 = vpow.pop %v1282
      %v1284 = vmul.f32 %v1231, 1.442695
      %v1285 = vpow.pop %v1284
      %v1286 = vmul.f32 %v1232, 1.442695
      %v1287 = vpow.pop %v1286
      %v1288 = vmul.f32 %v1233, 1.442695
      %v1289 = vpow.pop %v1288
      %v1290 = vmul.f32 %v1234, 1.442695
      %v1291 = vpow.pop %v1290
      %v1292 = vmul.f32 %v1235, 1.442695
      %v1293 = vpow.pop %v1292
      %v1294 = vmul.f32 %v1236, 1.442695
      %v1295 = vpow.pop %v1294
      %v1296 = vmul.f32 %v1237, 1.442695
      %v1297 = vpow.pop %v1296
      %v1298 = vmul.f32 %v1238, 1.442695
      %v1299 = vpow.pop %v1298
      %v1300 = vmul.f32 %v1239, 1.442695
      %v1301 = vpow.pop %v1300
      %v1302 = vmul.f32 %v1240, 1.442695
      %v1303 = vpow.pop %v1302
      %v1304 = vmul.f32 %v1241, 1.442695
      %v1305 = vpow.pop %v1304
      %v1306 = vadd.f32 %v1243, 1.0
      %v1307 = vadd.f32 %v1245, 1.0
      %v1308 = vadd.f32 %v1247, 1.0
      %v1309 = vadd.f32 %v1249, 1.0
      %v1310 = vadd.f32 %v1251, 1.0
      %v1311 = vadd.f32 %v1253, 1.0
      %v1312 = vadd.f32 %v1255, 1.0
      %v1313 = vadd.f32 %v1257, 1.0
      %v1314 = vadd.f32 %v1259, 1.0
      %v1315 = vadd.f32 %v1261, 1.0
      %v1316 = vadd.f32 %v1263, 1.0
      %v1317 = vadd.f32 %v1265, 1.0
      %v1318 = vadd.f32 %v1267, 1.0
      %v1319 = vadd.f32 %v1269, 1.0
      %v1320 = vadd.f32 %v1271, 1.0
      %v1321 = vadd.f32 %v1273, 1.0
      %v1322 = vadd.f32 %v1275, 1.0
      %v1323 = vadd.f32 %v1277, 1.0
      %v1324 = vadd.f32 %v1279, 1.0
      %v1325 = vadd.f32 %v1281, 1.0
      %v1326 = vadd.f32 %v1283, 1.0
      %v1327 = vadd.f32 %v1285, 1.0
      %v1328 = vadd.f32 %v1287, 1.0
      %v1329 = vadd.f32 %v1289, 1.0
      %v1330 = vadd.f32 %v1291, 1.0
      %v1331 = vadd.f32 %v1293, 1.0
      %v1332 = vadd.f32 %v1295, 1.0
      %v1333 = vadd.f32 %v1297, 1.0
      %v1334 = vadd.f32 %v1299, 1.0
      %v1335 = vadd.f32 %v1301, 1.0
      %v1336 = vadd.f32 %v1303, 1.0
      %v1337 = vadd.f32 %v1305, 1.0
      %v1338 = vrcp.pop %v1306
      %v1339 = vmul.f32 %v1306, %v1338
      %v1340 = vsub.f32 1.0, %v1339
      %v1341 = vmul.f32 %v1338, %v1340
      %v1342 = vadd.f32 %v1338, %v1341
      %vm1343 = vweird.f32 %v1306
      %vm1344 = vweird.f32 %v1338
      %vm1345 = vmor %vm1343, %vm1344
      %v1346 = vsel %vm1345, %v1338, %v1342
      %v1347 = vand.u32 2147483647, %v1306
      %vm1348 = vcmp.eq.f32.partialorder %v1347, 8.507059e+37
      %v1349 = vand.u32 %v1306, 2147483648
      %v1350 = vor.u32 1.1754944e-38, %v1349
      %v1351 = vsel %vm1348, %v1350, %v1346
      %v1352 = vmul.f32 1.0, %v1351
      %v1353 = vrcp.pop %v1307
      %v1354 = vmul.f32 %v1307, %v1353
      %v1355 = vsub.f32 1.0, %v1354
      %v1356 = vmul.f32 %v1353, %v1355
      %v1357 = vadd.f32 %v1353, %v1356
      %vm1358 = vweird.f32 %v1307
      %vm1359 = vweird.f32 %v1353
      %vm1360 = vmor %vm1358, %vm1359
      %v1361 = vsel %vm1360, %v1353, %v1357
      %v1362 = vand.u32 2147483647, %v1307
      %vm1363 = vcmp.eq.f32.partialorder %v1362, 8.507059e+37
      %v1364 = vand.u32 %v1307, 2147483648
      %v1365 = vor.u32 1.1754944e-38, %v1364
      %v1366 = vsel %vm1363, %v1365, %v1361
      %v1367 = vmul.f32 1.0, %v1366
      %v1368 = vrcp.pop %v1308
      %v1369 = vmul.f32 %v1308, %v1368
      %v1370 = vsub.f32 1.0, %v1369
      %v1371 = vmul.f32 %v1368, %v1370
      %v1372 = vadd.f32 %v1368, %v1371
      %vm1373 = vweird.f32 %v1308
      %vm1374 = vweird.f32 %v1368
      %vm1375 = vmor %vm1373, %vm1374
      %v1376 = vsel %vm1375, %v1368, %v1372
      %v1377 = vand.u32 2147483647, %v1308
      %vm1378 = vcmp.eq.f32.partialorder %v1377, 8.507059e+37
      %v1379 = vand.u32 %v1308, 2147483648
      %v1380 = vor.u32 1.1754944e-38, %v1379
      %v1381 = vsel %vm1378, %v1380, %v1376
      %v1382 = vmul.f32 1.0, %v1381
      %v1383 = vrcp.pop %v1309
      %v1384 = vmul.f32 %v1309, %v1383
      %v1385 = vsub.f32 1.0, %v1384
      %v1386 = vmul.f32 %v1383, %v1385
      %v1387 = vadd.f32 %v1383, %v1386
      %vm1388 = vweird.f32 %v1309
      %vm1389 = vweird.f32 %v1383
      %vm1390 = vmor %vm1388, %vm1389
      %v1391 = vsel %vm1390, %v1383, %v1387
      %v1392 = vand.u32 2147483647, %v1309
      %vm1393 = vcmp.eq.f32.partialorder %v1392, 8.507059e+37
      %v1394 = vand.u32 %v1309, 2147483648
      %v1395 = vor.u32 1.1754944e-38, %v1394
      %v1396 = vsel %vm1393, %v1395, %v1391
      %v1397 = vmul.f32 1.0, %v1396
      %v1398 = vrcp.pop %v1310
      %v1399 = vmul.f32 %v1310, %v1398
      %v1400 = vsub.f32 1.0, %v1399
      %v1401 = vmul.f32 %v1398, %v1400
      %v1402 = vadd.f32 %v1398, %v1401
      %vm1403 = vweird.f32 %v1310
      %vm1404 = vweird.f32 %v1398
      %vm1405 = vmor %vm1403, %vm1404
      %v1406 = vsel %vm1405, %v1398, %v1402
      %v1407 = vand.u32 2147483647, %v1310
      %vm1408 = vcmp.eq.f32.partialorder %v1407, 8.507059e+37
      %v1409 = vand.u32 %v1310, 2147483648
      %v1410 = vor.u32 1.1754944e-38, %v1409
      %v1411 = vsel %vm1408, %v1410, %v1406
      %v1412 = vmul.f32 1.0, %v1411
      %v1413 = vrcp.pop %v1311
      %v1414 = vmul.f32 %v1311, %v1413
      %v1415 = vsub.f32 1.0, %v1414
      %v1416 = vmul.f32 %v1413, %v1415
      %v1417 = vadd.f32 %v1413, %v1416
      %vm1418 = vweird.f32 %v1311
      %vm1419 = vweird.f32 %v1413
      %vm1420 = vmor %vm1418, %vm1419
      %v1421 = vsel %vm1420, %v1413, %v1417
      %v1422 = vand.u32 2147483647, %v1311
      %vm1423 = vcmp.eq.f32.partialorder %v1422, 8.507059e+37
      %v1424 = vand.u32 %v1311, 2147483648
      %v1425 = vor.u32 1.1754944e-38, %v1424
      %v1426 = vsel %vm1423, %v1425, %v1421
      %v1427 = vmul.f32 1.0, %v1426
      %v1428 = vrcp.pop %v1312
      %v1429 = vmul.f32 %v1312, %v1428
      %v1430 = vsub.f32 1.0, %v1429
      %v1431 = vmul.f32 %v1428, %v1430
      %v1432 = vadd.f32 %v1428, %v1431
      %vm1433 = vweird.f32 %v1312
      %vm1434 = vweird.f32 %v1428
      %vm1435 = vmor %vm1433, %vm1434
      %v1436 = vsel %vm1435, %v1428, %v1432
      %v1437 = vand.u32 2147483647, %v1312
      %vm1438 = vcmp.eq.f32.partialorder %v1437, 8.507059e+37
      %v1439 = vand.u32 %v1312, 2147483648
      %v1440 = vor.u32 1.1754944e-38, %v1439
      %v1441 = vsel %vm1438, %v1440, %v1436
      %v1442 = vmul.f32 1.0, %v1441
      %v1443 = vrcp.pop %v1313
      %v1444 = vmul.f32 %v1313, %v1443
      %v1445 = vsub.f32 1.0, %v1444
      %v1446 = vmul.f32 %v1443, %v1445
      %v1447 = vadd.f32 %v1443, %v1446
      %vm1448 = vweird.f32 %v1313
      %vm1449 = vweird.f32 %v1443
      %vm1450 = vmor %vm1448, %vm1449
      %v1451 = vsel %vm1450, %v1443, %v1447
      %v1452 = vand.u32 2147483647, %v1313
      %vm1453 = vcmp.eq.f32.partialorder %v1452, 8.507059e+37
      %v1454 = vand.u32 %v1313, 2147483648
      %v1455 = vor.u32 1.1754944e-38, %v1454
      %v1456 = vsel %vm1453, %v1455, %v1451
      %v1457 = vmul.f32 1.0, %v1456
      %v1458 = vrcp.pop %v1314
      %v1459 = vmul.f32 %v1314, %v1458
      %v1460 = vsub.f32 1.0, %v1459
      %v1461 = vmul.f32 %v1458, %v1460
      %v1462 = vadd.f32 %v1458, %v1461
      %vm1463 = vweird.f32 %v1314
      %vm1464 = vweird.f32 %v1458
      %vm1465 = vmor %vm1463, %vm1464
      %v1466 = vsel %vm1465, %v1458, %v1462
      %v1467 = vand.u32 2147483647, %v1314
      %vm1468 = vcmp.eq.f32.partialorder %v1467, 8.507059e+37
      %v1469 = vand.u32 %v1314, 2147483648
      %v1470 = vor.u32 1.1754944e-38, %v1469
      %v1471 = vsel %vm1468, %v1470, %v1466
      %v1472 = vmul.f32 1.0, %v1471
      %v1473 = vrcp.pop %v1315
      %v1474 = vmul.f32 %v1315, %v1473
      %v1475 = vsub.f32 1.0, %v1474
      %v1476 = vmul.f32 %v1473, %v1475
      %v1477 = vadd.f32 %v1473, %v1476
      %vm1478 = vweird.f32 %v1315
      %vm1479 = vweird.f32 %v1473
      %vm1480 = vmor %vm1478, %vm1479
      %v1481 = vsel %vm1480, %v1473, %v1477
      %v1482 = vand.u32 2147483647, %v1315
      %vm1483 = vcmp.eq.f32.partialorder %v1482, 8.507059e+37
      %v1484 = vand.u32 %v1315, 2147483648
      %v1485 = vor.u32 1.1754944e-38, %v1484
      %v1486 = vsel %vm1483, %v1485, %v1481
      %v1487 = vmul.f32 1.0, %v1486
      %v1488 = vrcp.pop %v1316
      %v1489 = vmul.f32 %v1316, %v1488
      %v1490 = vsub.f32 1.0, %v1489
      %v1491 = vmul.f32 %v1488, %v1490
      %v1492 = vadd.f32 %v1488, %v1491
      %vm1493 = vweird.f32 %v1316
      %vm1494 = vweird.f32 %v1488
      %vm1495 = vmor %vm1493, %vm1494
      %v1496 = vsel %vm1495, %v1488, %v1492
      %v1497 = vand.u32 2147483647, %v1316
      %vm1498 = vcmp.eq.f32.partialorder %v1497, 8.507059e+37
      %v1499 = vand.u32 %v1316, 2147483648
      %v1500 = vor.u32 1.1754944e-38, %v1499
      %v1501 = vsel %vm1498, %v1500, %v1496
      %v1502 = vmul.f32 1.0, %v1501
      %v1503 = vrcp.pop %v1317
      %v1504 = vmul.f32 %v1317, %v1503
      %v1505 = vsub.f32 1.0, %v1504
      %v1506 = vmul.f32 %v1503, %v1505
      %v1507 = vadd.f32 %v1503, %v1506
      %vm1508 = vweird.f32 %v1317
      %vm1509 = vweird.f32 %v1503
      %vm1510 = vmor %vm1508, %vm1509
      %v1511 = vsel %vm1510, %v1503, %v1507
      %v1512 = vand.u32 2147483647, %v1317
      %vm1513 = vcmp.eq.f32.partialorder %v1512, 8.507059e+37
      %v1514 = vand.u32 %v1317, 2147483648
      %v1515 = vor.u32 1.1754944e-38, %v1514
      %v1516 = vsel %vm1513, %v1515, %v1511
      %v1517 = vmul.f32 1.0, %v1516
      %v1518 = vrcp.pop %v1318
      %v1519 = vmul.f32 %v1318, %v1518
      %v1520 = vsub.f32 1.0, %v1519
      %v1521 = vmul.f32 %v1518, %v1520
      %v1522 = vadd.f32 %v1518, %v1521
      %vm1523 = vweird.f32 %v1318
      %vm1524 = vweird.f32 %v1518
      %vm1525 = vmor %vm1523, %vm1524
      %v1526 = vsel %vm1525, %v1518, %v1522
      %v1527 = vand.u32 2147483647, %v1318
      %vm1528 = vcmp.eq.f32.partialorder %v1527, 8.507059e+37
      %v1529 = vand.u32 %v1318, 2147483648
      %v1530 = vor.u32 1.1754944e-38, %v1529
      %v1531 = vsel %vm1528, %v1530, %v1526
      %v1532 = vmul.f32 1.0, %v1531
      %v1533 = vrcp.pop %v1319
      %v1534 = vmul.f32 %v1319, %v1533
      %v1535 = vsub.f32 1.0, %v1534
      %v1536 = vmul.f32 %v1533, %v1535
      %v1537 = vadd.f32 %v1533, %v1536
      %vm1538 = vweird.f32 %v1319
      %vm1539 = vweird.f32 %v1533
      %vm1540 = vmor %vm1538, %vm1539
      %v1541 = vsel %vm1540, %v1533, %v1537
      %v1542 = vand.u32 2147483647, %v1319
      %vm1543 = vcmp.eq.f32.partialorder %v1542, 8.507059e+37
      %v1544 = vand.u32 %v1319, 2147483648
      %v1545 = vor.u32 1.1754944e-38, %v1544
      %v1546 = vsel %vm1543, %v1545, %v1541
      %v1547 = vmul.f32 1.0, %v1546
      %v1548 = vrcp.pop %v1320
      %v1549 = vmul.f32 %v1320, %v1548
      %v1550 = vsub.f32 1.0, %v1549
      %v1551 = vmul.f32 %v1548, %v1550
      %v1552 = vadd.f32 %v1548, %v1551
      %vm1553 = vweird.f32 %v1320
      %vm1554 = vweird.f32 %v1548
      %vm1555 = vmor %vm1553, %vm1554
      %v1556 = vsel %vm1555, %v1548, %v1552
      %v1557 = vand.u32 2147483647, %v1320
      %vm1558 = vcmp.eq.f32.partialorder %v1557, 8.507059e+37
      %v1559 = vand.u32 %v1320, 2147483648
      %v1560 = vor.u32 1.1754944e-38, %v1559
      %v1561 = vsel %vm1558, %v1560, %v1556
      %v1562 = vmul.f32 1.0, %v1561
      %v1563 = vrcp.pop %v1321
      %v1564 = vmul.f32 %v1321, %v1563
      %v1565 = vsub.f32 1.0, %v1564
      %v1566 = vmul.f32 %v1563, %v1565
      %v1567 = vadd.f32 %v1563, %v1566
      %vm1568 = vweird.f32 %v1321
      %vm1569 = vweird.f32 %v1563
      %vm1570 = vmor %vm1568, %vm1569
      %v1571 = vsel %vm1570, %v1563, %v1567
      %v1572 = vand.u32 2147483647, %v1321
      %vm1573 = vcmp.eq.f32.partialorder %v1572, 8.507059e+37
      %v1574 = vand.u32 %v1321, 2147483648
      %v1575 = vor.u32 1.1754944e-38, %v1574
      %v1576 = vsel %vm1573, %v1575, %v1571
      %v1577 = vmul.f32 1.0, %v1576
      %v1578 = vrcp.pop %v1322
      %v1579 = vmul.f32 %v1322, %v1578
      %v1580 = vsub.f32 1.0, %v1579
      %v1581 = vmul.f32 %v1578, %v1580
      %v1582 = vadd.f32 %v1578, %v1581
      %vm1583 = vweird.f32 %v1322
      %vm1584 = vweird.f32 %v1578
      %vm1585 = vmor %vm1583, %vm1584
      %v1586 = vsel %vm1585, %v1578, %v1582
      %v1587 = vand.u32 2147483647, %v1322
      %vm1588 = vcmp.eq.f32.partialorder %v1587, 8.507059e+37
      %v1589 = vand.u32 %v1322, 2147483648
      %v1590 = vor.u32 1.1754944e-38, %v1589
      %v1591 = vsel %vm1588, %v1590, %v1586
      %v1592 = vmul.f32 1.0, %v1591
      %v1593 = vrcp.pop %v1323
      %v1594 = vmul.f32 %v1323, %v1593
      %v1595 = vsub.f32 1.0, %v1594
      %v1596 = vmul.f32 %v1593, %v1595
      %v1597 = vadd.f32 %v1593, %v1596
      %vm1598 = vweird.f32 %v1323
      %vm1599 = vweird.f32 %v1593
      %vm1600 = vmor %vm1598, %vm1599
      %v1601 = vsel %vm1600, %v1593, %v1597
      %v1602 = vand.u32 2147483647, %v1323
      %vm1603 = vcmp.eq.f32.partialorder %v1602, 8.507059e+37
      %v1604 = vand.u32 %v1323, 2147483648
      %v1605 = vor.u32 1.1754944e-38, %v1604
      %v1606 = vsel %vm1603, %v1605, %v1601
      %v1607 = vmul.f32 1.0, %v1606
      %v1608 = vrcp.pop %v1324
      %v1609 = vmul.f32 %v1324, %v1608
      %v1610 = vsub.f32 1.0, %v1609
      %v1611 = vmul.f32 %v1608, %v1610
      %v1612 = vadd.f32 %v1608, %v1611
      %vm1613 = vweird.f32 %v1324
      %vm1614 = vweird.f32 %v1608
      %vm1615 = vmor %vm1613, %vm1614
      %v1616 = vsel %vm1615, %v1608, %v1612
      %v1617 = vand.u32 2147483647, %v1324
      %vm1618 = vcmp.eq.f32.partialorder %v1617, 8.507059e+37
      %v1619 = vand.u32 %v1324, 2147483648
      %v1620 = vor.u32 1.1754944e-38, %v1619
      %v1621 = vsel %vm1618, %v1620, %v1616
      %v1622 = vmul.f32 1.0, %v1621
      %v1623 = vrcp.pop %v1325
      %v1624 = vmul.f32 %v1325, %v1623
      %v1625 = vsub.f32 1.0, %v1624
      %v1626 = vmul.f32 %v1623, %v1625
      %v1627 = vadd.f32 %v1623, %v1626
      %vm1628 = vweird.f32 %v1325
      %vm1629 = vweird.f32 %v1623
      %vm1630 = vmor %vm1628, %vm1629
      %v1631 = vsel %vm1630, %v1623, %v1627
      %v1632 = vand.u32 2147483647, %v1325
      %vm1633 = vcmp.eq.f32.partialorder %v1632, 8.507059e+37
      %v1634 = vand.u32 %v1325, 2147483648
      %v1635 = vor.u32 1.1754944e-38, %v1634
      %v1636 = vsel %vm1633, %v1635, %v1631
      %v1637 = vmul.f32 1.0, %v1636
      %v1638 = vrcp.pop %v1326
      %v1639 = vmul.f32 %v1326, %v1638
      %v1640 = vsub.f32 1.0, %v1639
      %v1641 = vmul.f32 %v1638, %v1640
      %v1642 = vadd.f32 %v1638, %v1641
      %vm1643 = vweird.f32 %v1326
      %vm1644 = vweird.f32 %v1638
      %vm1645 = vmor %vm1643, %vm1644
      %v1646 = vsel %vm1645, %v1638, %v1642
      %v1647 = vand.u32 2147483647, %v1326
      %vm1648 = vcmp.eq.f32.partialorder %v1647, 8.507059e+37
      %v1649 = vand.u32 %v1326, 2147483648
      %v1650 = vor.u32 1.1754944e-38, %v1649
      %v1651 = vsel %vm1648, %v1650, %v1646
      %v1652 = vmul.f32 1.0, %v1651
      %v1653 = vrcp.pop %v1327
      %v1654 = vmul.f32 %v1327, %v1653
      %v1655 = vsub.f32 1.0, %v1654
      %v1656 = vmul.f32 %v1653, %v1655
      %v1657 = vadd.f32 %v1653, %v1656
      %vm1658 = vweird.f32 %v1327
      %vm1659 = vweird.f32 %v1653
      %vm1660 = vmor %vm1658, %vm1659
      %v1661 = vsel %vm1660, %v1653, %v1657
      %v1662 = vand.u32 2147483647, %v1327
      %vm1663 = vcmp.eq.f32.partialorder %v1662, 8.507059e+37
      %v1664 = vand.u32 %v1327, 2147483648
      %v1665 = vor.u32 1.1754944e-38, %v1664
      %v1666 = vsel %vm1663, %v1665, %v1661
      %v1667 = vmul.f32 1.0, %v1666
      %v1668 = vrcp.pop %v1328
      %v1669 = vmul.f32 %v1328, %v1668
      %v1670 = vsub.f32 1.0, %v1669
      %v1671 = vmul.f32 %v1668, %v1670
      %v1672 = vadd.f32 %v1668, %v1671
      %vm1673 = vweird.f32 %v1328
      %vm1674 = vweird.f32 %v1668
      %vm1675 = vmor %vm1673, %vm1674
      %v1676 = vsel %vm1675, %v1668, %v1672
      %v1677 = vand.u32 2147483647, %v1328
      %vm1678 = vcmp.eq.f32.partialorder %v1677, 8.507059e+37
      %v1679 = vand.u32 %v1328, 2147483648
      %v1680 = vor.u32 1.1754944e-38, %v1679
      %v1681 = vsel %vm1678, %v1680, %v1676
      %v1682 = vmul.f32 1.0, %v1681
      %v1683 = vrcp.pop %v1329
      %v1684 = vmul.f32 %v1329, %v1683
      %v1685 = vsub.f32 1.0, %v1684
      %v1686 = vmul.f32 %v1683, %v1685
      %v1687 = vadd.f32 %v1683, %v1686
      %vm1688 = vweird.f32 %v1329
      %vm1689 = vweird.f32 %v1683
      %vm1690 = vmor %vm1688, %vm1689
      %v1691 = vsel %vm1690, %v1683, %v1687
      %v1692 = vand.u32 2147483647, %v1329
      %vm1693 = vcmp.eq.f32.partialorder %v1692, 8.507059e+37
      %v1694 = vand.u32 %v1329, 2147483648
      %v1695 = vor.u32 1.1754944e-38, %v1694
      %v1696 = vsel %vm1693, %v1695, %v1691
      %v1697 = vmul.f32 1.0, %v1696
      %v1698 = vrcp.pop %v1330
      %v1699 = vmul.f32 %v1330, %v1698
      %v1700 = vsub.f32 1.0, %v1699
      %v1701 = vmul.f32 %v1698, %v1700
      %v1702 = vadd.f32 %v1698, %v1701
      %vm1703 = vweird.f32 %v1330
      %vm1704 = vweird.f32 %v1698
      %vm1705 = vmor %vm1703, %vm1704
      %v1706 = vsel %vm1705, %v1698, %v1702
      %v1707 = vand.u32 2147483647, %v1330
      %vm1708 = vcmp.eq.f32.partialorder %v1707, 8.507059e+37
      %v1709 = vand.u32 %v1330, 2147483648
      %v1710 = vor.u32 1.1754944e-38, %v1709
      %v1711 = vsel %vm1708, %v1710, %v1706
      %v1712 = vmul.f32 1.0, %v1711
      %v1713 = vrcp.pop %v1331
      %v1714 = vmul.f32 %v1331, %v1713
      %v1715 = vsub.f32 1.0, %v1714
      %v1716 = vmul.f32 %v1713, %v1715
      %v1717 = vadd.f32 %v1713, %v1716
      %vm1718 = vweird.f32 %v1331
      %vm1719 = vweird.f32 %v1713
      %vm1720 = vmor %vm1718, %vm1719
      %v1721 = vsel %vm1720, %v1713, %v1717
      %v1722 = vand.u32 2147483647, %v1331
      %vm1723 = vcmp.eq.f32.partialorder %v1722, 8.507059e+37
      %v1724 = vand.u32 %v1331, 2147483648
      %v1725 = vor.u32 1.1754944e-38, %v1724
      %v1726 = vsel %vm1723, %v1725, %v1721
      %v1727 = vmul.f32 1.0, %v1726
      %v1728 = vrcp.pop %v1332
      %v1729 = vmul.f32 %v1332, %v1728
      %v1730 = vsub.f32 1.0, %v1729
      %v1731 = vmul.f32 %v1728, %v1730
      %v1732 = vadd.f32 %v1728, %v1731
      %vm1733 = vweird.f32 %v1332
      %vm1734 = vweird.f32 %v1728
      %vm1735 = vmor %vm1733, %vm1734
      %v1736 = vsel %vm1735, %v1728, %v1732
      %v1737 = vand.u32 2147483647, %v1332
      %vm1738 = vcmp.eq.f32.partialorder %v1737, 8.507059e+37
      %v1739 = vand.u32 %v1332, 2147483648
      %v1740 = vor.u32 1.1754944e-38, %v1739
      %v1741 = vsel %vm1738, %v1740, %v1736
      %v1742 = vmul.f32 1.0, %v1741
      %v1743 = vrcp.pop %v1333
      %v1744 = vmul.f32 %v1333, %v1743
      %v1745 = vsub.f32 1.0, %v1744
      %v1746 = vmul.f32 %v1743, %v1745
      %v1747 = vadd.f32 %v1743, %v1746
      %vm1748 = vweird.f32 %v1333
      %vm1749 = vweird.f32 %v1743
      %vm1750 = vmor %vm1748, %vm1749
      %v1751 = vsel %vm1750, %v1743, %v1747
      %v1752 = vand.u32 2147483647, %v1333
      %vm1753 = vcmp.eq.f32.partialorder %v1752, 8.507059e+37
      %v1754 = vand.u32 %v1333, 2147483648
      %v1755 = vor.u32 1.1754944e-38, %v1754
      %v1756 = vsel %vm1753, %v1755, %v1751
      %v1757 = vmul.f32 1.0, %v1756
      %v1758 = vrcp.pop %v1334
      %v1759 = vmul.f32 %v1334, %v1758
      %v1760 = vsub.f32 1.0, %v1759
      %v1761 = vmul.f32 %v1758, %v1760
      %v1762 = vadd.f32 %v1758, %v1761
      %vm1763 = vweird.f32 %v1334
      %vm1764 = vweird.f32 %v1758
      %vm1765 = vmor %vm1763, %vm1764
      %v1766 = vsel %vm1765, %v1758, %v1762
      %v1767 = vand.u32 2147483647, %v1334
      %vm1768 = vcmp.eq.f32.partialorder %v1767, 8.507059e+37
      %v1769 = vand.u32 %v1334, 2147483648
      %v1770 = vor.u32 1.1754944e-38, %v1769
      %v1771 = vsel %vm1768, %v1770, %v1766
      %v1772 = vmul.f32 1.0, %v1771
      %v1773 = vrcp.pop %v1335
      %v1774 = vmul.f32 %v1335, %v1773
      %v1775 = vsub.f32 1.0, %v1774
      %v1776 = vmul.f32 %v1773, %v1775
      %v1777 = vadd.f32 %v1773, %v1776
      %vm1778 = vweird.f32 %v1335
      %vm1779 = vweird.f32 %v1773
      %vm1780 = vmor %vm1778, %vm1779
      %v1781 = vsel %vm1780, %v1773, %v1777
      %v1782 = vand.u32 2147483647, %v1335
      %vm1783 = vcmp.eq.f32.partialorder %v1782, 8.507059e+37
      %v1784 = vand.u32 %v1335, 2147483648
      %v1785 = vor.u32 1.1754944e-38, %v1784
      %v1786 = vsel %vm1783, %v1785, %v1781
      %v1787 = vmul.f32 1.0, %v1786
      %v1788 = vrcp.pop %v1336
      %v1789 = vmul.f32 %v1336, %v1788
      %v1790 = vsub.f32 1.0, %v1789
      %v1791 = vmul.f32 %v1788, %v1790
      %v1792 = vadd.f32 %v1788, %v1791
      %vm1793 = vweird.f32 %v1336
      %vm1794 = vweird.f32 %v1788
      %vm1795 = vmor %vm1793, %vm1794
      %v1796 = vsel %vm1795, %v1788, %v1792
      %v1797 = vand.u32 2147483647, %v1336
      %vm1798 = vcmp.eq.f32.partialorder %v1797, 8.507059e+37
      %v1799 = vand.u32 %v1336, 2147483648
      %v1800 = vor.u32 1.1754944e-38, %v1799
      %v1801 = vsel %vm1798, %v1800, %v1796
      %v1802 = vmul.f32 1.0, %v1801
      %v1803 = vrcp.pop %v1337
      %v1804 = vmul.f32 %v1337, %v1803
      %v1805 = vsub.f32 1.0, %v1804
      %v1806 = vmul.f32 %v1803, %v1805
      %v1807 = vadd.f32 %v1803, %v1806
      %vm1808 = vweird.f32 %v1337
      %vm1809 = vweird.f32 %v1803
      %vm1810 = vmor %vm1808, %vm1809
      %v1811 = vsel %vm1810, %v1803, %v1807
      %v1812 = vand.u32 2147483647, %v1337
      %vm1813 = vcmp.eq.f32.partialorder %v1812, 8.507059e+37
      %v1814 = vand.u32 %v1337, 2147483648
      %v1815 = vor.u32 1.1754944e-38, %v1814
      %v1816 = vsel %vm1813, %v1815, %v1811
      %v1817 = vmul.f32 1.0, %v1816
      %1818 = vst.msk [vmem:[%s334] sm:$0xff] %vm424, %v1352
      %1819 = vst.msk [vmem:[%s334 + $0x8] sm:$0xff] %vm424, %v1367
      %1820 = vst.msk [vmem:[%s334 + $0x10] sm:$0xff] %vm424, %v1382
      %1821 = vst.msk [vmem:[%s334 + $0x18] sm:$0xff] %vm424, %v1397
      %1822 = vst.msk [vmem:[%s334 + $0x20] sm:$0xff] %vm424, %v1412
      %1823 = vst.msk [vmem:[%s334 + $0x28] sm:$0xff] %vm424, %v1427
      %1824 = vst.msk [vmem:[%s334 + $0x30] sm:$0xff] %vm424, %v1442
      %1825 = vst.msk [vmem:[%s334 + $0x38] sm:$0xff] %vm424, %v1457
      %1826 = vst.msk [vmem:[%s334 + $0x40] sm:$0xff] %vm424, %v1472
      %1827 = vst.msk [vmem:[%s334 + $0x48] sm:$0xff] %vm424, %v1487
      %1828 = vst.msk [vmem:[%s334 + $0x50] sm:$0xff] %vm424, %v1502
      %1829 = vst.msk [vmem:[%s334 + $0x58] sm:$0xff] %vm424, %v1517
      %1830 = vst.msk [vmem:[%s334 + $0x60] sm:$0xff] %vm424, %v1532
      %1831 = vst.msk [vmem:[%s334 + $0x68] sm:$0xff] %vm424, %v1547
      %1832 = vst.msk [vmem:[%s334 + $0x70] sm:$0xff] %vm424, %v1562
      %1833 = vst.msk [vmem:[%s334 + $0x78] sm:$0xff] %vm424, %v1577
      %1834 = vst.msk [vmem:[%s334 + $0x80] sm:$0xff] %vm424, %v1592
      %1835 = vst.msk [vmem:[%s334 + $0x88] sm:$0xff] %vm424, %v1607
      %1836 = vst.msk [vmem:[%s334 + $0x90] sm:$0xff] %vm424, %v1622
      %1837 = vst.msk [vmem:[%s334 + $0x98] sm:$0xff] %vm424, %v1637
      %1838 = vst.msk [vmem:[%s334 + $0xa0] sm:$0xff] %vm424, %v1652
      %1839 = vst.msk [vmem:[%s334 + $0xa8] sm:$0xff] %vm424, %v1667
      %1840 = vst.msk [vmem:[%s334 + $0xb0] sm:$0xff] %vm424, %v1682
      %1841 = vst.msk [vmem:[%s334 + $0xb8] sm:$0xff] %vm424, %v1697
      %1842 = vst.msk [vmem:[%s334 + $0xc0] sm:$0xff] %vm424, %v1712
      %1843 = vst.msk [vmem:[%s334 + $0xc8] sm:$0xff] %vm424, %v1727
      %1844 = vst.msk [vmem:[%s334 + $0xd0] sm:$0xff] %vm424, %v1742
      %1845 = vst.msk [vmem:[%s334 + $0xd8] sm:$0xff] %vm424, %v1757
      %1846 = vst.msk [vmem:[%s334 + $0xe0] sm:$0xff] %vm424, %v1772
      %1847 = vst.msk [vmem:[%s334 + $0xe8] sm:$0xff] %vm424, %v1787
      %1848 = vst.msk [vmem:[%s334 + $0xf0] sm:$0xff] %vm424, %v1802
      %1849 = vst.msk [vmem:[%s334 + $0xf8] sm:$0xff] %vm424, %v1817
      %s1850 = scalar_lea.vmem %s328, 256
      %v1851 = vld [vmem:[%s1850] sm:$0xff]
      %v1852 = vld [vmem:[%s1850 + $0x8] sm:$0xff]
      %v1853 = vld [vmem:[%s1850 + $0x10] sm:$0xff]
      %v1854 = vld [vmem:[%s1850 + $0x18] sm:$0xff]
      %v1855 = vld [vmem:[%s1850 + $0x20] sm:$0xff]
      %v1856 = vld [vmem:[%s1850 + $0x28] sm:$0xff]
      %v1857 = vld [vmem:[%s1850 + $0x30] sm:$0xff]
      %v1858 = vld [vmem:[%s1850 + $0x38] sm:$0xff]
      %v1859 = vld [vmem:[%s1850 + $0x40] sm:$0xff]
      %v1860 = vld [vmem:[%s1850 + $0x48] sm:$0xff]
      %v1861 = vld [vmem:[%s1850 + $0x50] sm:$0xff]
      %v1862 = vld [vmem:[%s1850 + $0x58] sm:$0xff]
      %v1863 = vld [vmem:[%s1850 + $0x60] sm:$0xff]
      %v1864 = vld [vmem:[%s1850 + $0x68] sm:$0xff]
      %v1865 = vld [vmem:[%s1850 + $0x70] sm:$0xff]
      %v1866 = vld [vmem:[%s1850 + $0x78] sm:$0xff]
      %v1867 = vld [vmem:[%s1850 + $0x80] sm:$0xff]
      %v1868 = vld [vmem:[%s1850 + $0x88] sm:$0xff]
      %v1869 = vld [vmem:[%s1850 + $0x90] sm:$0xff]
      %v1870 = vld [vmem:[%s1850 + $0x98] sm:$0xff]
      %v1871 = vld [vmem:[%s1850 + $0xa0] sm:$0xff]
      %v1872 = vld [vmem:[%s1850 + $0xa8] sm:$0xff]
      %v1873 = vld [vmem:[%s1850 + $0xb0] sm:$0xff]
      %v1874 = vld [vmem:[%s1850 + $0xb8] sm:$0xff]
      %v1875 = vld [vmem:[%s1850 + $0xc0] sm:$0xff]
      %v1876 = vld [vmem:[%s1850 + $0xc8] sm:$0xff]
      %v1877 = vld [vmem:[%s1850 + $0xd0] sm:$0xff]
      %v1878 = vld [vmem:[%s1850 + $0xd8] sm:$0xff]
      %v1879 = vld [vmem:[%s1850 + $0xe0] sm:$0xff]
      %v1880 = vld [vmem:[%s1850 + $0xe8] sm:$0xff]
      %v1881 = vld [vmem:[%s1850 + $0xf0] sm:$0xff]
      %v1882 = vld [vmem:[%s1850 + $0xf8] sm:$0xff]
      %v1883 = vld [vmem:[%s1] sm:$0xff]
      %v1884 = vld [vmem:[%s1 + $0x8] sm:$0xff]
      %v1885 = vld [vmem:[%s1 + $0x10] sm:$0xff]
      %v1886 = vld [vmem:[%s1 + $0x18] sm:$0xff]
      %v1887 = vld [vmem:[%s1 + $0x20] sm:$0xff]
      %v1888 = vld [vmem:[%s1 + $0x28] sm:$0xff]
      %v1889 = vld [vmem:[%s1 + $0x30] sm:$0xff]
      %v1890 = vld [vmem:[%s1 + $0x38] sm:$0xff]
      %v1891 = vld [vmem:[%s2] sm:$0xff]
      %v1892 = vld [vmem:[%s2 + $0x8] sm:$0xff]
      %v1893 = vld [vmem:[%s2 + $0x10] sm:$0xff]
      %v1894 = vld [vmem:[%s2 + $0x18] sm:$0xff]
      %v1895 = vld [vmem:[%s2 + $0x20] sm:$0xff]
      %v1896 = vld [vmem:[%s2 + $0x28] sm:$0xff]
      %v1897 = vld [vmem:[%s2 + $0x30] sm:$0xff]
      %v1898 = vld [vmem:[%s2 + $0x38] sm:$0xff]
      %1900 = vset.pattern.permute.xlu0 0
      %1901 = vperm.xlu0 %1900, %v1891
      %v1902 = vpop.permute.xlu0 %1901
      %1905 = vset.pattern.permute.xlu0 0
      %1906 = vperm.xlu0 %1905, %v1892
      %v1907 = vpop.permute.xlu0 %1906
      %1910 = vset.pattern.permute.xlu0 0
      %1911 = vperm.xlu0 %1910, %v1893
      %v1912 = vpop.permute.xlu0 %1911
      %1915 = vset.pattern.permute.xlu0 0
      %1916 = vperm.xlu0 %1915, %v1894
      %v1917 = vpop.permute.xlu0 %1916
      %1920 = vset.pattern.permute.xlu0 0
      %1921 = vperm.xlu0 %1920, %v1895
      %v1922 = vpop.permute.xlu0 %1921
      %1925 = vset.pattern.permute.xlu0 0
      %1926 = vperm.xlu0 %1925, %v1896
      %v1927 = vpop.permute.xlu0 %1926
      %1930 = vset.pattern.permute.xlu0 0
      %1931 = vperm.xlu0 %1930, %v1897
      %v1932 = vpop.permute.xlu0 %1931
      %1935 = vset.pattern.permute.xlu0 0
      %1936 = vperm.xlu0 %1935, %v1898
      %v1937 = vpop.permute.xlu0 %1936
      %v1940 = vsel %vm424, %v1883, 0
      %v1943 = vsel %vm424, %v1884, 0
      %v1946 = vsel %vm424, %v1885, 0
      %v1949 = vsel %vm424, %v1886, 0
      %v1952 = vsel %vm424, %v1887, 0
      %v1955 = vsel %vm424, %v1888, 0
      %v1958 = vsel %vm424, %v1889, 0
      %v1961 = vsel %vm424, %v1890, 0
      %v1964 = vsel %vm424, %v1851, 0
      %v1967 = vsel %vm424, %v1852, 0
      %v1970 = vsel %vm424, %v1853, 0
      %v1973 = vsel %vm424, %v1854, 0
      %v1976 = vsel %vm424, %v1855, 0
      %v1979 = vsel %vm424, %v1856, 0
      %v1982 = vsel %vm424, %v1857, 0
      %v1985 = vsel %vm424, %v1858, 0
      %v1988 = vsel %vm424, %v1859, 0
      %v1991 = vsel %vm424, %v1860, 0
      %v1994 = vsel %vm424, %v1861, 0
      %v1997 = vsel %vm424, %v1862, 0
      %v2000 = vsel %vm424, %v1863, 0
      %v2003 = vsel %vm424, %v1864, 0
      %v2006 = vsel %vm424, %v1865, 0
      %v2009 = vsel %vm424, %v1866, 0
      %v2012 = vsel %vm424, %v1867, 0
      %v2015 = vsel %vm424, %v1868, 0
      %v2018 = vsel %vm424, %v1869, 0
      %v2021 = vsel %vm424, %v1870, 0
      %v2024 = vsel %vm424, %v1871, 0
      %v2027 = vsel %vm424, %v1872, 0
      %v2030 = vsel %vm424, %v1873, 0
      %v2033 = vsel %vm424, %v1874, 0
      %v2036 = vsel %vm424, %v1875, 0
      %v2039 = vsel %vm424, %v1876, 0
      %v2042 = vsel %vm424, %v1877, 0
      %v2045 = vsel %vm424, %v1878, 0
      %v2048 = vsel %vm424, %v1879, 0
      %v2051 = vsel %vm424, %v1880, 0
      %v2054 = vsel %vm424, %v1881, 0
      %v2057 = vsel %vm424, %v1882, 0
      %2059 = vmatpush.xpose.msra.mxu0 %v2009
      %2060 = vmatpush.xpose.msra.mxu0 %v2006
      %2061 = vmatpush.xpose.msra.mxu0 %v2003
      %2062 = vmatpush.xpose.msra.mxu0 %v2000
      %2063 = vmatpush.xpose.msra.mxu0 %v1997
      %2064 = vmatpush.xpose.msra.mxu0 %v1994
      %2065 = vmatpush.xpose.msra.mxu0 %v1991
      %2066 = vmatpush.xpose.msra.mxu0 %v1988
      %2067 = vmatpush.xpose.msra.mxu0 %v1985
      %2068 = vmatpush.xpose.msra.mxu0 %v1982
      %2069 = vmatpush.xpose.msra.mxu0 %v1979
      %2070 = vmatpush.xpose.msra.mxu0 %v1976
      %2071 = vmatpush.xpose.msra.mxu0 %v1973
      %2072 = vmatpush.xpose.msra.mxu0 %v1970
      %2073 = vmatpush.xpose.msra.mxu0 %v1967
      %2074 = vmatpush.xpose.msra.mxu0 %v1964
      %2075 = vmatmul.f32.gmra.mxu0 %v1940
      %v2076 = vpop.f32.mrf.mxu0
      %v2077 = vadd.f32 %v1902, %v2076
      %2078 = vmatmul.f32.gmra.mxu0 %v1943
      %v2079 = vpop.f32.mrf.mxu0
      %v2080 = vadd.f32 %v1907, %v2079
      %2081 = vmatmul.f32.gmra.mxu0 %v1946
      %v2082 = vpop.f32.mrf.mxu0
      %v2083 = vadd.f32 %v1912, %v2082
      %2084 = vmatmul.f32.gmra.mxu0 %v1949
      %v2085 = vpop.f32.mrf.mxu0
      %v2086 = vadd.f32 %v1917, %v2085
      %2087 = vmatmul.f32.gmra.mxu0 %v1952
      %v2088 = vpop.f32.mrf.mxu0
      %v2089 = vadd.f32 %v1922, %v2088
      %2090 = vmatmul.f32.gmra.mxu0 %v1955
      %v2091 = vpop.f32.mrf.mxu0
      %v2092 = vadd.f32 %v1927, %v2091
      %2093 = vmatmul.f32.gmra.mxu0 %v1958
      %v2094 = vpop.f32.mrf.mxu0
      %v2095 = vadd.f32 %v1932, %v2094
      %2096 = vmatmul.f32.gmra.mxu0 %v1961
      %v2097 = vpop.f32.mrf.mxu0
      %v2098 = vadd.f32 %v1937, %v2097
      %2099 = vdwg.mxu0
      %2100 = vmatpush.xpose.msra.mxu0 %v2057
      %2101 = vmatpush.xpose.msra.mxu0 %v2054
      %2102 = vmatpush.xpose.msra.mxu0 %v2051
      %2103 = vmatpush.xpose.msra.mxu0 %v2048
      %2104 = vmatpush.xpose.msra.mxu0 %v2045
      %2105 = vmatpush.xpose.msra.mxu0 %v2042
      %2106 = vmatpush.xpose.msra.mxu0 %v2039
      %2107 = vmatpush.xpose.msra.mxu0 %v2036
      %2108 = vmatpush.xpose.msra.mxu0 %v2033
      %2109 = vmatpush.xpose.msra.mxu0 %v2030
      %2110 = vmatpush.xpose.msra.mxu0 %v2027
      %2111 = vmatpush.xpose.msra.mxu0 %v2024
      %2112 = vmatpush.xpose.msra.mxu0 %v2021
      %2113 = vmatpush.xpose.msra.mxu0 %v2018
      %2114 = vmatpush.xpose.msra.mxu0 %v2015
      %2115 = vmatpush.xpose.msra.mxu0 %v2012
      %2116 = vmatmul.f32.gmra.mxu0 %v1940
      %v2117 = vpop.f32.mrf.mxu0
      %v2118 = vadd.f32 %v1902, %v2117
      %2119 = vmatmul.f32.gmra.mxu0 %v1943
      %v2120 = vpop.f32.mrf.mxu0
      %v2121 = vadd.f32 %v1907, %v2120
      %2122 = vmatmul.f32.gmra.mxu0 %v1946
      %v2123 = vpop.f32.mrf.mxu0
      %v2124 = vadd.f32 %v1912, %v2123
      %2125 = vmatmul.f32.gmra.mxu0 %v1949
      %v2126 = vpop.f32.mrf.mxu0
      %v2127 = vadd.f32 %v1917, %v2126
      %2128 = vmatmul.f32.gmra.mxu0 %v1952
      %v2129 = vpop.f32.mrf.mxu0
      %v2130 = vadd.f32 %v1922, %v2129
      %2131 = vmatmul.f32.gmra.mxu0 %v1955
      %v2132 = vpop.f32.mrf.mxu0
      %v2133 = vadd.f32 %v1927, %v2132
      %2134 = vmatmul.f32.gmra.mxu0 %v1958
      %v2135 = vpop.f32.mrf.mxu0
      %v2136 = vadd.f32 %v1932, %v2135
      %2137 = vmatmul.f32.gmra.mxu0 %v1961
      %v2138 = vpop.f32.mrf.mxu0
      %v2139 = vadd.f32 %v1937, %v2138
      %2140 = vdwg.mxu0
      %v2141 = vmax.f32 %v2077, 0.0
      %v2142 = vmax.f32 %v2118, 0.0
      %v2143 = vmax.f32 %v2080, 0.0
      %v2144 = vmax.f32 %v2121, 0.0
      %v2145 = vmax.f32 %v2083, 0.0
      %v2146 = vmax.f32 %v2124, 0.0
      %v2147 = vmax.f32 %v2086, 0.0
      %v2148 = vmax.f32 %v2127, 0.0
      %v2149 = vmax.f32 %v2089, 0.0
      %v2150 = vmax.f32 %v2130, 0.0
      %v2151 = vmax.f32 %v2092, 0.0
      %v2152 = vmax.f32 %v2133, 0.0
      %v2153 = vmax.f32 %v2095, 0.0
      %v2154 = vmax.f32 %v2136, 0.0
      %v2155 = vmax.f32 %v2098, 0.0
      %v2156 = vmax.f32 %v2139, 0.0
      %v2157 = vld [vmem:[%s3] sm:$0xff]
      %v2158 = vld [vmem:[%s3 + $0x8] sm:$0xff]
      %v2159 = vld [vmem:[%s3 + $0x10] sm:$0xff]
      %v2160 = vld [vmem:[%s3 + $0x18] sm:$0xff]
      %v2161 = vld [vmem:[%s3 + $0x20] sm:$0xff]
      %v2162 = vld [vmem:[%s3 + $0x28] sm:$0xff]
      %v2163 = vld [vmem:[%s3 + $0x30] sm:$0xff]
      %v2164 = vld [vmem:[%s3 + $0x38] sm:$0xff]
      %v2165 = vld [vmem:[%s4] sm:$0xff]
      %v2166 = vld [vmem:[%s4 + $0x8] sm:$0xff]
      %v2167 = vld [vmem:[%s4 + $0x10] sm:$0xff]
      %v2168 = vld [vmem:[%s4 + $0x18] sm:$0xff]
      %v2169 = vld [vmem:[%s4 + $0x20] sm:$0xff]
      %v2170 = vld [vmem:[%s4 + $0x28] sm:$0xff]
      %v2171 = vld [vmem:[%s4 + $0x30] sm:$0xff]
      %v2172 = vld [vmem:[%s4 + $0x38] sm:$0xff]
      %2174 = vset.pattern.permute.xlu0 0
      %2175 = vperm.xlu0 %2174, %v2165
      %v2176 = vpop.permute.xlu0 %2175
      %2179 = vset.pattern.permute.xlu0 0
      %2180 = vperm.xlu0 %2179, %v2166
      %v2181 = vpop.permute.xlu0 %2180
      %2184 = vset.pattern.permute.xlu0 0
      %2185 = vperm.xlu0 %2184, %v2167
      %v2186 = vpop.permute.xlu0 %2185
      %2189 = vset.pattern.permute.xlu0 0
      %2190 = vperm.xlu0 %2189, %v2168
      %v2191 = vpop.permute.xlu0 %2190
      %2194 = vset.pattern.permute.xlu0 0
      %2195 = vperm.xlu0 %2194, %v2169
      %v2196 = vpop.permute.xlu0 %2195
      %2199 = vset.pattern.permute.xlu0 0
      %2200 = vperm.xlu0 %2199, %v2170
      %v2201 = vpop.permute.xlu0 %2200
      %2204 = vset.pattern.permute.xlu0 0
      %2205 = vperm.xlu0 %2204, %v2171
      %v2206 = vpop.permute.xlu0 %2205
      %2209 = vset.pattern.permute.xlu0 0
      %2210 = vperm.xlu0 %2209, %v2172
      %v2211 = vpop.permute.xlu0 %2210
      %v2214 = vsel %vm699, %v2157, 0
      %v2217 = vsel %vm699, %v2158, 0
      %v2220 = vsel %vm699, %v2159, 0
      %v2223 = vsel %vm699, %v2160, 0
      %v2226 = vsel %vm699, %v2161, 0
      %v2229 = vsel %vm699, %v2162, 0
      %v2232 = vsel %vm699, %v2163, 0
      %v2235 = vsel %vm699, %v2164, 0
      %2237 = vmatpush.msra.mxu0 0.0
      %2238 = vmatpush.msra.mxu0 0.0
      %2239 = vmatpush.msra.mxu0 0.0
      %2240 = vmatpush.msra.mxu0 0.0
      %2241 = vmatpush.msra.mxu0 0.0
      %2242 = vmatpush.msra.mxu0 0.0
      %2243 = vmatpush.msra.mxu0 0.0
      %2244 = vmatpush.msra.mxu0 0.0
      %2245 = vmatpush.msra.mxu0 %v2155
      %2246 = vmatpush.msra.mxu0 %v2153
      %2247 = vmatpush.msra.mxu0 %v2151
      %2248 = vmatpush.msra.mxu0 %v2149
      %2249 = vmatpush.msra.mxu0 %v2147
      %2250 = vmatpush.msra.mxu0 %v2145
      %2251 = vmatpush.msra.mxu0 %v2143
      %2252 = vmatpush.msra.mxu0 %v2141
      %2253 = vmatmul.f32.gmra.mxu0 %v2214
      %v2254 = vpop.f32.mrf.mxu0
      %v2255 = vadd.f32 %v2176, %v2254
      %2256 = vmatmul.f32.gmra.mxu0 %v2217
      %v2257 = vpop.f32.mrf.mxu0
      %v2258 = vadd.f32 %v2181, %v2257
      %2259 = vmatmul.f32.gmra.mxu0 %v2220
      %v2260 = vpop.f32.mrf.mxu0
      %v2261 = vadd.f32 %v2186, %v2260
      %2262 = vmatmul.f32.gmra.mxu0 %v2223
      %v2263 = vpop.f32.mrf.mxu0
      %v2264 = vadd.f32 %v2191, %v2263
      %2265 = vmatmul.f32.gmra.mxu0 %v2226
      %v2266 = vpop.f32.mrf.mxu0
      %v2267 = vadd.f32 %v2196, %v2266
      %2268 = vmatmul.f32.gmra.mxu0 %v2229
      %v2269 = vpop.f32.mrf.mxu0
      %v2270 = vadd.f32 %v2201, %v2269
      %2271 = vmatmul.f32.gmra.mxu0 %v2232
      %v2272 = vpop.f32.mrf.mxu0
      %v2273 = vadd.f32 %v2206, %v2272
      %2274 = vmatmul.f32.gmra.mxu0 %v2235
      %v2275 = vpop.f32.mrf.mxu0
      %v2276 = vadd.f32 %v2211, %v2275
      %2277 = vdwg.mxu0
      %2278 = vmatpush.msra.mxu0 0.0
      %2279 = vmatpush.msra.mxu0 0.0
      %2280 = vmatpush.msra.mxu0 0.0
      %2281 = vmatpush.msra.mxu0 0.0
      %2282 = vmatpush.msra.mxu0 0.0
      %2283 = vmatpush.msra.mxu0 0.0
      %2284 = vmatpush.msra.mxu0 0.0
      %2285 = vmatpush.msra.mxu0 0.0
      %2286 = vmatpush.msra.mxu0 %v2156
      %2287 = vmatpush.msra.mxu0 %v2154
      %2288 = vmatpush.msra.mxu0 %v2152
      %2289 = vmatpush.msra.mxu0 %v2150
      %2290 = vmatpush.msra.mxu0 %v2148
      %2291 = vmatpush.msra.mxu0 %v2146
      %2292 = vmatpush.msra.mxu0 %v2144
      %2293 = vmatpush.msra.mxu0 %v2142
      %2294 = vmatmul.f32.gmra.mxu0 %v2214
      %v2295 = vpop.f32.mrf.mxu0
      %v2296 = vadd.f32 %v2176, %v2295
      %2297 = vmatmul.f32.gmra.mxu0 %v2217
      %v2298 = vpop.f32.mrf.mxu0
      %v2299 = vadd.f32 %v2181, %v2298
      %2300 = vmatmul.f32.gmra.mxu0 %v2220
      %v2301 = vpop.f32.mrf.mxu0
      %v2302 = vadd.f32 %v2186, %v2301
      %2303 = vmatmul.f32.gmra.mxu0 %v2223
      %v2304 = vpop.f32.mrf.mxu0
      %v2305 = vadd.f32 %v2191, %v2304
      %2306 = vmatmul.f32.gmra.mxu0 %v2226
      %v2307 = vpop.f32.mrf.mxu0
      %v2308 = vadd.f32 %v2196, %v2307
      %2309 = vmatmul.f32.gmra.mxu0 %v2229
      %v2310 = vpop.f32.mrf.mxu0
      %v2311 = vadd.f32 %v2201, %v2310
      %2312 = vmatmul.f32.gmra.mxu0 %v2232
      %v2313 = vpop.f32.mrf.mxu0
      %v2314 = vadd.f32 %v2206, %v2313
      %2315 = vmatmul.f32.gmra.mxu0 %v2235
      %v2316 = vpop.f32.mrf.mxu0
      %v2317 = vadd.f32 %v2211, %v2316
      %2318 = vdwg.mxu0
      %v2319 = vmax.f32 %v2255, 0.0
      %v2320 = vmax.f32 %v2296, 0.0
      %v2321 = vmax.f32 %v2258, 0.0
      %v2322 = vmax.f32 %v2299, 0.0
      %v2323 = vmax.f32 %v2261, 0.0
      %v2324 = vmax.f32 %v2302, 0.0
      %v2325 = vmax.f32 %v2264, 0.0
      %v2326 = vmax.f32 %v2305, 0.0
      %v2327 = vmax.f32 %v2267, 0.0
      %v2328 = vmax.f32 %v2308, 0.0
      %v2329 = vmax.f32 %v2270, 0.0
      %v2330 = vmax.f32 %v2311, 0.0
      %v2331 = vmax.f32 %v2273, 0.0
      %v2332 = vmax.f32 %v2314, 0.0
      %v2333 = vmax.f32 %v2276, 0.0
      %v2334 = vmax.f32 %v2317, 0.0
      %v2335 = vld [vmem:[%s5] sm:$0xff]
      %v2336 = vld [vmem:[%s5 + $0x8] sm:$0xff]
      %v2337 = vld [vmem:[%s5 + $0x10] sm:$0xff]
      %v2338 = vld [vmem:[%s5 + $0x18] sm:$0xff]
      %v2339 = vld [vmem:[%s6] sm:$0xff]
      %v2340 = vld [vmem:[%s6 + $0x8] sm:$0xff]
      %v2341 = vld [vmem:[%s6 + $0x10] sm:$0xff]
      %v2342 = vld [vmem:[%s6 + $0x18] sm:$0xff]
      %2344 = vset.pattern.permute.xlu0 0
      %2345 = vperm.xlu0 %2344, %v2339
      %v2346 = vpop.permute.xlu0 %2345
      %2349 = vset.pattern.permute.xlu0 0
      %2350 = vperm.xlu0 %2349, %v2340
      %v2351 = vpop.permute.xlu0 %2350
      %2354 = vset.pattern.permute.xlu0 0
      %2355 = vperm.xlu0 %2354, %v2341
      %v2356 = vpop.permute.xlu0 %2355
      %2359 = vset.pattern.permute.xlu0 0
      %2360 = vperm.xlu0 %2359, %v2342
      %v2361 = vpop.permute.xlu0 %2360
      %v2364 = vsel %vm699, %v2335, 0
      %v2367 = vsel %vm699, %v2336, 0
      %v2370 = vsel %vm699, %v2337, 0
      %v2373 = vsel %vm699, %v2338, 0
      %2375 = vmatpush.msra.mxu0 0.0
      %2376 = vmatpush.msra.mxu0 0.0
      %2377 = vmatpush.msra.mxu0 0.0
      %2378 = vmatpush.msra.mxu0 0.0
      %2379 = vmatpush.msra.mxu0 0.0
      %2380 = vmatpush.msra.mxu0 0.0
      %2381 = vmatpush.msra.mxu0 0.0
      %2382 = vmatpush.msra.mxu0 0.0
      %2383 = vmatpush.msra.mxu0 %v2333
      %2384 = vmatpush.msra.mxu0 %v2331
      %2385 = vmatpush.msra.mxu0 %v2329
      %2386 = vmatpush.msra.mxu0 %v2327
      %2387 = vmatpush.msra.mxu0 %v2325
      %2388 = vmatpush.msra.mxu0 %v2323
      %2389 = vmatpush.msra.mxu0 %v2321
      %2390 = vmatpush.msra.mxu0 %v2319
      %2391 = vmatmul.f32.gmra.mxu0 %v2364
      %v2392 = vpop.f32.mrf.mxu0
      %v2393 = vadd.f32 %v2346, %v2392
      %2394 = vmatmul.f32.gmra.mxu0 %v2367
      %v2395 = vpop.f32.mrf.mxu0
      %v2396 = vadd.f32 %v2351, %v2395
      %2397 = vmatmul.f32.gmra.mxu0 %v2370
      %v2398 = vpop.f32.mrf.mxu0
      %v2399 = vadd.f32 %v2356, %v2398
      %2400 = vmatmul.f32.gmra.mxu0 %v2373
      %v2401 = vpop.f32.mrf.mxu0
      %v2402 = vadd.f32 %v2361, %v2401
      %2403 = vdwg.mxu0
      %2404 = vmatpush.msra.mxu0 0.0
      %2405 = vmatpush.msra.mxu0 0.0
      %2406 = vmatpush.msra.mxu0 0.0
      %2407 = vmatpush.msra.mxu0 0.0
      %2408 = vmatpush.msra.mxu0 0.0
      %2409 = vmatpush.msra.mxu0 0.0
      %2410 = vmatpush.msra.mxu0 0.0
      %2411 = vmatpush.msra.mxu0 0.0
      %2412 = vmatpush.msra.mxu0 %v2334
      %2413 = vmatpush.msra.mxu0 %v2332
      %2414 = vmatpush.msra.mxu0 %v2330
      %2415 = vmatpush.msra.mxu0 %v2328
      %2416 = vmatpush.msra.mxu0 %v2326
      %2417 = vmatpush.msra.mxu0 %v2324
      %2418 = vmatpush.msra.mxu0 %v2322
      %2419 = vmatpush.msra.mxu0 %v2320
      %2420 = vmatmul.f32.gmra.mxu0 %v2364
      %v2421 = vpop.f32.mrf.mxu0
      %v2422 = vadd.f32 %v2346, %v2421
      %2423 = vmatmul.f32.gmra.mxu0 %v2367
      %v2424 = vpop.f32.mrf.mxu0
      %v2425 = vadd.f32 %v2351, %v2424
      %2426 = vmatmul.f32.gmra.mxu0 %v2370
      %v2427 = vpop.f32.mrf.mxu0
      %v2428 = vadd.f32 %v2356, %v2427
      %2429 = vmatmul.f32.gmra.mxu0 %v2373
      %v2430 = vpop.f32.mrf.mxu0
      %v2431 = vadd.f32 %v2361, %v2430
      %2432 = vdwg.mxu0
      %v2433 = vmax.f32 %v2393, 0.0
      %v2434 = vmax.f32 %v2422, 0.0
      %v2435 = vmax.f32 %v2396, 0.0
      %v2436 = vmax.f32 %v2425, 0.0
      %v2437 = vmax.f32 %v2399, 0.0
      %v2438 = vmax.f32 %v2428, 0.0
      %v2439 = vmax.f32 %v2402, 0.0
      %v2440 = vmax.f32 %v2431, 0.0
      %2441 = vxpose.xlu0.b32.start [1/16] %v2433, 128
      %2442 = vxpose.xlu0.b32.cont [2/16] %v2435, 128
      %2443 = vxpose.xlu0.b32.cont [3/16] %v2437, 128
      %2444 = vxpose.xlu0.b32.cont [4/16] %v2439, 128
      %2445 = vxpose.xlu0.b32.cont [5/16] 0.0, 128
      %2446 = vxpose.xlu0.b32.cont [6/16] 0.0, 128
      %2447 = vxpose.xlu0.b32.cont [7/16] 0.0, 128
      %2448 = vxpose.xlu0.b32.cont [8/16] 0.0, 128
      %2449 = vxpose.xlu0.b32.cont [9/16] 0.0, 128
      %2450 = vxpose.xlu0.b32.cont [10/16] 0.0, 128
      %2451 = vxpose.xlu0.b32.cont [11/16] 0.0, 128
      %2452 = vxpose.xlu0.b32.cont [12/16] 0.0, 128
      %2453 = vxpose.xlu0.b32.cont [13/16] 0.0, 128
      %2454 = vxpose.xlu0.b32.cont [14/16] 0.0, 128
      %2455 = vxpose.xlu0.b32.cont [15/16] 0.0, 128
      %2456 = vxpose.xlu0.b32.end [16/16] 0.0, 128
      %v2457 = vpop.trf.xlu0
      %v2458 = vpop.trf.xlu0
      %v2459 = vpop.trf.xlu0
      %v2460 = vpop.trf.xlu0
      %v2461 = vpop.trf.xlu0
      %v2462 = vpop.trf.xlu0
      %v2463 = vpop.trf.xlu0
      %v2464 = vpop.trf.xlu0
      %v2465 = vpop.trf.xlu0
      %v2466 = vpop.trf.xlu0
      %v2467 = vpop.trf.xlu0
      %v2468 = vpop.trf.xlu0
      %v2469 = vpop.trf.xlu0
      %v2470 = vpop.trf.xlu0
      %v2471 = vpop.trf.xlu0
      %v2472 = vpop.trf.xlu0
      %2473 = vxpose.xlu0.b32.start [1/16] %v2434, 128
      %2474 = vxpose.xlu0.b32.cont [2/16] %v2436, 128
      %2475 = vxpose.xlu0.b32.cont [3/16] %v2438, 128
      %2476 = vxpose.xlu0.b32.cont [4/16] %v2440, 128
      %2477 = vxpose.xlu0.b32.cont [5/16] 0.0, 128
      %2478 = vxpose.xlu0.b32.cont [6/16] 0.0, 128
      %2479 = vxpose.xlu0.b32.cont [7/16] 0.0, 128
      %2480 = vxpose.xlu0.b32.cont [8/16] 0.0, 128
      %2481 = vxpose.xlu0.b32.cont [9/16] 0.0, 128
      %2482 = vxpose.xlu0.b32.cont [10/16] 0.0, 128
      %2483 = vxpose.xlu0.b32.cont [11/16] 0.0, 128
      %2484 = vxpose.xlu0.b32.cont [12/16] 0.0, 128
      %2485 = vxpose.xlu0.b32.cont [13/16] 0.0, 128
      %2486 = vxpose.xlu0.b32.cont [14/16] 0.0, 128
      %2487 = vxpose.xlu0.b32.cont [15/16] 0.0, 128
      %2488 = vxpose.xlu0.b32.end [16/16] 0.0, 128
      %v2489 = vpop.trf.xlu0
      %v2490 = vpop.trf.xlu0
      %v2491 = vpop.trf.xlu0
      %v2492 = vpop.trf.xlu0
      %v2493 = vpop.trf.xlu0
      %v2494 = vpop.trf.xlu0
      %v2495 = vpop.trf.xlu0
      %v2496 = vpop.trf.xlu0
      %v2497 = vpop.trf.xlu0
      %v2498 = vpop.trf.xlu0
      %v2499 = vpop.trf.xlu0
      %v2500 = vpop.trf.xlu0
      %v2501 = vpop.trf.xlu0
      %v2502 = vpop.trf.xlu0
      %v2503 = vpop.trf.xlu0
      %v2504 = vpop.trf.xlu0
      %v2505 = vld [vmem:[%s7] sm:$0xff]
      %v2506 = vld [vmem:[%s7 + $0x8] sm:$0xff]
      %v2507 = vld [vmem:[%s7 + $0x10] sm:$0xff]
      %v2508 = vld [vmem:[%s7 + $0x18] sm:$0xff]
      %v2509 = vld [vmem:[%s8] sm:$0x1]
      %v2511 = vperm.slane %v2509, 0
      %v2514 = vsel %vm1000, %v2457, 0
      %v2517 = vsel %vm1000, %v2458, 0
      %v2520 = vsel %vm1000, %v2459, 0
      %v2523 = vsel %vm1000, %v2460, 0
      %v2526 = vsel %vm1000, %v2461, 0
      %v2529 = vsel %vm1000, %v2462, 0
      %v2532 = vsel %vm1000, %v2463, 0
      %v2535 = vsel %vm1000, %v2464, 0
      %v2538 = vsel %vm1000, %v2465, 0
      %v2541 = vsel %vm1000, %v2466, 0
      %v2544 = vsel %vm1000, %v2467, 0
      %v2547 = vsel %vm1000, %v2468, 0
      %v2550 = vsel %vm1000, %v2469, 0
      %v2553 = vsel %vm1000, %v2470, 0
      %v2556 = vsel %vm1000, %v2471, 0
      %v2559 = vsel %vm1000, %v2472, 0
      %v2562 = vsel %vm1000, %v2489, 0
      %v2565 = vsel %vm1000, %v2490, 0
      %v2568 = vsel %vm1000, %v2491, 0
      %v2571 = vsel %vm1000, %v2492, 0
      %v2574 = vsel %vm1000, %v2493, 0
      %v2577 = vsel %vm1000, %v2494, 0
      %v2580 = vsel %vm1000, %v2495, 0
      %v2583 = vsel %vm1000, %v2496, 0
      %v2586 = vsel %vm1000, %v2497, 0
      %v2589 = vsel %vm1000, %v2498, 0
      %v2592 = vsel %vm1000, %v2499, 0
      %v2595 = vsel %vm1000, %v2500, 0
      %v2598 = vsel %vm1000, %v2501, 0
      %v2601 = vsel %vm1000, %v2502, 0
      %v2604 = vsel %vm1000, %v2503, 0
      %v2607 = vsel %vm1000, %v2504, 0
      %2609 = vmatpush.msra.mxu0 0.0
      %2610 = vmatpush.msra.mxu0 0.0
      %2611 = vmatpush.msra.mxu0 0.0
      %2612 = vmatpush.msra.mxu0 0.0
      %2613 = vmatpush.msra.mxu0 0.0
      %2614 = vmatpush.msra.mxu0 0.0
      %2615 = vmatpush.msra.mxu0 0.0
      %2616 = vmatpush.msra.mxu0 0.0
      %2617 = vmatpush.msra.mxu0 0.0
      %2618 = vmatpush.msra.mxu0 0.0
      %2619 = vmatpush.msra.mxu0 0.0
      %2620 = vmatpush.msra.mxu0 0.0
      %2621 = vmatpush.msra.mxu0 %v2508
      %2622 = vmatpush.msra.mxu0 %v2507
      %2623 = vmatpush.msra.mxu0 %v2506
      %2624 = vmatpush.msra.mxu0 %v2505
      %2625 = vmatmul.f32.gmra.mxu0 %v2514
      %v2626 = vpop.f32.mrf.mxu0
      %v2627 = vadd.f32 %v2511, %v2626
      %2628 = vmatmul.f32.gmra.mxu0 %v2517
      %v2629 = vpop.f32.mrf.mxu0
      %v2630 = vadd.f32 %v2511, %v2629
      %2631 = vmatmul.f32.gmra.mxu0 %v2520
      %v2632 = vpop.f32.mrf.mxu0
      %v2633 = vadd.f32 %v2511, %v2632
      %2634 = vmatmul.f32.gmra.mxu0 %v2523
      %v2635 = vpop.f32.mrf.mxu0
      %v2636 = vadd.f32 %v2511, %v2635
      %2637 = vmatmul.f32.gmra.mxu0 %v2526
      %v2638 = vpop.f32.mrf.mxu0
      %v2639 = vadd.f32 %v2511, %v2638
      %2640 = vmatmul.f32.gmra.mxu0 %v2529
      %v2641 = vpop.f32.mrf.mxu0
      %v2642 = vadd.f32 %v2511, %v2641
      %2643 = vmatmul.f32.gmra.mxu0 %v2532
      %v2644 = vpop.f32.mrf.mxu0
      %v2645 = vadd.f32 %v2511, %v2644
      %2646 = vmatmul.f32.gmra.mxu0 %v2535
      %v2647 = vpop.f32.mrf.mxu0
      %v2648 = vadd.f32 %v2511, %v2647
      %2649 = vmatmul.f32.gmra.mxu0 %v2538
      %v2650 = vpop.f32.mrf.mxu0
      %v2651 = vadd.f32 %v2511, %v2650
      %2652 = vmatmul.f32.gmra.mxu0 %v2541
      %v2653 = vpop.f32.mrf.mxu0
      %v2654 = vadd.f32 %v2511, %v2653
      %2655 = vmatmul.f32.gmra.mxu0 %v2544
      %v2656 = vpop.f32.mrf.mxu0
      %v2657 = vadd.f32 %v2511, %v2656
      %2658 = vmatmul.f32.gmra.mxu0 %v2547
      %v2659 = vpop.f32.mrf.mxu0
      %v2660 = vadd.f32 %v2511, %v2659
      %2661 = vmatmul.f32.gmra.mxu0 %v2550
      %v2662 = vpop.f32.mrf.mxu0
      %v2663 = vadd.f32 %v2511, %v2662
      %2664 = vmatmul.f32.gmra.mxu0 %v2553
      %v2665 = vpop.f32.mrf.mxu0
      %v2666 = vadd.f32 %v2511, %v2665
      %2667 = vmatmul.f32.gmra.mxu0 %v2556
      %v2668 = vpop.f32.mrf.mxu0
      %v2669 = vadd.f32 %v2511, %v2668
      %2670 = vmatmul.f32.gmra.mxu0 %v2559
      %v2671 = vpop.f32.mrf.mxu0
      %v2672 = vadd.f32 %v2511, %v2671
      %2673 = vmatmul.f32.gmra.mxu0 %v2562
      %v2674 = vpop.f32.mrf.mxu0
      %v2675 = vadd.f32 %v2511, %v2674
      %2676 = vmatmul.f32.gmra.mxu0 %v2565
      %v2677 = vpop.f32.mrf.mxu0
      %v2678 = vadd.f32 %v2511, %v2677
      %2679 = vmatmul.f32.gmra.mxu0 %v2568
      %v2680 = vpop.f32.mrf.mxu0
      %v2681 = vadd.f32 %v2511, %v2680
      %2682 = vmatmul.f32.gmra.mxu0 %v2571
      %v2683 = vpop.f32.mrf.mxu0
      %v2684 = vadd.f32 %v2511, %v2683
      %2685 = vmatmul.f32.gmra.mxu0 %v2574
      %v2686 = vpop.f32.mrf.mxu0
      %v2687 = vadd.f32 %v2511, %v2686
      %2688 = vmatmul.f32.gmra.mxu0 %v2577
      %v2689 = vpop.f32.mrf.mxu0
      %v2690 = vadd.f32 %v2511, %v2689
      %2691 = vmatmul.f32.gmra.mxu0 %v2580
      %v2692 = vpop.f32.mrf.mxu0
      %v2693 = vadd.f32 %v2511, %v2692
      %2694 = vmatmul.f32.gmra.mxu0 %v2583
      %v2695 = vpop.f32.mrf.mxu0
      %v2696 = vadd.f32 %v2511, %v2695
      %2697 = vmatmul.f32.gmra.mxu0 %v2586
      %v2698 = vpop.f32.mrf.mxu0
      %v2699 = vadd.f32 %v2511, %v2698
      %2700 = vmatmul.f32.gmra.mxu0 %v2589
      %v2701 = vpop.f32.mrf.mxu0
      %v2702 = vadd.f32 %v2511, %v2701
      %2703 = vmatmul.f32.gmra.mxu0 %v2592
      %v2704 = vpop.f32.mrf.mxu0
      %v2705 = vadd.f32 %v2511, %v2704
      %2706 = vmatmul.f32.gmra.mxu0 %v2595
      %v2707 = vpop.f32.mrf.mxu0
      %v2708 = vadd.f32 %v2511, %v2707
      %2709 = vmatmul.f32.gmra.mxu0 %v2598
      %v2710 = vpop.f32.mrf.mxu0
      %v2711 = vadd.f32 %v2511, %v2710
      %2712 = vmatmul.f32.gmra.mxu0 %v2601
      %v2713 = vpop.f32.mrf.mxu0
      %v2714 = vadd.f32 %v2511, %v2713
      %2715 = vmatmul.f32.gmra.mxu0 %v2604
      %v2716 = vpop.f32.mrf.mxu0
      %v2717 = vadd.f32 %v2511, %v2716
      %2718 = vmatmul.f32.gmra.mxu0 %v2607
      %v2719 = vpop.f32.mrf.mxu0
      %v2720 = vadd.f32 %v2511, %v2719
      %2721 = vdwg.mxu0
      %v2722 = vxor.u32 %v2627, 2147483648
      %v2723 = vxor.u32 %v2630, 2147483648
      %v2724 = vxor.u32 %v2633, 2147483648
      %v2725 = vxor.u32 %v2636, 2147483648
      %v2726 = vxor.u32 %v2639, 2147483648
      %v2727 = vxor.u32 %v2642, 2147483648
      %v2728 = vxor.u32 %v2645, 2147483648
      %v2729 = vxor.u32 %v2648, 2147483648
      %v2730 = vxor.u32 %v2651, 2147483648
      %v2731 = vxor.u32 %v2654, 2147483648
      %v2732 = vxor.u32 %v2657, 2147483648
      %v2733 = vxor.u32 %v2660, 2147483648
      %v2734 = vxor.u32 %v2663, 2147483648
      %v2735 = vxor.u32 %v2666, 2147483648
      %v2736 = vxor.u32 %v2669, 2147483648
      %v2737 = vxor.u32 %v2672, 2147483648
      %v2738 = vxor.u32 %v2675, 2147483648
      %v2739 = vxor.u32 %v2678, 2147483648
      %v2740 = vxor.u32 %v2681, 2147483648
      %v2741 = vxor.u32 %v2684, 2147483648
      %v2742 = vxor.u32 %v2687, 2147483648
      %v2743 = vxor.u32 %v2690, 2147483648
      %v2744 = vxor.u32 %v2693, 2147483648
      %v2745 = vxor.u32 %v2696, 2147483648
      %v2746 = vxor.u32 %v2699, 2147483648
      %v2747 = vxor.u32 %v2702, 2147483648
      %v2748 = vxor.u32 %v2705, 2147483648
      %v2749 = vxor.u32 %v2708, 2147483648
      %v2750 = vxor.u32 %v2711, 2147483648
      %v2751 = vxor.u32 %v2714, 2147483648
      %v2752 = vxor.u32 %v2717, 2147483648
      %v2753 = vxor.u32 %v2720, 2147483648
      %v2754 = vmul.f32 %v2722, 1.442695
      %v2755 = vpow.pop %v2754
      %v2756 = vmul.f32 %v2723, 1.442695
      %v2757 = vpow.pop %v2756
      %v2758 = vmul.f32 %v2724, 1.442695
      %v2759 = vpow.pop %v2758
      %v2760 = vmul.f32 %v2725, 1.442695
      %v2761 = vpow.pop %v2760
      %v2762 = vmul.f32 %v2726, 1.442695
      %v2763 = vpow.pop %v2762
      %v2764 = vmul.f32 %v2727, 1.442695
      %v2765 = vpow.pop %v2764
      %v2766 = vmul.f32 %v2728, 1.442695
      %v2767 = vpow.pop %v2766
      %v2768 = vmul.f32 %v2729, 1.442695
      %v2769 = vpow.pop %v2768
      %v2770 = vmul.f32 %v2730, 1.442695
      %v2771 = vpow.pop %v2770
      %v2772 = vmul.f32 %v2731, 1.442695
      %v2773 = vpow.pop %v2772
      %v2774 = vmul.f32 %v2732, 1.442695
      %v2775 = vpow.pop %v2774
      %v2776 = vmul.f32 %v2733, 1.442695
      %v2777 = vpow.pop %v2776
      %v2778 = vmul.f32 %v2734, 1.442695
      %v2779 = vpow.pop %v2778
      %v2780 = vmul.f32 %v2735, 1.442695
      %v2781 = vpow.pop %v2780
      %v2782 = vmul.f32 %v2736, 1.442695
      %v2783 = vpow.pop %v2782
      %v2784 = vmul.f32 %v2737, 1.442695
      %v2785 = vpow.pop %v2784
      %v2786 = vmul.f32 %v2738, 1.442695
      %v2787 = vpow.pop %v2786
      %v2788 = vmul.f32 %v2739, 1.442695
      %v2789 = vpow.pop %v2788
      %v2790 = vmul.f32 %v2740, 1.442695
      %v2791 = vpow.pop %v2790
      %v2792 = vmul.f32 %v2741, 1.442695
      %v2793 = vpow.pop %v2792
      %v2794 = vmul.f32 %v2742, 1.442695
      %v2795 = vpow.pop %v2794
      %v2796 = vmul.f32 %v2743, 1.442695
      %v2797 = vpow.pop %v2796
      %v2798 = vmul.f32 %v2744, 1.442695
      %v2799 = vpow.pop %v2798
      %v2800 = vmul.f32 %v2745, 1.442695
      %v2801 = vpow.pop %v2800
      %v2802 = vmul.f32 %v2746, 1.442695
      %v2803 = vpow.pop %v2802
      %v2804 = vmul.f32 %v2747, 1.442695
      %v2805 = vpow.pop %v2804
      %v2806 = vmul.f32 %v2748, 1.442695
      %v2807 = vpow.pop %v2806
      %v2808 = vmul.f32 %v2749, 1.442695
      %v2809 = vpow.pop %v2808
      %v2810 = vmul.f32 %v2750, 1.442695
      %v2811 = vpow.pop %v2810
      %v2812 = vmul.f32 %v2751, 1.442695
      %v2813 = vpow.pop %v2812
      %v2814 = vmul.f32 %v2752, 1.442695
      %v2815 = vpow.pop %v2814
      %v2816 = vmul.f32 %v2753, 1.442695
      %v2817 = vpow.pop %v2816
      %v2818 = vadd.f32 %v2755, 1.0
      %v2819 = vadd.f32 %v2757, 1.0
      %v2820 = vadd.f32 %v2759, 1.0
      %v2821 = vadd.f32 %v2761, 1.0
      %v2822 = vadd.f32 %v2763, 1.0
      %v2823 = vadd.f32 %v2765, 1.0
      %v2824 = vadd.f32 %v2767, 1.0
      %v2825 = vadd.f32 %v2769, 1.0
      %v2826 = vadd.f32 %v2771, 1.0
      %v2827 = vadd.f32 %v2773, 1.0
      %v2828 = vadd.f32 %v2775, 1.0
      %v2829 = vadd.f32 %v2777, 1.0
      %v2830 = vadd.f32 %v2779, 1.0
      %v2831 = vadd.f32 %v2781, 1.0
      %v2832 = vadd.f32 %v2783, 1.0
      %v2833 = vadd.f32 %v2785, 1.0
      %v2834 = vadd.f32 %v2787, 1.0
      %v2835 = vadd.f32 %v2789, 1.0
      %v2836 = vadd.f32 %v2791, 1.0
      %v2837 = vadd.f32 %v2793, 1.0
      %v2838 = vadd.f32 %v2795, 1.0
      %v2839 = vadd.f32 %v2797, 1.0
      %v2840 = vadd.f32 %v2799, 1.0
      %v2841 = vadd.f32 %v2801, 1.0
      %v2842 = vadd.f32 %v2803, 1.0
      %v2843 = vadd.f32 %v2805, 1.0
      %v2844 = vadd.f32 %v2807, 1.0
      %v2845 = vadd.f32 %v2809, 1.0
      %v2846 = vadd.f32 %v2811, 1.0
      %v2847 = vadd.f32 %v2813, 1.0
      %v2848 = vadd.f32 %v2815, 1.0
      %v2849 = vadd.f32 %v2817, 1.0
      %v2850 = vrcp.pop %v2818
      %v2851 = vmul.f32 %v2818, %v2850
      %v2852 = vsub.f32 1.0, %v2851
      %v2853 = vmul.f32 %v2850, %v2852
      %v2854 = vadd.f32 %v2850, %v2853
      %vm2855 = vweird.f32 %v2818
      %vm2856 = vweird.f32 %v2850
      %vm2857 = vmor %vm2855, %vm2856
      %v2858 = vsel %vm2857, %v2850, %v2854
      %v2859 = vand.u32 2147483647, %v2818
      %vm2860 = vcmp.eq.f32.partialorder %v2859, 8.507059e+37
      %v2861 = vand.u32 %v2818, 2147483648
      %v2862 = vor.u32 1.1754944e-38, %v2861
      %v2863 = vsel %vm2860, %v2862, %v2858
      %v2864 = vmul.f32 1.0, %v2863
      %v2865 = vrcp.pop %v2819
      %v2866 = vmul.f32 %v2819, %v2865
      %v2867 = vsub.f32 1.0, %v2866
      %v2868 = vmul.f32 %v2865, %v2867
      %v2869 = vadd.f32 %v2865, %v2868
      %vm2870 = vweird.f32 %v2819
      %vm2871 = vweird.f32 %v2865
      %vm2872 = vmor %vm2870, %vm2871
      %v2873 = vsel %vm2872, %v2865, %v2869
      %v2874 = vand.u32 2147483647, %v2819
      %vm2875 = vcmp.eq.f32.partialorder %v2874, 8.507059e+37
      %v2876 = vand.u32 %v2819, 2147483648
      %v2877 = vor.u32 1.1754944e-38, %v2876
      %v2878 = vsel %vm2875, %v2877, %v2873
      %v2879 = vmul.f32 1.0, %v2878
      %v2880 = vrcp.pop %v2820
      %v2881 = vmul.f32 %v2820, %v2880
      %v2882 = vsub.f32 1.0, %v2881
      %v2883 = vmul.f32 %v2880, %v2882
      %v2884 = vadd.f32 %v2880, %v2883
      %vm2885 = vweird.f32 %v2820
      %vm2886 = vweird.f32 %v2880
      %vm2887 = vmor %vm2885, %vm2886
      %v2888 = vsel %vm2887, %v2880, %v2884
      %v2889 = vand.u32 2147483647, %v2820
      %vm2890 = vcmp.eq.f32.partialorder %v2889, 8.507059e+37
      %v2891 = vand.u32 %v2820, 2147483648
      %v2892 = vor.u32 1.1754944e-38, %v2891
      %v2893 = vsel %vm2890, %v2892, %v2888
      %v2894 = vmul.f32 1.0, %v2893
      %v2895 = vrcp.pop %v2821
      %v2896 = vmul.f32 %v2821, %v2895
      %v2897 = vsub.f32 1.0, %v2896
      %v2898 = vmul.f32 %v2895, %v2897
      %v2899 = vadd.f32 %v2895, %v2898
      %vm2900 = vweird.f32 %v2821
      %vm2901 = vweird.f32 %v2895
      %vm2902 = vmor %vm2900, %vm2901
      %v2903 = vsel %vm2902, %v2895, %v2899
      %v2904 = vand.u32 2147483647, %v2821
      %vm2905 = vcmp.eq.f32.partialorder %v2904, 8.507059e+37
      %v2906 = vand.u32 %v2821, 2147483648
      %v2907 = vor.u32 1.1754944e-38, %v2906
      %v2908 = vsel %vm2905, %v2907, %v2903
      %v2909 = vmul.f32 1.0, %v2908
      %v2910 = vrcp.pop %v2822
      %v2911 = vmul.f32 %v2822, %v2910
      %v2912 = vsub.f32 1.0, %v2911
      %v2913 = vmul.f32 %v2910, %v2912
      %v2914 = vadd.f32 %v2910, %v2913
      %vm2915 = vweird.f32 %v2822
      %vm2916 = vweird.f32 %v2910
      %vm2917 = vmor %vm2915, %vm2916
      %v2918 = vsel %vm2917, %v2910, %v2914
      %v2919 = vand.u32 2147483647, %v2822
      %vm2920 = vcmp.eq.f32.partialorder %v2919, 8.507059e+37
      %v2921 = vand.u32 %v2822, 2147483648
      %v2922 = vor.u32 1.1754944e-38, %v2921
      %v2923 = vsel %vm2920, %v2922, %v2918
      %v2924 = vmul.f32 1.0, %v2923
      %v2925 = vrcp.pop %v2823
      %v2926 = vmul.f32 %v2823, %v2925
      %v2927 = vsub.f32 1.0, %v2926
      %v2928 = vmul.f32 %v2925, %v2927
      %v2929 = vadd.f32 %v2925, %v2928
      %vm2930 = vweird.f32 %v2823
      %vm2931 = vweird.f32 %v2925
      %vm2932 = vmor %vm2930, %vm2931
      %v2933 = vsel %vm2932, %v2925, %v2929
      %v2934 = vand.u32 2147483647, %v2823
      %vm2935 = vcmp.eq.f32.partialorder %v2934, 8.507059e+37
      %v2936 = vand.u32 %v2823, 2147483648
      %v2937 = vor.u32 1.1754944e-38, %v2936
      %v2938 = vsel %vm2935, %v2937, %v2933
      %v2939 = vmul.f32 1.0, %v2938
      %v2940 = vrcp.pop %v2824
      %v2941 = vmul.f32 %v2824, %v2940
      %v2942 = vsub.f32 1.0, %v2941
      %v2943 = vmul.f32 %v2940, %v2942
      %v2944 = vadd.f32 %v2940, %v2943
      %vm2945 = vweird.f32 %v2824
      %vm2946 = vweird.f32 %v2940
      %vm2947 = vmor %vm2945, %vm2946
      %v2948 = vsel %vm2947, %v2940, %v2944
      %v2949 = vand.u32 2147483647, %v2824
      %vm2950 = vcmp.eq.f32.partialorder %v2949, 8.507059e+37
      %v2951 = vand.u32 %v2824, 2147483648
      %v2952 = vor.u32 1.1754944e-38, %v2951
      %v2953 = vsel %vm2950, %v2952, %v2948
      %v2954 = vmul.f32 1.0, %v2953
      %v2955 = vrcp.pop %v2825
      %v2956 = vmul.f32 %v2825, %v2955
      %v2957 = vsub.f32 1.0, %v2956
      %v2958 = vmul.f32 %v2955, %v2957
      %v2959 = vadd.f32 %v2955, %v2958
      %vm2960 = vweird.f32 %v2825
      %vm2961 = vweird.f32 %v2955
      %vm2962 = vmor %vm2960, %vm2961
      %v2963 = vsel %vm2962, %v2955, %v2959
      %v2964 = vand.u32 2147483647, %v2825
      %vm2965 = vcmp.eq.f32.partialorder %v2964, 8.507059e+37
      %v2966 = vand.u32 %v2825, 2147483648
      %v2967 = vor.u32 1.1754944e-38, %v2966
      %v2968 = vsel %vm2965, %v2967, %v2963
      %v2969 = vmul.f32 1.0, %v2968
      %v2970 = vrcp.pop %v2826
      %v2971 = vmul.f32 %v2826, %v2970
      %v2972 = vsub.f32 1.0, %v2971
      %v2973 = vmul.f32 %v2970, %v2972
      %v2974 = vadd.f32 %v2970, %v2973
      %vm2975 = vweird.f32 %v2826
      %vm2976 = vweird.f32 %v2970
      %vm2977 = vmor %vm2975, %vm2976
      %v2978 = vsel %vm2977, %v2970, %v2974
      %v2979 = vand.u32 2147483647, %v2826
      %vm2980 = vcmp.eq.f32.partialorder %v2979, 8.507059e+37
      %v2981 = vand.u32 %v2826, 2147483648
      %v2982 = vor.u32 1.1754944e-38, %v2981
      %v2983 = vsel %vm2980, %v2982, %v2978
      %v2984 = vmul.f32 1.0, %v2983
      %v2985 = vrcp.pop %v2827
      %v2986 = vmul.f32 %v2827, %v2985
      %v2987 = vsub.f32 1.0, %v2986
      %v2988 = vmul.f32 %v2985, %v2987
      %v2989 = vadd.f32 %v2985, %v2988
      %vm2990 = vweird.f32 %v2827
      %vm2991 = vweird.f32 %v2985
      %vm2992 = vmor %vm2990, %vm2991
      %v2993 = vsel %vm2992, %v2985, %v2989
      %v2994 = vand.u32 2147483647, %v2827
      %vm2995 = vcmp.eq.f32.partialorder %v2994, 8.507059e+37
      %v2996 = vand.u32 %v2827, 2147483648
      %v2997 = vor.u32 1.1754944e-38, %v2996
      %v2998 = vsel %vm2995, %v2997, %v2993
      %v2999 = vmul.f32 1.0, %v2998
      %v3000 = vrcp.pop %v2828
      %v3001 = vmul.f32 %v2828, %v3000
      %v3002 = vsub.f32 1.0, %v3001
      %v3003 = vmul.f32 %v3000, %v3002
      %v3004 = vadd.f32 %v3000, %v3003
      %vm3005 = vweird.f32 %v2828
      %vm3006 = vweird.f32 %v3000
      %vm3007 = vmor %vm3005, %vm3006
      %v3008 = vsel %vm3007, %v3000, %v3004
      %v3009 = vand.u32 2147483647, %v2828
      %vm3010 = vcmp.eq.f32.partialorder %v3009, 8.507059e+37
      %v3011 = vand.u32 %v2828, 2147483648
      %v3012 = vor.u32 1.1754944e-38, %v3011
      %v3013 = vsel %vm3010, %v3012, %v3008
      %v3014 = vmul.f32 1.0, %v3013
      %v3015 = vrcp.pop %v2829
      %v3016 = vmul.f32 %v2829, %v3015
      %v3017 = vsub.f32 1.0, %v3016
      %v3018 = vmul.f32 %v3015, %v3017
      %v3019 = vadd.f32 %v3015, %v3018
      %vm3020 = vweird.f32 %v2829
      %vm3021 = vweird.f32 %v3015
      %vm3022 = vmor %vm3020, %vm3021
      %v3023 = vsel %vm3022, %v3015, %v3019
      %v3024 = vand.u32 2147483647, %v2829
      %vm3025 = vcmp.eq.f32.partialorder %v3024, 8.507059e+37
      %v3026 = vand.u32 %v2829, 2147483648
      %v3027 = vor.u32 1.1754944e-38, %v3026
      %v3028 = vsel %vm3025, %v3027, %v3023
      %v3029 = vmul.f32 1.0, %v3028
      %v3030 = vrcp.pop %v2830
      %v3031 = vmul.f32 %v2830, %v3030
      %v3032 = vsub.f32 1.0, %v3031
      %v3033 = vmul.f32 %v3030, %v3032
      %v3034 = vadd.f32 %v3030, %v3033
      %vm3035 = vweird.f32 %v2830
      %vm3036 = vweird.f32 %v3030
      %vm3037 = vmor %vm3035, %vm3036
      %v3038 = vsel %vm3037, %v3030, %v3034
      %v3039 = vand.u32 2147483647, %v2830
      %vm3040 = vcmp.eq.f32.partialorder %v3039, 8.507059e+37
      %v3041 = vand.u32 %v2830, 2147483648
      %v3042 = vor.u32 1.1754944e-38, %v3041
      %v3043 = vsel %vm3040, %v3042, %v3038
      %v3044 = vmul.f32 1.0, %v3043
      %v3045 = vrcp.pop %v2831
      %v3046 = vmul.f32 %v2831, %v3045
      %v3047 = vsub.f32 1.0, %v3046
      %v3048 = vmul.f32 %v3045, %v3047
      %v3049 = vadd.f32 %v3045, %v3048
      %vm3050 = vweird.f32 %v2831
      %vm3051 = vweird.f32 %v3045
      %vm3052 = vmor %vm3050, %vm3051
      %v3053 = vsel %vm3052, %v3045, %v3049
      %v3054 = vand.u32 2147483647, %v2831
      %vm3055 = vcmp.eq.f32.partialorder %v3054, 8.507059e+37
      %v3056 = vand.u32 %v2831, 2147483648
      %v3057 = vor.u32 1.1754944e-38, %v3056
      %v3058 = vsel %vm3055, %v3057, %v3053
      %v3059 = vmul.f32 1.0, %v3058
      %v3060 = vrcp.pop %v2832
      %v3061 = vmul.f32 %v2832, %v3060
      %v3062 = vsub.f32 1.0, %v3061
      %v3063 = vmul.f32 %v3060, %v3062
      %v3064 = vadd.f32 %v3060, %v3063
      %vm3065 = vweird.f32 %v2832
      %vm3066 = vweird.f32 %v3060
      %vm3067 = vmor %vm3065, %vm3066
      %v3068 = vsel %vm3067, %v3060, %v3064
      %v3069 = vand.u32 2147483647, %v2832
      %vm3070 = vcmp.eq.f32.partialorder %v3069, 8.507059e+37
      %v3071 = vand.u32 %v2832, 2147483648
      %v3072 = vor.u32 1.1754944e-38, %v3071
      %v3073 = vsel %vm3070, %v3072, %v3068
      %v3074 = vmul.f32 1.0, %v3073
      %v3075 = vrcp.pop %v2833
      %v3076 = vmul.f32 %v2833, %v3075
      %v3077 = vsub.f32 1.0, %v3076
      %v3078 = vmul.f32 %v3075, %v3077
      %v3079 = vadd.f32 %v3075, %v3078
      %vm3080 = vweird.f32 %v2833
      %vm3081 = vweird.f32 %v3075
      %vm3082 = vmor %vm3080, %vm3081
      %v3083 = vsel %vm3082, %v3075, %v3079
      %v3084 = vand.u32 2147483647, %v2833
      %vm3085 = vcmp.eq.f32.partialorder %v3084, 8.507059e+37
      %v3086 = vand.u32 %v2833, 2147483648
      %v3087 = vor.u32 1.1754944e-38, %v3086
      %v3088 = vsel %vm3085, %v3087, %v3083
      %v3089 = vmul.f32 1.0, %v3088
      %v3090 = vrcp.pop %v2834
      %v3091 = vmul.f32 %v2834, %v3090
      %v3092 = vsub.f32 1.0, %v3091
      %v3093 = vmul.f32 %v3090, %v3092
      %v3094 = vadd.f32 %v3090, %v3093
      %vm3095 = vweird.f32 %v2834
      %vm3096 = vweird.f32 %v3090
      %vm3097 = vmor %vm3095, %vm3096
      %v3098 = vsel %vm3097, %v3090, %v3094
      %v3099 = vand.u32 2147483647, %v2834
      %vm3100 = vcmp.eq.f32.partialorder %v3099, 8.507059e+37
      %v3101 = vand.u32 %v2834, 2147483648
      %v3102 = vor.u32 1.1754944e-38, %v3101
      %v3103 = vsel %vm3100, %v3102, %v3098
      %v3104 = vmul.f32 1.0, %v3103
      %v3105 = vrcp.pop %v2835
      %v3106 = vmul.f32 %v2835, %v3105
      %v3107 = vsub.f32 1.0, %v3106
      %v3108 = vmul.f32 %v3105, %v3107
      %v3109 = vadd.f32 %v3105, %v3108
      %vm3110 = vweird.f32 %v2835
      %vm3111 = vweird.f32 %v3105
      %vm3112 = vmor %vm3110, %vm3111
      %v3113 = vsel %vm3112, %v3105, %v3109
      %v3114 = vand.u32 2147483647, %v2835
      %vm3115 = vcmp.eq.f32.partialorder %v3114, 8.507059e+37
      %v3116 = vand.u32 %v2835, 2147483648
      %v3117 = vor.u32 1.1754944e-38, %v3116
      %v3118 = vsel %vm3115, %v3117, %v3113
      %v3119 = vmul.f32 1.0, %v3118
      %v3120 = vrcp.pop %v2836
      %v3121 = vmul.f32 %v2836, %v3120
      %v3122 = vsub.f32 1.0, %v3121
      %v3123 = vmul.f32 %v3120, %v3122
      %v3124 = vadd.f32 %v3120, %v3123
      %vm3125 = vweird.f32 %v2836
      %vm3126 = vweird.f32 %v3120
      %vm3127 = vmor %vm3125, %vm3126
      %v3128 = vsel %vm3127, %v3120, %v3124
      %v3129 = vand.u32 2147483647, %v2836
      %vm3130 = vcmp.eq.f32.partialorder %v3129, 8.507059e+37
      %v3131 = vand.u32 %v2836, 2147483648
      %v3132 = vor.u32 1.1754944e-38, %v3131
      %v3133 = vsel %vm3130, %v3132, %v3128
      %v3134 = vmul.f32 1.0, %v3133
      %v3135 = vrcp.pop %v2837
      %v3136 = vmul.f32 %v2837, %v3135
      %v3137 = vsub.f32 1.0, %v3136
      %v3138 = vmul.f32 %v3135, %v3137
      %v3139 = vadd.f32 %v3135, %v3138
      %vm3140 = vweird.f32 %v2837
      %vm3141 = vweird.f32 %v3135
      %vm3142 = vmor %vm3140, %vm3141
      %v3143 = vsel %vm3142, %v3135, %v3139
      %v3144 = vand.u32 2147483647, %v2837
      %vm3145 = vcmp.eq.f32.partialorder %v3144, 8.507059e+37
      %v3146 = vand.u32 %v2837, 2147483648
      %v3147 = vor.u32 1.1754944e-38, %v3146
      %v3148 = vsel %vm3145, %v3147, %v3143
      %v3149 = vmul.f32 1.0, %v3148
      %v3150 = vrcp.pop %v2838
      %v3151 = vmul.f32 %v2838, %v3150
      %v3152 = vsub.f32 1.0, %v3151
      %v3153 = vmul.f32 %v3150, %v3152
      %v3154 = vadd.f32 %v3150, %v3153
      %vm3155 = vweird.f32 %v2838
      %vm3156 = vweird.f32 %v3150
      %vm3157 = vmor %vm3155, %vm3156
      %v3158 = vsel %vm3157, %v3150, %v3154
      %v3159 = vand.u32 2147483647, %v2838
      %vm3160 = vcmp.eq.f32.partialorder %v3159, 8.507059e+37
      %v3161 = vand.u32 %v2838, 2147483648
      %v3162 = vor.u32 1.1754944e-38, %v3161
      %v3163 = vsel %vm3160, %v3162, %v3158
      %v3164 = vmul.f32 1.0, %v3163
      %v3165 = vrcp.pop %v2839
      %v3166 = vmul.f32 %v2839, %v3165
      %v3167 = vsub.f32 1.0, %v3166
      %v3168 = vmul.f32 %v3165, %v3167
      %v3169 = vadd.f32 %v3165, %v3168
      %vm3170 = vweird.f32 %v2839
      %vm3171 = vweird.f32 %v3165
      %vm3172 = vmor %vm3170, %vm3171
      %v3173 = vsel %vm3172, %v3165, %v3169
      %v3174 = vand.u32 2147483647, %v2839
      %vm3175 = vcmp.eq.f32.partialorder %v3174, 8.507059e+37
      %v3176 = vand.u32 %v2839, 2147483648
      %v3177 = vor.u32 1.1754944e-38, %v3176
      %v3178 = vsel %vm3175, %v3177, %v3173
      %v3179 = vmul.f32 1.0, %v3178
      %v3180 = vrcp.pop %v2840
      %v3181 = vmul.f32 %v2840, %v3180
      %v3182 = vsub.f32 1.0, %v3181
      %v3183 = vmul.f32 %v3180, %v3182
      %v3184 = vadd.f32 %v3180, %v3183
      %vm3185 = vweird.f32 %v2840
      %vm3186 = vweird.f32 %v3180
      %vm3187 = vmor %vm3185, %vm3186
      %v3188 = vsel %vm3187, %v3180, %v3184
      %v3189 = vand.u32 2147483647, %v2840
      %vm3190 = vcmp.eq.f32.partialorder %v3189, 8.507059e+37
      %v3191 = vand.u32 %v2840, 2147483648
      %v3192 = vor.u32 1.1754944e-38, %v3191
      %v3193 = vsel %vm3190, %v3192, %v3188
      %v3194 = vmul.f32 1.0, %v3193
      %v3195 = vrcp.pop %v2841
      %v3196 = vmul.f32 %v2841, %v3195
      %v3197 = vsub.f32 1.0, %v3196
      %v3198 = vmul.f32 %v3195, %v3197
      %v3199 = vadd.f32 %v3195, %v3198
      %vm3200 = vweird.f32 %v2841
      %vm3201 = vweird.f32 %v3195
      %vm3202 = vmor %vm3200, %vm3201
      %v3203 = vsel %vm3202, %v3195, %v3199
      %v3204 = vand.u32 2147483647, %v2841
      %vm3205 = vcmp.eq.f32.partialorder %v3204, 8.507059e+37
      %v3206 = vand.u32 %v2841, 2147483648
      %v3207 = vor.u32 1.1754944e-38, %v3206
      %v3208 = vsel %vm3205, %v3207, %v3203
      %v3209 = vmul.f32 1.0, %v3208
      %v3210 = vrcp.pop %v2842
      %v3211 = vmul.f32 %v2842, %v3210
      %v3212 = vsub.f32 1.0, %v3211
      %v3213 = vmul.f32 %v3210, %v3212
      %v3214 = vadd.f32 %v3210, %v3213
      %vm3215 = vweird.f32 %v2842
      %vm3216 = vweird.f32 %v3210
      %vm3217 = vmor %vm3215, %vm3216
      %v3218 = vsel %vm3217, %v3210, %v3214
      %v3219 = vand.u32 2147483647, %v2842
      %vm3220 = vcmp.eq.f32.partialorder %v3219, 8.507059e+37
      %v3221 = vand.u32 %v2842, 2147483648
      %v3222 = vor.u32 1.1754944e-38, %v3221
      %v3223 = vsel %vm3220, %v3222, %v3218
      %v3224 = vmul.f32 1.0, %v3223
      %v3225 = vrcp.pop %v2843
      %v3226 = vmul.f32 %v2843, %v3225
      %v3227 = vsub.f32 1.0, %v3226
      %v3228 = vmul.f32 %v3225, %v3227
      %v3229 = vadd.f32 %v3225, %v3228
      %vm3230 = vweird.f32 %v2843
      %vm3231 = vweird.f32 %v3225
      %vm3232 = vmor %vm3230, %vm3231
      %v3233 = vsel %vm3232, %v3225, %v3229
      %v3234 = vand.u32 2147483647, %v2843
      %vm3235 = vcmp.eq.f32.partialorder %v3234, 8.507059e+37
      %v3236 = vand.u32 %v2843, 2147483648
      %v3237 = vor.u32 1.1754944e-38, %v3236
      %v3238 = vsel %vm3235, %v3237, %v3233
      %v3239 = vmul.f32 1.0, %v3238
      %v3240 = vrcp.pop %v2844
      %v3241 = vmul.f32 %v2844, %v3240
      %v3242 = vsub.f32 1.0, %v3241
      %v3243 = vmul.f32 %v3240, %v3242
      %v3244 = vadd.f32 %v3240, %v3243
      %vm3245 = vweird.f32 %v2844
      %vm3246 = vweird.f32 %v3240
      %vm3247 = vmor %vm3245, %vm3246
      %v3248 = vsel %vm3247, %v3240, %v3244
      %v3249 = vand.u32 2147483647, %v2844
      %vm3250 = vcmp.eq.f32.partialorder %v3249, 8.507059e+37
      %v3251 = vand.u32 %v2844, 2147483648
      %v3252 = vor.u32 1.1754944e-38, %v3251
      %v3253 = vsel %vm3250, %v3252, %v3248
      %v3254 = vmul.f32 1.0, %v3253
      %v3255 = vrcp.pop %v2845
      %v3256 = vmul.f32 %v2845, %v3255
      %v3257 = vsub.f32 1.0, %v3256
      %v3258 = vmul.f32 %v3255, %v3257
      %v3259 = vadd.f32 %v3255, %v3258
      %vm3260 = vweird.f32 %v2845
      %vm3261 = vweird.f32 %v3255
      %vm3262 = vmor %vm3260, %vm3261
      %v3263 = vsel %vm3262, %v3255, %v3259
      %v3264 = vand.u32 2147483647, %v2845
      %vm3265 = vcmp.eq.f32.partialorder %v3264, 8.507059e+37
      %v3266 = vand.u32 %v2845, 2147483648
      %v3267 = vor.u32 1.1754944e-38, %v3266
      %v3268 = vsel %vm3265, %v3267, %v3263
      %v3269 = vmul.f32 1.0, %v3268
      %v3270 = vrcp.pop %v2846
      %v3271 = vmul.f32 %v2846, %v3270
      %v3272 = vsub.f32 1.0, %v3271
      %v3273 = vmul.f32 %v3270, %v3272
      %v3274 = vadd.f32 %v3270, %v3273
      %vm3275 = vweird.f32 %v2846
      %vm3276 = vweird.f32 %v3270
      %vm3277 = vmor %vm3275, %vm3276
      %v3278 = vsel %vm3277, %v3270, %v3274
      %v3279 = vand.u32 2147483647, %v2846
      %vm3280 = vcmp.eq.f32.partialorder %v3279, 8.507059e+37
      %v3281 = vand.u32 %v2846, 2147483648
      %v3282 = vor.u32 1.1754944e-38, %v3281
      %v3283 = vsel %vm3280, %v3282, %v3278
      %v3284 = vmul.f32 1.0, %v3283
      %v3285 = vrcp.pop %v2847
      %v3286 = vmul.f32 %v2847, %v3285
      %v3287 = vsub.f32 1.0, %v3286
      %v3288 = vmul.f32 %v3285, %v3287
      %v3289 = vadd.f32 %v3285, %v3288
      %vm3290 = vweird.f32 %v2847
      %vm3291 = vweird.f32 %v3285
      %vm3292 = vmor %vm3290, %vm3291
      %v3293 = vsel %vm3292, %v3285, %v3289
      %v3294 = vand.u32 2147483647, %v2847
      %vm3295 = vcmp.eq.f32.partialorder %v3294, 8.507059e+37
      %v3296 = vand.u32 %v2847, 2147483648
      %v3297 = vor.u32 1.1754944e-38, %v3296
      %v3298 = vsel %vm3295, %v3297, %v3293
      %v3299 = vmul.f32 1.0, %v3298
      %v3300 = vrcp.pop %v2848
      %v3301 = vmul.f32 %v2848, %v3300
      %v3302 = vsub.f32 1.0, %v3301
      %v3303 = vmul.f32 %v3300, %v3302
      %v3304 = vadd.f32 %v3300, %v3303
      %vm3305 = vweird.f32 %v2848
      %vm3306 = vweird.f32 %v3300
      %vm3307 = vmor %vm3305, %vm3306
      %v3308 = vsel %vm3307, %v3300, %v3304
      %v3309 = vand.u32 2147483647, %v2848
      %vm3310 = vcmp.eq.f32.partialorder %v3309, 8.507059e+37
      %v3311 = vand.u32 %v2848, 2147483648
      %v3312 = vor.u32 1.1754944e-38, %v3311
      %v3313 = vsel %vm3310, %v3312, %v3308
      %v3314 = vmul.f32 1.0, %v3313
      %v3315 = vrcp.pop %v2849
      %v3316 = vmul.f32 %v2849, %v3315
      %v3317 = vsub.f32 1.0, %v3316
      %v3318 = vmul.f32 %v3315, %v3317
      %v3319 = vadd.f32 %v3315, %v3318
      %vm3320 = vweird.f32 %v2849
      %vm3321 = vweird.f32 %v3315
      %vm3322 = vmor %vm3320, %vm3321
      %v3323 = vsel %vm3322, %v3315, %v3319
      %v3324 = vand.u32 2147483647, %v2849
      %vm3325 = vcmp.eq.f32.partialorder %v3324, 8.507059e+37
      %v3326 = vand.u32 %v2849, 2147483648
      %v3327 = vor.u32 1.1754944e-38, %v3326
      %v3328 = vsel %vm3325, %v3327, %v3323
      %v3329 = vmul.f32 1.0, %v3328
      %s3330 = scalar_lea.vmem %s334, 256
      %3331 = vst.msk [vmem:[%s3330] sm:$0xff] %vm424, %v2864
      %3332 = vst.msk [vmem:[%s3330 + $0x8] sm:$0xff] %vm424, %v2879
      %3333 = vst.msk [vmem:[%s3330 + $0x10] sm:$0xff] %vm424, %v2894
      %3334 = vst.msk [vmem:[%s3330 + $0x18] sm:$0xff] %vm424, %v2909
      %3335 = vst.msk [vmem:[%s3330 + $0x20] sm:$0xff] %vm424, %v2924
      %3336 = vst.msk [vmem:[%s3330 + $0x28] sm:$0xff] %vm424, %v2939
      %3337 = vst.msk [vmem:[%s3330 + $0x30] sm:$0xff] %vm424, %v2954
      %3338 = vst.msk [vmem:[%s3330 + $0x38] sm:$0xff] %vm424, %v2969
      %3339 = vst.msk [vmem:[%s3330 + $0x40] sm:$0xff] %vm424, %v2984
      %3340 = vst.msk [vmem:[%s3330 + $0x48] sm:$0xff] %vm424, %v2999
      %3341 = vst.msk [vmem:[%s3330 + $0x50] sm:$0xff] %vm424, %v3014
      %3342 = vst.msk [vmem:[%s3330 + $0x58] sm:$0xff] %vm424, %v3029
      %3343 = vst.msk [vmem:[%s3330 + $0x60] sm:$0xff] %vm424, %v3044
      %3344 = vst.msk [vmem:[%s3330 + $0x68] sm:$0xff] %vm424, %v3059
      %3345 = vst.msk [vmem:[%s3330 + $0x70] sm:$0xff] %vm424, %v3074
      %3346 = vst.msk [vmem:[%s3330 + $0x78] sm:$0xff] %vm424, %v3089
      %3347 = vst.msk [vmem:[%s3330 + $0x80] sm:$0xff] %vm424, %v3104
      %3348 = vst.msk [vmem:[%s3330 + $0x88] sm:$0xff] %vm424, %v3119
      %3349 = vst.msk [vmem:[%s3330 + $0x90] sm:$0xff] %vm424, %v3134
      %3350 = vst.msk [vmem:[%s3330 + $0x98] sm:$0xff] %vm424, %v3149
      %3351 = vst.msk [vmem:[%s3330 + $0xa0] sm:$0xff] %vm424, %v3164
      %3352 = vst.msk [vmem:[%s3330 + $0xa8] sm:$0xff] %vm424, %v3179
      %3353 = vst.msk [vmem:[%s3330 + $0xb0] sm:$0xff] %vm424, %v3194
      %3354 = vst.msk [vmem:[%s3330 + $0xb8] sm:$0xff] %vm424, %v3209
      %3355 = vst.msk [vmem:[%s3330 + $0xc0] sm:$0xff] %vm424, %v3224
      %3356 = vst.msk [vmem:[%s3330 + $0xc8] sm:$0xff] %vm424, %v3239
      %3357 = vst.msk [vmem:[%s3330 + $0xd0] sm:$0xff] %vm424, %v3254
      %3358 = vst.msk [vmem:[%s3330 + $0xd8] sm:$0xff] %vm424, %v3269
      %3359 = vst.msk [vmem:[%s3330 + $0xe0] sm:$0xff] %vm424, %v3284
      %3360 = vst.msk [vmem:[%s3330 + $0xe8] sm:$0xff] %vm424, %v3299
      %3361 = vst.msk [vmem:[%s3330 + $0xf0] sm:$0xff] %vm424, %v3314
      %3362 = vst.msk [vmem:[%s3330 + $0xf8] sm:$0xff] %vm424, %v3329
      %s3363 = smul.u32 64, %s20
      %p3364 = scmp.lt.s32.totalorder %s3363, 127
      %s3365 = scalar_select %p3364, %s3363, 127
      %s3366 = smul.addr %s3365, 8
      %s3367 = scalar_lea.vmem %s9, %s3366
      // Predicated region
      $region57: #{tpu_custom_call.1} parent=55 // pred_check
        %p3368 = pneg %p232
      $region58: #{tpu_custom_call.1} parent=55 // pred_check_branch
        %3370 = sbr.rel (%p3368) target = $region60
      $region59: #{tpu_custom_call.1} parent=55 // pred_region
        %s3371 = smul.u32 64, %s20
      $region60: #{tpu_custom_call.1} parent=55 // pred_fallthru
        _
    $region56: #{tpu_custom_call.1} parent=5 // pred_fallthru
      _
    %p3372 = scmp.le.s32.totalorder 2, %s15
    // Predicated region
    $region61: #{tpu_custom_call.1} parent=5 // pred_check
      %p3373 = pneg %p3372
    $region62: #{tpu_custom_call.1} parent=5 // pred_check_branch
      %3375 = sbr.rel (%p3373) target = $region64
    $region63: #{tpu_custom_call.1} parent=5 // pred_region
      %s3376 = ssub.s32 %s15, 2
      // Predicated region
      $region65: #{tpu_custom_call.1} parent=63 // pred_check
        %p3377 = pneg %p238
      $region66: #{tpu_custom_call.1} parent=63 // pred_check_branch
        %3379 = sbr.rel (%p3377) target = $region68
      $region67: #{tpu_custom_call.1} parent=63 // pred_region
        %s3380 = smul.u32 64, %s21
        %p3381 = scmp.lt.s32.totalorder %s3380, 127
        %s3382 = scalar_select %p3381, %s3380, 127
        %s3383 = smul.addr %s3382, 8
        %s3384 = scalar_lea.vmem %s9, %s3383
      $region68: #{tpu_custom_call.1} parent=63 // pred_fallthru
        _
    $region64: #{tpu_custom_call.1} parent=5 // pred_fallthru
      _
  $region6: #{tpu_custom_call.1} parent=0 // loop_footer
    %s19 = sadd.s32 1, %s15
  $region7: #{tpu_custom_call.1} parent=0 // loop_footer_branch
    %14 = sbr.rel target = $region3
  $region8: #{tpu_custom_call.1} parent=0 // loop_exit
    _

</llo_original>
